<compile_context>
chip_gen: v7x
topology: tpu7x:2x2x1
jax: 0.10.0
libtpu: 0.0.40
codegen_flags: <defaults>
</compile_context>

<pallas_src>
import functools

import jax
import jax.numpy as jnp
import numpy as np
from jax import lax
from jax.experimental import pallas as pl
from jax.experimental.pallas import tpu as pltpu


def _fused_affine_kernel(seq_ref, z_ref, ctx_ref, *rest,
                         layer_cfgs, n_half, T, Bb,
                         use_partial_padding, mxu_dtype):
    """Whole AffineTransformationLayer forward for one block of Bb batch rows.

    rest = (w0_flat, b0, w1_flat, b1, ..., w_scale, b_scale, w_b, b_b,
            z_out_ref, log_s_ref, x0_scratch, xcol_scratch_0, xcol_scratch_1, ...)
    Everything is channel-major (C, T): T on lanes, so stores are lane-dense and
    no transposes are needed anywhere.
    """
    nl = len(layer_cfgs)
    conv_refs = rest[:2 * nl]
    ws_ref, bs_ref, wb_ref, bb_ref = rest[2 * nl:2 * nl + 4]
    zout_ref, ls_ref = rest[2 * nl + 4], rest[2 * nl + 5]
    x0_scr = rest[2 * nl + 6]
    xcol_scrs = rest[2 * nl + 7:]

    f32 = jnp.float32
    t_row = lax.broadcasted_iota(jnp.int32, (1, T), 1)           # (1, T) time idx

    # 0/1 time-shift matrices, built once per grid step from iotas (hoisted out
    # of the row loop).  xm (C, T) @ S_o (T, T) on the MXU == xm shifted by o
    # along time with out-of-range positions already zeroed (exact in f32).
    offsets = sorted({k * d - p for (K, d, p, _, _) in layer_cfgs
                      for k in range(K) if k * d - p != 0})
    rr = lax.broadcasted_iota(jnp.int32, (T, T), 0)
    cc = lax.broadcasted_iota(jnp.int32, (T, T), 1)
    shift_mats = {o: (rr - cc == o).astype(mxu_dtype) for o in offsets}

    base = pl.program_id(0) * Bb
    for b in range(Bb):                                          # static unroll
        L = seq_ref[base + b]                                    # this row's len
        mask = (t_row < L).astype(f32)                           # (1, T) seq mask

        # Layer-0 input: cat(z_0, context) along channels, assembled in VMEM.
        x0_scr[:n_half, :] = z_ref[b, :n_half, :].astype(f32)
        x0_scr[n_half:, :] = ctx_ref[b].astype(f32)
        x = x0_scr[...]                                          # (C0, T)

        for li, (K, d, pad, cin, cout) in enumerate(layer_cfgs):
            w_flat = conv_refs[2 * li][...]                      # (Cout, K*Cin)
            bias = conv_refs[2 * li + 1][...]                    # (Cout, 1)
            xcol = xcol_scrs[li]                                 # (K*Cin, T)

            xm = x * mask                                        # mask each layer
            for k in range(K):                                   # im2col assembly
                o = k * d - pad
                if o == 0:
                    xcol[k * cin:(k + 1) * cin, :] = xm
                else:
                    xcol[k * cin:(k + 1) * cin, :] = jnp.dot(
                        xm.astype(mxu_dtype), shift_mats[o],
                        preferred_element_type=f32)

            # Whole dilated conv = ONE matmul, f32 accumulation.
            acc = jnp.dot(w_flat, xcol[...].astype(mxu_dtype),
                          preferred_element_type=f32)            # (Cout, T)

            if use_partial_padding:
                # PartialConv1d renormalization; valid-tap count in closed form:
                # #{k in [0,K) : 0 <= t + k*d - pad < L}.
                k_lo = jnp.maximum((pad - t_row + d - 1) // d, 0)
                k_hi = jnp.minimum((L - 1 + pad - t_row) // d, K - 1)
                cnt = jnp.maximum(k_hi - k_lo + 1, 0).astype(f32)    # (1, T)
                upd = (cnt > 0).astype(f32)
                ratio = (float(K) / jnp.where(cnt > 0, cnt, float(K))) * upd
                out = acc * ratio + bias * upd                   # ((raw)*r + b)*upd
            else:
                out = acc + bias                                 # plain Conv1d(x*mask)
            x = jnp.maximum(out, 0.0)                            # ReLU

        # last_layer (k=1 conv) with its rows pre-split into scale / b halves,
        # fused with the affine transform:  s = exp(scale);  z1' = s*z1 + b.
        scale = jnp.dot(ws_ref[...], x.astype(mxu_dtype),
                        preferred_element_type=f32) + bs_ref[...]   # (n_half, T)
        bpar = jnp.dot(wb_ref[...], x.astype(mxu_dtype),
                       preferred_element_type=f32) + bb_ref[...]    # (n_half, T)
        z1 = z_ref[b, n_half:, :].astype(f32)
        zout_ref[b, :n_half, :] = z_ref[b, :n_half, :]           # z_0 pass-through
        zout_ref[b, n_half:, :] = (jnp.exp(scale) * z1 + bpar).astype(zout_ref.dtype)
        ls_ref[b] = scale.astype(ls_ref.dtype)                   # log_s for 'exp'


def _largest_divisor_at_most(n, cap):
    for b in range(min(n, cap), 0, -1):
        if n % b == 0:
            return b
    return 1


def affine_transformation_simple_conv(z, context, seq_lens, layer_params,
                                      w_last, b_last, *,
                                      use_partial_padding=False,
                                      mxu_dtype=jnp.float32,
                                      batch_block=None):
    """AffineTransformationLayer.forward (simple_conv / exp / inverse=False).

    z: (B, n_mel, T) NCW, context: (B, n_ctx, T), seq_lens: (B,) -- used as-is,
    no wrapper transposes/pads/concats.
    layer_params[i] = dict(w=(Cout,Cin,K) PyTorch Conv1d weight, b=(Cout,),
                           dilation, padding).
    w_last: (n_mel, C_last), b_last: (n_mel,)   (PyTorch k=1 conv weight/bias).
    Returns (z_out (B, n_mel, T), log_s (B, n_half, T)).
    """
    B, n_mel, T = z.shape
    n_half = n_mel // 2
    n_ctx = context.shape[1]

    Bb = batch_block if batch_block is not None else _largest_divisor_at_most(B, 8)
    assert B % Bb == 0, "batch must be divisible by the per-step batch block"

    layer_cfgs, conv_args, conv_specs, xcol_scratch = [], [], [], []
    for p in layer_params:
        w = p["w"]
        cout, cin, K = int(w.shape[0]), int(w.shape[1]), int(w.shape[2])
        d, pad = int(p["dilation"]), int(p["padding"])
        # (Cout, Cin, K) -> (Cout, K*Cin); columns are tap-major to match the
        # in-kernel im2col buffer (rows [k*Cin, (k+1)*Cin) hold tap k).
        w_flat = jnp.transpose(w, (0, 2, 1)).reshape(cout, K * cin).astype(mxu_dtype)
        b = jnp.asarray(p["b"], jnp.float32).reshape(cout, 1)
        conv_args += [w_flat, b]
        conv_specs += [pl.BlockSpec(w_flat.shape, lambda i, sl: (0, 0)),
                       pl.BlockSpec(b.shape, lambda i, sl: (0, 0))]
        xcol_scratch.append(pltpu.VMEM((K * cin, T), jnp.float32))
        layer_cfgs.append((K, d, pad, cin, cout))

    # k=1 last conv: split output rows into scale / b halves (trace-time, free)
    # so the kernel never slices a matmul result at the misaligned offset n_half.
    w_s = jnp.asarray(w_last[:n_half], mxu_dtype)
    w_b = jnp.asarray(w_last[n_half:], mxu_dtype)
    b_s = jnp.asarray(b_last[:n_half], jnp.float32).reshape(n_half, 1)
    b_b = jnp.asarray(b_last[n_half:], jnp.float32).reshape(n_half, 1)
    tail_args = [w_s, b_s, w_b, b_b]
    tail_specs = [pl.BlockSpec(a.shape, lambda i, sl: (0, 0)) for a in tail_args]

    c0 = n_half + n_ctx
    scratch = [pltpu.VMEM((c0, T), jnp.float32)] + xcol_scratch

    kern = functools.partial(
        _fused_affine_kernel, layer_cfgs=tuple(layer_cfgs), n_half=n_half,
        T=T, Bb=Bb, use_partial_padding=use_partial_padding, mxu_dtype=mxu_dtype)

    in_specs = ([pl.BlockSpec((Bb, n_mel, T), lambda i, sl: (i, 0, 0)),
                 pl.BlockSpec((Bb, n_ctx, T), lambda i, sl: (i, 0, 0))]
                + conv_specs + tail_specs)
    # Outputs stay NCW (T on lanes): lane-dense stores, no wrapper transposes.
    out_specs = (pl.BlockSpec((Bb, n_mel, T), lambda i, sl: (i, 0, 0)),
                 pl.BlockSpec((Bb, n_half, T), lambda i, sl: (i, 0, 0)))
    out_shape = (jax.ShapeDtypeStruct((B, n_mel, T), z.dtype),
                 jax.ShapeDtypeStruct((B, n_half, T), z.dtype))

    z_out, log_s = pl.pallas_call(
        kern,
        out_shape=out_shape,
        grid_spec=pltpu.PrefetchScalarGridSpec(
            num_scalar_prefetch=1,                 # seq_lens -> SMEM
            grid=(B // Bb,),
            in_specs=in_specs,
            out_specs=out_specs,
            scratch_shapes=scratch),
        # TODO(synk): on v7x verify the batch grid really shards across both
        # TensorCores; if not, switch to pltpu.CORE_PARALLEL / pl.core_map.
        compiler_params=pltpu.CompilerParams(
            dimension_semantics=("parallel",)),
    )(seq_lens.astype(jnp.int32), z, context, *conv_args, *tail_args)
    return z_out, log_s


def _reference_forward(z, context, seq_lens, layer_params, w_last, b_last,
                       *, use_partial_padding):
    """Plain-JAX mirror of the PyTorch module, for the correctness check."""
    B, n_mel, T = z.shape
    n_half = n_mel // 2
    hi = lax.Precision.HIGHEST
    z0, z1 = z[:, :n_half, :], z[:, n_half:, :]
    x = jnp.concatenate([z0, context], axis=1)                        # (B, C, T)
    mask = (jnp.arange(T)[None, :] < seq_lens[:, None]).astype(z.dtype)[:, None, :]
    for p in layer_params:
        w = p["w"]                                                    # (Cout,Cin,K)
        K, d, pad = w.shape[2], int(p["dilation"]), int(p["padding"])
        xm = jnp.pad(x * mask, ((0, 0), (0, 0), (pad, pad)))
        acc = sum(jnp.einsum("oc,bct->bot", w[:, :, k],
                             xm[:, :, k * d:k * d + T], precision=hi)
                  for k in range(K))
        if use_partial_padding:
            mp = jnp.pad(mask, ((0, 0), (0, 0), (pad, pad)))
            msum = sum(mp[:, :, k * d:k * d + T] for k in range(K))
            upd = (msum > 0).astype(jnp.float32)
            ratio = (K / jnp.where(msum > 0, msum, float(K))) * upd
            out = acc * ratio + p["b"][None, :, None] * upd
        else:
            out = acc + p["b"][None, :, None]
        x = jnp.maximum(out, 0.0)
    params = jnp.einsum("oc,bct->bot", w_last, x, precision=hi) + b_last[None, :, None]
    scale, bpar = params[:, :n_half, :], params[:, n_half:, :]
    z1_new = jnp.exp(scale) * z1 + bpar
    return jnp.concatenate([z0, z1_new], axis=1), scale


if __name__ == "__main__":
    # AffineTransformationLayer(n_mel_channels=24, n_context_dim=8, n_layers=2,
    #                           affine_model='simple_conv', with_dilation=True,
    #                           kernel_size=5, scaling_fn='exp')
    B, T = 2, 128                      # T=128 -> lane-dense NCW outputs
    n_mel, n_ctx = 24, 8
    n_layers, ksz, max_channels = 2, 5, 1024
    n_half = n_mel // 2

    key = jax.random.PRNGKey(0)
    keys = jax.random.split(key, 2 * n_layers + 4)

    # SimpleConvNet(n_half, n_ctx, n_mel, n_layers=2, kernel_size=5)
    layer_params = []
    in_c = n_half + n_ctx
    for i in range(n_layers):
        dil = 2 ** i                               # with_dilation=True
        pad = (ksz * dil - dil) // 2
        out_c = min(max_channels, in_c * 2)
        # ConvNorm is xavier-init; deterministic synthetic values are fine.
        # PyTorch Conv1d weight layout (Cout, Cin, K) is kept as-is.
        w_pt = jax.random.normal(keys[2 * i], (out_c, in_c, ksz),
                                 jnp.float32) / np.sqrt(in_c * ksz)
        b = 0.01 * jax.random.normal(keys[2 * i + 1], (out_c,), jnp.float32)
        layer_params.append(dict(w=w_pt, b=b, dilation=dil, padding=pad))
        in_c = out_c

    # last_layer: Conv1d(in_c, n_mel, k=1).  The module zero-inits it; small
    # non-zero values actually exercise the affine path (same math either way).
    w_last = 0.1 * jax.random.normal(keys[-3], (n_mel, in_c), jnp.float32)
    b_last = 0.01 * jax.random.normal(keys[-2], (n_mel,), jnp.float32)

    z = jax.random.normal(keys[-1], (B, n_mel, T), jnp.float32)
    context = jax.random.normal(keys[4], (B, n_ctx, T), jnp.float32)
    seq_lens = jnp.array([T, T - 37], dtype=jnp.int32)

    # use_partial_padding=False is the AffineTransformationLayer default; both
    # ConvNorm branches are exercised and checked.
    for use_pp in (False, True):
        z_out, log_s = affine_transformation_simple_conv(
            z, context, seq_lens, layer_params, w_last, b_last,
            use_partial_padding=use_pp)
        z_out = jax.block_until_ready(z_out)
        log_s = jax.block_until_ready(log_s)
        assert z_out.shape == (B, n_mel, T), z_out.shape
        assert log_s.shape == (B, n_half, T), log_s.shape

        z_ref, ls_ref = _reference_forward(z, context, seq_lens, layer_params,
                                           w_last, b_last,
                                           use_partial_padding=use_pp)
        np.testing.assert_allclose(np.asarray(z_out), np.asarray(z_ref),
                                   rtol=1e-4, atol=3e-5)
        np.testing.assert_allclose(np.asarray(log_s), np.asarray(ls_ref),
                                   rtol=1e-4, atol=3e-5)

    print("KERNEL_OK")
</pallas_src>

<mosaic_0001>
module attributes {stable_mosaic.version = 11 : i64} {
  func.func @_fused_affine_kernel(%arg0: i32, %arg1: memref<2xi32, #tpu.memory_space<smem>>, %arg2: memref<2x24x128xf32, #tpu.memory_space<vmem>>, %arg3: memref<2x8x128xf32, #tpu.memory_space<vmem>>, %arg4: memref<40x100xf32, #tpu.memory_space<vmem>>, %arg5: memref<40x1xf32, #tpu.memory_space<vmem>>, %arg6: memref<80x200xf32, #tpu.memory_space<vmem>>, %arg7: memref<80x1xf32, #tpu.memory_space<vmem>>, %arg8: memref<12x80xf32, #tpu.memory_space<vmem>>, %arg9: memref<12x1xf32, #tpu.memory_space<vmem>>, %arg10: memref<12x80xf32, #tpu.memory_space<vmem>>, %arg11: memref<12x1xf32, #tpu.memory_space<vmem>>, %arg12: memref<2x24x128xf32, #tpu.memory_space<vmem>>, %arg13: memref<2x12x128xf32, #tpu.memory_space<vmem>>, %arg14: memref<20x128xf32, #tpu.memory_space<vmem>>, %arg15: memref<100x128xf32, #tpu.memory_space<vmem>>, %arg16: memref<200x128xf32, #tpu.memory_space<vmem>>) attributes {dimension_semantics = [#tpu.dimension_semantics<parallel>], iteration_bounds = array<i64: 1>, scalar_prefetch = 1 : i64, scratch_operands = 3 : i64, tpu.core_type = #tpu.core_type<tc>, window_params = [{transform_indices = @transform_0, window_bounds = array<i64: 2, 24, 128>}, {transform_indices = @transform_1, window_bounds = array<i64: 2, 8, 128>}, {pipeline_mode = #tpu.pipeline_mode<synchronous>, transform_indices = @transform_2, window_bounds = array<i64: 40, 100>}, {pipeline_mode = #tpu.pipeline_mode<synchronous>, transform_indices = @transform_3, window_bounds = array<i64: 40, 1>}, {pipeline_mode = #tpu.pipeline_mode<synchronous>, transform_indices = @transform_4, window_bounds = array<i64: 80, 200>}, {pipeline_mode = #tpu.pipeline_mode<synchronous>, transform_indices = @transform_5, window_bounds = array<i64: 80, 1>}, {pipeline_mode = #tpu.pipeline_mode<synchronous>, transform_indices = @transform_6, window_bounds = array<i64: 12, 80>}, {pipeline_mode = #tpu.pipeline_mode<synchronous>, transform_indices = @transform_7, window_bounds = array<i64: 12, 1>}, {pipeline_mode = #tpu.pipeline_mode<synchronous>, transform_indices = @transform_8, window_bounds = array<i64: 12, 80>}, {pipeline_mode = #tpu.pipeline_mode<synchronous>, transform_indices = @transform_9, window_bounds = array<i64: 12, 1>}, {transform_indices = @transform_10, window_bounds = array<i64: 2, 24, 128>}, {transform_indices = @transform_11, window_bounds = array<i64: 2, 12, 128>}]} {
    %0 = tpu.iota {dimensions = array<i32: 1>} : vector<1x128xi32>
    %1 = tpu.iota {dimensions = array<i32: 0>} : vector<128x128xi32>
    %2 = tpu.iota {dimensions = array<i32: 1>} : vector<128x128xi32>
    %3 = arith.subi %1, %2 : vector<128x128xi32>
    %c-4_i32 = arith.constant -4 : i32
    %4 = vector.broadcast %c-4_i32 : i32 to vector<128x128xi32>
    %5 = arith.cmpi eq, %3, %4 : vector<128x128xi32>
    %6 = arith.extui %5 : vector<128x128xi1> to vector<128x128xi32>
    %7 = arith.sitofp %6 : vector<128x128xi32> to vector<128x128xf32>
    %8 = arith.subi %1, %2 : vector<128x128xi32>
    %c-2_i32 = arith.constant -2 : i32
    %9 = vector.broadcast %c-2_i32 : i32 to vector<128x128xi32>
    %10 = arith.cmpi eq, %8, %9 : vector<128x128xi32>
    %11 = arith.extui %10 : vector<128x128xi1> to vector<128x128xi32>
    %12 = arith.sitofp %11 : vector<128x128xi32> to vector<128x128xf32>
    %13 = arith.subi %1, %2 : vector<128x128xi32>
    %c-1_i32 = arith.constant -1 : i32
    %14 = vector.broadcast %c-1_i32 : i32 to vector<128x128xi32>
    %15 = arith.cmpi eq, %13, %14 : vector<128x128xi32>
    %16 = arith.extui %15 : vector<128x128xi1> to vector<128x128xi32>
    %17 = arith.sitofp %16 : vector<128x128xi32> to vector<128x128xf32>
    %18 = arith.subi %1, %2 : vector<128x128xi32>
    %c1_i32 = arith.constant 1 : i32
    %19 = vector.broadcast %c1_i32 : i32 to vector<128x128xi32>
    %20 = arith.cmpi eq, %18, %19 : vector<128x128xi32>
    %21 = arith.extui %20 : vector<128x128xi1> to vector<128x128xi32>
    %22 = arith.sitofp %21 : vector<128x128xi32> to vector<128x128xf32>
    %23 = arith.subi %1, %2 : vector<128x128xi32>
    %c2_i32 = arith.constant 2 : i32
    %24 = vector.broadcast %c2_i32 : i32 to vector<128x128xi32>
    %25 = arith.cmpi eq, %23, %24 : vector<128x128xi32>
    %26 = arith.extui %25 : vector<128x128xi1> to vector<128x128xi32>
    %27 = arith.sitofp %26 : vector<128x128xi32> to vector<128x128xf32>
    %28 = arith.subi %1, %2 : vector<128x128xi32>
    %c4_i32 = arith.constant 4 : i32
    %29 = vector.broadcast %c4_i32 : i32 to vector<128x128xi32>
    %30 = arith.cmpi eq, %28, %29 : vector<128x128xi32>
    %31 = arith.extui %30 : vector<128x128xi1> to vector<128x128xi32>
    %32 = arith.sitofp %31 : vector<128x128xi32> to vector<128x128xf32>
    %c2_i32_0 = arith.constant 2 : i32
    %33 = arith.muli %arg0, %c2_i32_0 : i32
    %c0_i32 = arith.constant 0 : i32
    %34 = arith.addi %33, %c0_i32 : i32
    %35 = arith.index_cast %34 : i32 to index
    %36 = memref.load %arg1[%35] : memref<2xi32, #tpu.memory_space<smem>>
    %37 = vector.broadcast %36 : i32 to vector<1x128xi32>
    %38 = arith.cmpi slt, %0, %37 : vector<1x128xi32>
    %39 = arith.extui %38 : vector<1x128xi1> to vector<1x128xi32>
    %40 = arith.sitofp %39 : vector<1x128xi32> to vector<1x128xf32>
    %c0 = arith.constant 0 : index
    %c0_1 = arith.constant 0 : index
    %c0_2 = arith.constant 0 : index
    %41 = vector.load %arg2[%c0, %c0_1, %c0_2] : memref<2x24x128xf32, #tpu.memory_space<vmem>>, vector<1x12x128xf32>
    %42 = vector.shape_cast %41 : vector<1x12x128xf32> to vector<12x128xf32>
    %c0_3 = arith.constant 0 : index
    %c0_4 = arith.constant 0 : index
    %43 = vector.load %arg14[%c0_3, %c0_4] : memref<20x128xf32, #tpu.memory_space<vmem>>, vector<12x128xf32>
    tpu.vector_store %arg14[%c0_3, %c0_4], %42 {strides = array<i32>} : memref<20x128xf32, #tpu.memory_space<vmem>>, vector<12x128xf32>,
    %c0_5 = arith.constant 0 : index
    %c0_6 = arith.constant 0 : index
    %c0_7 = arith.constant 0 : index
    %44 = vector.load %arg3[%c0_5, %c0_6, %c0_7] : memref<2x8x128xf32, #tpu.memory_space<vmem>>, vector<1x8x128xf32>
    %45 = vector.shape_cast %44 : vector<1x8x128xf32> to vector<8x128xf32>
    %c12 = arith.constant 12 : index
    %c0_8 = arith.constant 0 : index
    %46 = vector.load %arg14[%c12, %c0_8] : memref<20x128xf32, #tpu.memory_space<vmem>>, vector<8x128xf32>
    tpu.vector_store %arg14[%c12, %c0_8], %45 {strides = array<i32>} : memref<20x128xf32, #tpu.memory_space<vmem>>, vector<8x128xf32>,
    %c0_9 = arith.constant 0 : index
    %c0_10 = arith.constant 0 : index
    %47 = vector.load %arg14[%c0_9, %c0_10] : memref<20x128xf32, #tpu.memory_space<vmem>>, vector<20x128xf32>
    %c0_11 = arith.constant 0 : index
    %c0_12 = arith.constant 0 : index
    %48 = vector.load %arg4[%c0_11, %c0_12] : memref<40x100xf32, #tpu.memory_space<vmem>>, vector<40x100xf32>
    %c0_13 = arith.constant 0 : index
    %c0_14 = arith.constant 0 : index
    %49 = vector.load %arg5[%c0_13, %c0_14] : memref<40x1xf32, #tpu.memory_space<vmem>>, vector<40x1xf32>
    %50 = vector.broadcast %40 : vector<1x128xf32> to vector<20x128xf32>
    %51 = arith.mulf %47, %50 : vector<20x128xf32>
    %cst = arith.constant dense<0.000000e+00> : vector<20x128xf32>
    %52 = tpu.matmul %51, %12, %cst {dimension_numbers = #tpu.dot_dimension_numbers<[1], [0], [0], [1], [0, 0, 1, 1], [], []>} : vector<20x128xf32>, vector<128x128xf32>, vector<20x128xf32> -> vector<20x128xf32>
    %c0_15 = arith.constant 0 : index
    %c0_16 = arith.constant 0 : index
    %53 = vector.load %arg15[%c0_15, %c0_16] : memref<100x128xf32, #tpu.memory_space<vmem>>, vector<20x128xf32>
    tpu.vector_store %arg15[%c0_15, %c0_16], %52 {strides = array<i32>} : memref<100x128xf32, #tpu.memory_space<vmem>>, vector<20x128xf32>,
    %cst_17 = arith.constant dense<0.000000e+00> : vector<20x128xf32>
    %54 = tpu.matmul %51, %17, %cst_17 {dimension_numbers = #tpu.dot_dimension_numbers<[1], [0], [0], [1], [0, 0, 1, 1], [], []>} : vector<20x128xf32>, vector<128x128xf32>, vector<20x128xf32> -> vector<20x128xf32>
    %c20 = arith.constant 20 : index
    %c0_18 = arith.constant 0 : index
    %55 = vector.load %arg15[%c20, %c0_18] : memref<100x128xf32, #tpu.memory_space<vmem>>, vector<20x128xf32>
    tpu.vector_store %arg15[%c20, %c0_18], %54 {strides = array<i32>} : memref<100x128xf32, #tpu.memory_space<vmem>>, vector<20x128xf32>,
    %c40 = arith.constant 40 : index
    %c0_19 = arith.constant 0 : index
    %56 = vector.load %arg15[%c40, %c0_19] : memref<100x128xf32, #tpu.memory_space<vmem>>, vector<20x128xf32>
    tpu.vector_store %arg15[%c40, %c0_19], %51 {strides = array<i32>} : memref<100x128xf32, #tpu.memory_space<vmem>>, vector<20x128xf32>,
    %cst_20 = arith.constant dense<0.000000e+00> : vector<20x128xf32>
    %57 = tpu.matmul %51, %22, %cst_20 {dimension_numbers = #tpu.dot_dimension_numbers<[1], [0], [0], [1], [0, 0, 1, 1], [], []>} : vector<20x128xf32>, vector<128x128xf32>, vector<20x128xf32> -> vector<20x128xf32>
    %c60 = arith.constant 60 : index
    %c0_21 = arith.constant 0 : index
    %58 = vector.load %arg15[%c60, %c0_21] : memref<100x128xf32, #tpu.memory_space<vmem>>, vector<20x128xf32>
    tpu.vector_store %arg15[%c60, %c0_21], %57 {strides = array<i32>} : memref<100x128xf32, #tpu.memory_space<vmem>>, vector<20x128xf32>,
    %cst_22 = arith.constant dense<0.000000e+00> : vector<20x128xf32>
    %59 = tpu.matmul %51, %27, %cst_22 {dimension_numbers = #tpu.dot_dimension_numbers<[1], [0], [0], [1], [0, 0, 1, 1], [], []>} : vector<20x128xf32>, vector<128x128xf32>, vector<20x128xf32> -> vector<20x128xf32>
    %c80 = arith.constant 80 : index
    %c0_23 = arith.constant 0 : index
    %60 = vector.load %arg15[%c80, %c0_23] : memref<100x128xf32, #tpu.memory_space<vmem>>, vector<20x128xf32>
    tpu.vector_store %arg15[%c80, %c0_23], %59 {strides = array<i32>} : memref<100x128xf32, #tpu.memory_space<vmem>>, vector<20x128xf32>,
    %c0_24 = arith.constant 0 : index
    %c0_25 = arith.constant 0 : index
    %61 = vector.load %arg15[%c0_24, %c0_25] : memref<100x128xf32, #tpu.memory_space<vmem>>, vector<100x128xf32>
    %cst_26 = arith.constant dense<0.000000e+00> : vector<40x128xf32>
    %62 = tpu.matmul %48, %61, %cst_26 {dimension_numbers = #tpu.dot_dimension_numbers<[1], [0], [0], [1], [0, 0, 1, 1], [], []>} : vector<40x100xf32>, vector<100x128xf32>, vector<40x128xf32> -> vector<40x128xf32>
    %63 = vector.broadcast %49 : vector<40x1xf32> to vector<40x128xf32>
    %64 = arith.addf %62, %63 : vector<40x128xf32>
    %cst_27 = arith.constant 0.000000e+00 : f32
    %65 = vector.broadcast %cst_27 : f32 to vector<40x128xf32>
    %66 = arith.maximumf %64, %65 : vector<40x128xf32>
    %c0_28 = arith.constant 0 : index
    %c0_29 = arith.constant 0 : index
    %67 = vector.load %arg6[%c0_28, %c0_29] : memref<80x200xf32, #tpu.memory_space<vmem>>, vector<80x200xf32>
    %c0_30 = arith.constant 0 : index
    %c0_31 = arith.constant 0 : index
    %68 = vector.load %arg7[%c0_30, %c0_31] : memref<80x1xf32, #tpu.memory_space<vmem>>, vector<80x1xf32>
    %69 = vector.broadcast %40 : vector<1x128xf32> to vector<40x128xf32>
    %70 = arith.mulf %66, %69 : vector<40x128xf32>
    %cst_32 = arith.constant dense<0.000000e+00> : vector<40x128xf32>
    %71 = tpu.matmul %70, %7, %cst_32 {dimension_numbers = #tpu.dot_dimension_numbers<[1], [0], [0], [1], [0, 0, 1, 1], [], []>} : vector<40x128xf32>, vector<128x128xf32>, vector<40x128xf32> -> vector<40x128xf32>
    %c0_33 = arith.constant 0 : index
    %c0_34 = arith.constant 0 : index
    %72 = vector.load %arg16[%c0_33, %c0_34] : memref<200x128xf32, #tpu.memory_space<vmem>>, vector<40x128xf32>
    tpu.vector_store %arg16[%c0_33, %c0_34], %71 {strides = array<i32>} : memref<200x128xf32, #tpu.memory_space<vmem>>, vector<40x128xf32>,
    %cst_35 = arith.constant dense<0.000000e+00> : vector<40x128xf32>
    %73 = tpu.matmul %70, %12, %cst_35 {dimension_numbers = #tpu.dot_dimension_numbers<[1], [0], [0], [1], [0, 0, 1, 1], [], []>} : vector<40x128xf32>, vector<128x128xf32>, vector<40x128xf32> -> vector<40x128xf32>
    %c40_36 = arith.constant 40 : index
    %c0_37 = arith.constant 0 : index
    %74 = vector.load %arg16[%c40_36, %c0_37] : memref<200x128xf32, #tpu.memory_space<vmem>>, vector<40x128xf32>
    tpu.vector_store %arg16[%c40_36, %c0_37], %73 {strides = array<i32>} : memref<200x128xf32, #tpu.memory_space<vmem>>, vector<40x128xf32>,
    %c80_38 = arith.constant 80 : index
    %c0_39 = arith.constant 0 : index
    %75 = vector.load %arg16[%c80_38, %c0_39] : memref<200x128xf32, #tpu.memory_space<vmem>>, vector<40x128xf32>
    tpu.vector_store %arg16[%c80_38, %c0_39], %70 {strides = array<i32>} : memref<200x128xf32, #tpu.memory_space<vmem>>, vector<40x128xf32>,
    %cst_40 = arith.constant dense<0.000000e+00> : vector<40x128xf32>
    %76 = tpu.matmul %70, %27, %cst_40 {dimension_numbers = #tpu.dot_dimension_numbers<[1], [0], [0], [1], [0, 0, 1, 1], [], []>} : vector<40x128xf32>, vector<128x128xf32>, vector<40x128xf32> -> vector<40x128xf32>
    %c120 = arith.constant 120 : index
    %c0_41 = arith.constant 0 : index
    %77 = vector.load %arg16[%c120, %c0_41] : memref<200x128xf32, #tpu.memory_space<vmem>>, vector<40x128xf32>
    tpu.vector_store %arg16[%c120, %c0_41], %76 {strides = array<i32>} : memref<200x128xf32, #tpu.memory_space<vmem>>, vector<40x128xf32>,
    %cst_42 = arith.constant dense<0.000000e+00> : vector<40x128xf32>
    %78 = tpu.matmul %70, %32, %cst_42 {dimension_numbers = #tpu.dot_dimension_numbers<[1], [0], [0], [1], [0, 0, 1, 1], [], []>} : vector<40x128xf32>, vector<128x128xf32>, vector<40x128xf32> -> vector<40x128xf32>
    %c160 = arith.constant 160 : index
    %c0_43 = arith.constant 0 : index
    %79 = vector.load %arg16[%c160, %c0_43] : memref<200x128xf32, #tpu.memory_space<vmem>>, vector<40x128xf32>
    tpu.vector_store %arg16[%c160, %c0_43], %78 {strides = array<i32>} : memref<200x128xf32, #tpu.memory_space<vmem>>, vector<40x128xf32>,
    %c0_44 = arith.constant 0 : index
    %c0_45 = arith.constant 0 : index
    %80 = vector.load %arg16[%c0_44, %c0_45] : memref<200x128xf32, #tpu.memory_space<vmem>>, vector<200x128xf32>
    %cst_46 = arith.constant dense<0.000000e+00> : vector<80x128xf32>
    %81 = tpu.matmul %67, %80, %cst_46 {dimension_numbers = #tpu.dot_dimension_numbers<[1], [0], [0], [1], [0, 0, 1, 1], [], []>} : vector<80x200xf32>, vector<200x128xf32>, vector<80x128xf32> -> vector<80x128xf32>
    %82 = vector.broadcast %68 : vector<80x1xf32> to vector<80x128xf32>
    %83 = arith.addf %81, %82 : vector<80x128xf32>
    %cst_47 = arith.constant 0.000000e+00 : f32
    %84 = vector.broadcast %cst_47 : f32 to vector<80x128xf32>
    %85 = arith.maximumf %83, %84 : vector<80x128xf32>
    %c0_48 = arith.constant 0 : index
    %c0_49 = arith.constant 0 : index
    %86 = vector.load %arg8[%c0_48, %c0_49] : memref<12x80xf32, #tpu.memory_space<vmem>>, vector<12x80xf32>
    %cst_50 = arith.constant dense<0.000000e+00> : vector<12x128xf32>
    %87 = tpu.matmul %86, %85, %cst_50 {dimension_numbers = #tpu.dot_dimension_numbers<[1], [0], [0], [1], [0, 0, 1, 1], [], []>} : vector<12x80xf32>, vector<80x128xf32>, vector<12x128xf32> -> vector<12x128xf32>
    %c0_51 = arith.constant 0 : index
    %c0_52 = arith.constant 0 : index
    %88 = vector.load %arg9[%c0_51, %c0_52] : memref<12x1xf32, #tpu.memory_space<vmem>>, vector<12x1xf32>
    %89 = vector.broadcast %88 : vector<12x1xf32> to vector<12x128xf32>
    %90 = arith.addf %87, %89 : vector<12x128xf32>
    %c0_53 = arith.constant 0 : index
    %c0_54 = arith.constant 0 : index
    %91 = vector.load %arg10[%c0_53, %c0_54] : memref<12x80xf32, #tpu.memory_space<vmem>>, vector<12x80xf32>
    %cst_55 = arith.constant dense<0.000000e+00> : vector<12x128xf32>
    %92 = tpu.matmul %91, %85, %cst_55 {dimension_numbers = #tpu.dot_dimension_numbers<[1], [0], [0], [1], [0, 0, 1, 1], [], []>} : vector<12x80xf32>, vector<80x128xf32>, vector<12x128xf32> -> vector<12x128xf32>
    %c0_56 = arith.constant 0 : index
    %c0_57 = arith.constant 0 : index
    %93 = vector.load %arg11[%c0_56, %c0_57] : memref<12x1xf32, #tpu.memory_space<vmem>>, vector<12x1xf32>
    %94 = vector.broadcast %93 : vector<12x1xf32> to vector<12x128xf32>
    %95 = arith.addf %92, %94 : vector<12x128xf32>
    %c0_58 = arith.constant 0 : index
    %c12_59 = arith.constant 12 : index
    %c0_60 = arith.constant 0 : index
    %96 = vector.load %arg2[%c0_58, %c12_59, %c0_60] : memref<2x24x128xf32, #tpu.memory_space<vmem>>, vector<1x12x128xf32>
    %97 = vector.shape_cast %96 : vector<1x12x128xf32> to vector<12x128xf32>
    %c0_61 = arith.constant 0 : index
    %c0_62 = arith.constant 0 : index
    %c0_63 = arith.constant 0 : index
    %98 = vector.load %arg2[%c0_61, %c0_62, %c0_63] : memref<2x24x128xf32, #tpu.memory_space<vmem>>, vector<1x12x128xf32>
    %99 = vector.shape_cast %98 : vector<1x12x128xf32> to vector<12x128xf32>
    %c0_64 = arith.constant 0 : index
    %c0_65 = arith.constant 0 : index
    %c0_66 = arith.constant 0 : index
    %100 = vector.load %arg12[%c0_64, %c0_65, %c0_66] : memref<2x24x128xf32, #tpu.memory_space<vmem>>, vector<1x12x128xf32>
    %101 = vector.shape_cast %100 : vector<1x12x128xf32> to vector<12x128xf32>
    %102 = vector.shape_cast %99 : vector<12x128xf32> to vector<1x12x128xf32>
    tpu.vector_store %arg12[%c0_64, %c0_65, %c0_66], %102 {strides = array<i32>} : memref<2x24x128xf32, #tpu.memory_space<vmem>>, vector<1x12x128xf32>,
    %103 = math.exp %90 : vector<12x128xf32>
    %104 = arith.mulf %103, %97 : vector<12x128xf32>
    %105 = arith.addf %104, %95 : vector<12x128xf32>
    %c0_67 = arith.constant 0 : index
    %c12_68 = arith.constant 12 : index
    %c0_69 = arith.constant 0 : index
    %106 = vector.load %arg12[%c0_67, %c12_68, %c0_69] : memref<2x24x128xf32, #tpu.memory_space<vmem>>, vector<1x12x128xf32>
    %107 = vector.shape_cast %106 : vector<1x12x128xf32> to vector<12x128xf32>
    %108 = vector.shape_cast %105 : vector<12x128xf32> to vector<1x12x128xf32>
    tpu.vector_store %arg12[%c0_67, %c12_68, %c0_69], %108 {strides = array<i32>} : memref<2x24x128xf32, #tpu.memory_space<vmem>>, vector<1x12x128xf32>,
    %c0_70 = arith.constant 0 : index
    %c0_71 = arith.constant 0 : index
    %c0_72 = arith.constant 0 : index
    %109 = vector.load %arg13[%c0_70, %c0_71, %c0_72] : memref<2x12x128xf32, #tpu.memory_space<vmem>>, vector<1x12x128xf32>
    %110 = vector.shape_cast %109 : vector<1x12x128xf32> to vector<12x128xf32>
    %111 = vector.shape_cast %90 : vector<12x128xf32> to vector<1x12x128xf32>
    tpu.vector_store %arg13[%c0_70, %c0_71, %c0_72], %111 {strides = array<i32>} : memref<2x12x128xf32, #tpu.memory_space<vmem>>, vector<1x12x128xf32>,
    %c1_i32_73 = arith.constant 1 : i32
    %112 = arith.addi %33, %c1_i32_73 : i32
    %113 = arith.index_cast %112 : i32 to index
    %114 = memref.load %arg1[%113] : memref<2xi32, #tpu.memory_space<smem>>
    %115 = vector.broadcast %114 : i32 to vector<1x128xi32>
    %116 = arith.cmpi slt, %0, %115 : vector<1x128xi32>
    %117 = arith.extui %116 : vector<1x128xi1> to vector<1x128xi32>
    %118 = arith.sitofp %117 : vector<1x128xi32> to vector<1x128xf32>
    %c1 = arith.constant 1 : index
    %c0_74 = arith.constant 0 : index
    %c0_75 = arith.constant 0 : index
    %119 = vector.load %arg2[%c1, %c0_74, %c0_75] : memref<2x24x128xf32, #tpu.memory_space<vmem>>, vector<1x12x128xf32>
    %120 = vector.shape_cast %119 : vector<1x12x128xf32> to vector<12x128xf32>
    %c0_76 = arith.constant 0 : index
    %c0_77 = arith.constant 0 : index
    %121 = vector.load %arg14[%c0_76, %c0_77] : memref<20x128xf32, #tpu.memory_space<vmem>>, vector<12x128xf32>
    tpu.vector_store %arg14[%c0_76, %c0_77], %120 {strides = array<i32>} : memref<20x128xf32, #tpu.memory_space<vmem>>, vector<12x128xf32>,
    %c1_78 = arith.constant 1 : index
    %c0_79 = arith.constant 0 : index
    %c0_80 = arith.constant 0 : index
    %122 = vector.load %arg3[%c1_78, %c0_79, %c0_80] : memref<2x8x128xf32, #tpu.memory_space<vmem>>, vector<1x8x128xf32>
    %123 = vector.shape_cast %122 : vector<1x8x128xf32> to vector<8x128xf32>
    %c12_81 = arith.constant 12 : index
    %c0_82 = arith.constant 0 : index
    %124 = vector.load %arg14[%c12_81, %c0_82] : memref<20x128xf32, #tpu.memory_space<vmem>>, vector<8x128xf32>
    tpu.vector_store %arg14[%c12_81, %c0_82], %123 {strides = array<i32>} : memref<20x128xf32, #tpu.memory_space<vmem>>, vector<8x128xf32>,
    %c0_83 = arith.constant 0 : index
    %c0_84 = arith.constant 0 : index
    %125 = vector.load %arg14[%c0_83, %c0_84] : memref<20x128xf32, #tpu.memory_space<vmem>>, vector<20x128xf32>
    %c0_85 = arith.constant 0 : index
    %c0_86 = arith.constant 0 : index
    %126 = vector.load %arg4[%c0_85, %c0_86] : memref<40x100xf32, #tpu.memory_space<vmem>>, vector<40x100xf32>
    %c0_87 = arith.constant 0 : index
    %c0_88 = arith.constant 0 : index
    %127 = vector.load %arg5[%c0_87, %c0_88] : memref<40x1xf32, #tpu.memory_space<vmem>>, vector<40x1xf32>
    %128 = vector.broadcast %118 : vector<1x128xf32> to vector<20x128xf32>
    %129 = arith.mulf %125, %128 : vector<20x128xf32>
    %cst_89 = arith.constant dense<0.000000e+00> : vector<20x128xf32>
    %130 = tpu.matmul %129, %12, %cst_89 {dimension_numbers = #tpu.dot_dimension_numbers<[1], [0], [0], [1], [0, 0, 1, 1], [], []>} : vector<20x128xf32>, vector<128x128xf32>, vector<20x128xf32> -> vector<20x128xf32>
    %c0_90 = arith.constant 0 : index
    %c0_91 = arith.constant 0 : index
    %131 = vector.load %arg15[%c0_90, %c0_91] : memref<100x128xf32, #tpu.memory_space<vmem>>, vector<20x128xf32>
    tpu.vector_store %arg15[%c0_90, %c0_91], %130 {strides = array<i32>} : memref<100x128xf32, #tpu.memory_space<vmem>>, vector<20x128xf32>,
    %cst_92 = arith.constant dense<0.000000e+00> : vector<20x128xf32>
    %132 = tpu.matmul %129, %17, %cst_92 {dimension_numbers = #tpu.dot_dimension_numbers<[1], [0], [0], [1], [0, 0, 1, 1], [], []>} : vector<20x128xf32>, vector<128x128xf32>, vector<20x128xf32> -> vector<20x128xf32>
    %c20_93 = arith.constant 20 : index
    %c0_94 = arith.constant 0 : index
    %133 = vector.load %arg15[%c20_93, %c0_94] : memref<100x128xf32, #tpu.memory_space<vmem>>, vector<20x128xf32>
    tpu.vector_store %arg15[%c20_93, %c0_94], %132 {strides = array<i32>} : memref<100x128xf32, #tpu.memory_space<vmem>>, vector<20x128xf32>,
    %c40_95 = arith.constant 40 : index
    %c0_96 = arith.constant 0 : index
    %134 = vector.load %arg15[%c40_95, %c0_96] : memref<100x128xf32, #tpu.memory_space<vmem>>, vector<20x128xf32>
    tpu.vector_store %arg15[%c40_95, %c0_96], %129 {strides = array<i32>} : memref<100x128xf32, #tpu.memory_space<vmem>>, vector<20x128xf32>,
    %cst_97 = arith.constant dense<0.000000e+00> : vector<20x128xf32>
    %135 = tpu.matmul %129, %22, %cst_97 {dimension_numbers = #tpu.dot_dimension_numbers<[1], [0], [0], [1], [0, 0, 1, 1], [], []>} : vector<20x128xf32>, vector<128x128xf32>, vector<20x128xf32> -> vector<20x128xf32>
    %c60_98 = arith.constant 60 : index
    %c0_99 = arith.constant 0 : index
    %136 = vector.load %arg15[%c60_98, %c0_99] : memref<100x128xf32, #tpu.memory_space<vmem>>, vector<20x128xf32>
    tpu.vector_store %arg15[%c60_98, %c0_99], %135 {strides = array<i32>} : memref<100x128xf32, #tpu.memory_space<vmem>>, vector<20x128xf32>,
    %cst_100 = arith.constant dense<0.000000e+00> : vector<20x128xf32>
    %137 = tpu.matmul %129, %27, %cst_100 {dimension_numbers = #tpu.dot_dimension_numbers<[1], [0], [0], [1], [0, 0, 1, 1], [], []>} : vector<20x128xf32>, vector<128x128xf32>, vector<20x128xf32> -> vector<20x128xf32>
    %c80_101 = arith.constant 80 : index
    %c0_102 = arith.constant 0 : index
    %138 = vector.load %arg15[%c80_101, %c0_102] : memref<100x128xf32, #tpu.memory_space<vmem>>, vector<20x128xf32>
    tpu.vector_store %arg15[%c80_101, %c0_102], %137 {strides = array<i32>} : memref<100x128xf32, #tpu.memory_space<vmem>>, vector<20x128xf32>,
    %c0_103 = arith.constant 0 : index
    %c0_104 = arith.constant 0 : index
    %139 = vector.load %arg15[%c0_103, %c0_104] : memref<100x128xf32, #tpu.memory_space<vmem>>, vector<100x128xf32>
    %cst_105 = arith.constant dense<0.000000e+00> : vector<40x128xf32>
    %140 = tpu.matmul %126, %139, %cst_105 {dimension_numbers = #tpu.dot_dimension_numbers<[1], [0], [0], [1], [0, 0, 1, 1], [], []>} : vector<40x100xf32>, vector<100x128xf32>, vector<40x128xf32> -> vector<40x128xf32>
    %141 = vector.broadcast %127 : vector<40x1xf32> to vector<40x128xf32>
    %142 = arith.addf %140, %141 : vector<40x128xf32>
    %cst_106 = arith.constant 0.000000e+00 : f32
    %143 = vector.broadcast %cst_106 : f32 to vector<40x128xf32>
    %144 = arith.maximumf %142, %143 : vector<40x128xf32>
    %c0_107 = arith.constant 0 : index
    %c0_108 = arith.constant 0 : index
    %145 = vector.load %arg6[%c0_107, %c0_108] : memref<80x200xf32, #tpu.memory_space<vmem>>, vector<80x200xf32>
    %c0_109 = arith.constant 0 : index
    %c0_110 = arith.constant 0 : index
    %146 = vector.load %arg7[%c0_109, %c0_110] : memref<80x1xf32, #tpu.memory_space<vmem>>, vector<80x1xf32>
    %147 = vector.broadcast %118 : vector<1x128xf32> to vector<40x128xf32>
    %148 = arith.mulf %144, %147 : vector<40x128xf32>
    %cst_111 = arith.constant dense<0.000000e+00> : vector<40x128xf32>
    %149 = tpu.matmul %148, %7, %cst_111 {dimension_numbers = #tpu.dot_dimension_numbers<[1], [0], [0], [1], [0, 0, 1, 1], [], []>} : vector<40x128xf32>, vector<128x128xf32>, vector<40x128xf32> -> vector<40x128xf32>
    %c0_112 = arith.constant 0 : index
    %c0_113 = arith.constant 0 : index
    %150 = vector.load %arg16[%c0_112, %c0_113] : memref<200x128xf32, #tpu.memory_space<vmem>>, vector<40x128xf32>
    tpu.vector_store %arg16[%c0_112, %c0_113], %149 {strides = array<i32>} : memref<200x128xf32, #tpu.memory_space<vmem>>, vector<40x128xf32>,
    %cst_114 = arith.constant dense<0.000000e+00> : vector<40x128xf32>
    %151 = tpu.matmul %148, %12, %cst_114 {dimension_numbers = #tpu.dot_dimension_numbers<[1], [0], [0], [1], [0, 0, 1, 1], [], []>} : vector<40x128xf32>, vector<128x128xf32>, vector<40x128xf32> -> vector<40x128xf32>
    %c40_115 = arith.constant 40 : index
    %c0_116 = arith.constant 0 : index
    %152 = vector.load %arg16[%c40_115, %c0_116] : memref<200x128xf32, #tpu.memory_space<vmem>>, vector<40x128xf32>
    tpu.vector_store %arg16[%c40_115, %c0_116], %151 {strides = array<i32>} : memref<200x128xf32, #tpu.memory_space<vmem>>, vector<40x128xf32>,
    %c80_117 = arith.constant 80 : index
    %c0_118 = arith.constant 0 : index
    %153 = vector.load %arg16[%c80_117, %c0_118] : memref<200x128xf32, #tpu.memory_space<vmem>>, vector<40x128xf32>
    tpu.vector_store %arg16[%c80_117, %c0_118], %148 {strides = array<i32>} : memref<200x128xf32, #tpu.memory_space<vmem>>, vector<40x128xf32>,
    %cst_119 = arith.constant dense<0.000000e+00> : vector<40x128xf32>
    %154 = tpu.matmul %148, %27, %cst_119 {dimension_numbers = #tpu.dot_dimension_numbers<[1], [0], [0], [1], [0, 0, 1, 1], [], []>} : vector<40x128xf32>, vector<128x128xf32>, vector<40x128xf32> -> vector<40x128xf32>
    %c120_120 = arith.constant 120 : index
    %c0_121 = arith.constant 0 : index
    %155 = vector.load %arg16[%c120_120, %c0_121] : memref<200x128xf32, #tpu.memory_space<vmem>>, vector<40x128xf32>
    tpu.vector_store %arg16[%c120_120, %c0_121], %154 {strides = array<i32>} : memref<200x128xf32, #tpu.memory_space<vmem>>, vector<40x128xf32>,
    %cst_122 = arith.constant dense<0.000000e+00> : vector<40x128xf32>
    %156 = tpu.matmul %148, %32, %cst_122 {dimension_numbers = #tpu.dot_dimension_numbers<[1], [0], [0], [1], [0, 0, 1, 1], [], []>} : vector<40x128xf32>, vector<128x128xf32>, vector<40x128xf32> -> vector<40x128xf32>
    %c160_123 = arith.constant 160 : index
    %c0_124 = arith.constant 0 : index
    %157 = vector.load %arg16[%c160_123, %c0_124] : memref<200x128xf32, #tpu.memory_space<vmem>>, vector<40x128xf32>
    tpu.vector_store %arg16[%c160_123, %c0_124], %156 {strides = array<i32>} : memref<200x128xf32, #tpu.memory_space<vmem>>, vector<40x128xf32>,
    %c0_125 = arith.constant 0 : index
    %c0_126 = arith.constant 0 : index
    %158 = vector.load %arg16[%c0_125, %c0_126] : memref<200x128xf32, #tpu.memory_space<vmem>>, vector<200x128xf32>
    %cst_127 = arith.constant dense<0.000000e+00> : vector<80x128xf32>
    %159 = tpu.matmul %145, %158, %cst_127 {dimension_numbers = #tpu.dot_dimension_numbers<[1], [0], [0], [1], [0, 0, 1, 1], [], []>} : vector<80x200xf32>, vector<200x128xf32>, vector<80x128xf32> -> vector<80x128xf32>
    %160 = vector.broadcast %146 : vector<80x1xf32> to vector<80x128xf32>
    %161 = arith.addf %159, %160 : vector<80x128xf32>
    %cst_128 = arith.constant 0.000000e+00 : f32
    %162 = vector.broadcast %cst_128 : f32 to vector<80x128xf32>
    %163 = arith.maximumf %161, %162 : vector<80x128xf32>
    %c0_129 = arith.constant 0 : index
    %c0_130 = arith.constant 0 : index
    %164 = vector.load %arg8[%c0_129, %c0_130] : memref<12x80xf32, #tpu.memory_space<vmem>>, vector<12x80xf32>
    %cst_131 = arith.constant dense<0.000000e+00> : vector<12x128xf32>
    %165 = tpu.matmul %164, %163, %cst_131 {dimension_numbers = #tpu.dot_dimension_numbers<[1], [0], [0], [1], [0, 0, 1, 1], [], []>} : vector<12x80xf32>, vector<80x128xf32>, vector<12x128xf32> -> vector<12x128xf32>
    %c0_132 = arith.constant 0 : index
    %c0_133 = arith.constant 0 : index
    %166 = vector.load %arg9[%c0_132, %c0_133] : memref<12x1xf32, #tpu.memory_space<vmem>>, vector<12x1xf32>
    %167 = vector.broadcast %166 : vector<12x1xf32> to vector<12x128xf32>
    %168 = arith.addf %165, %167 : vector<12x128xf32>
    %c0_134 = arith.constant 0 : index
    %c0_135 = arith.constant 0 : index
    %169 = vector.load %arg10[%c0_134, %c0_135] : memref<12x80xf32, #tpu.memory_space<vmem>>, vector<12x80xf32>
    %cst_136 = arith.constant dense<0.000000e+00> : vector<12x128xf32>
    %170 = tpu.matmul %169, %163, %cst_136 {dimension_numbers = #tpu.dot_dimension_numbers<[1], [0], [0], [1], [0, 0, 1, 1], [], []>} : vector<12x80xf32>, vector<80x128xf32>, vector<12x128xf32> -> vector<12x128xf32>
    %c0_137 = arith.constant 0 : index
    %c0_138 = arith.constant 0 : index
    %171 = vector.load %arg11[%c0_137, %c0_138] : memref<12x1xf32, #tpu.memory_space<vmem>>, vector<12x1xf32>
    %172 = vector.broadcast %171 : vector<12x1xf32> to vector<12x128xf32>
    %173 = arith.addf %170, %172 : vector<12x128xf32>
    %c1_139 = arith.constant 1 : index
    %c12_140 = arith.constant 12 : index
    %c0_141 = arith.constant 0 : index
    %174 = vector.load %arg2[%c1_139, %c12_140, %c0_141] : memref<2x24x128xf32, #tpu.memory_space<vmem>>, vector<1x12x128xf32>
    %175 = vector.shape_cast %174 : vector<1x12x128xf32> to vector<12x128xf32>
    %c1_142 = arith.constant 1 : index
    %c0_143 = arith.constant 0 : index
    %c0_144 = arith.constant 0 : index
    %176 = vector.load %arg2[%c1_142, %c0_143, %c0_144] : memref<2x24x128xf32, #tpu.memory_space<vmem>>, vector<1x12x128xf32>
    %177 = vector.shape_cast %176 : vector<1x12x128xf32> to vector<12x128xf32>
    %c1_145 = arith.constant 1 : index
    %c0_146 = arith.constant 0 : index
    %c0_147 = arith.constant 0 : index
    %178 = vector.load %arg12[%c1_145, %c0_146, %c0_147] : memref<2x24x128xf32, #tpu.memory_space<vmem>>, vector<1x12x128xf32>
    %179 = vector.shape_cast %178 : vector<1x12x128xf32> to vector<12x128xf32>
    %180 = vector.shape_cast %177 : vector<12x128xf32> to vector<1x12x128xf32>
    tpu.vector_store %arg12[%c1_145, %c0_146, %c0_147], %180 {strides = array<i32>} : memref<2x24x128xf32, #tpu.memory_space<vmem>>, vector<1x12x128xf32>,
    %181 = math.exp %168 : vector<12x128xf32>
    %182 = arith.mulf %181, %175 : vector<12x128xf32>
    %183 = arith.addf %182, %173 : vector<12x128xf32>
    %c1_148 = arith.constant 1 : index
    %c12_149 = arith.constant 12 : index
    %c0_150 = arith.constant 0 : index
    %184 = vector.load %arg12[%c1_148, %c12_149, %c0_150] : memref<2x24x128xf32, #tpu.memory_space<vmem>>, vector<1x12x128xf32>
    %185 = vector.shape_cast %184 : vector<1x12x128xf32> to vector<12x128xf32>
    %186 = vector.shape_cast %183 : vector<12x128xf32> to vector<1x12x128xf32>
    tpu.vector_store %arg12[%c1_148, %c12_149, %c0_150], %186 {strides = array<i32>} : memref<2x24x128xf32, #tpu.memory_space<vmem>>, vector<1x12x128xf32>,
    %c1_151 = arith.constant 1 : index
    %c0_152 = arith.constant 0 : index
    %c0_153 = arith.constant 0 : index
    %187 = vector.load %arg13[%c1_151, %c0_152, %c0_153] : memref<2x12x128xf32, #tpu.memory_space<vmem>>, vector<1x12x128xf32>
    %188 = vector.shape_cast %187 : vector<1x12x128xf32> to vector<12x128xf32>
    %189 = vector.shape_cast %168 : vector<12x128xf32> to vector<1x12x128xf32>
    tpu.vector_store %arg13[%c1_151, %c0_152, %c0_153], %189 {strides = array<i32>} : memref<2x12x128xf32, #tpu.memory_space<vmem>>, vector<1x12x128xf32>,
    return
  }
  func.func @transform_0(%arg0: i32, %arg1: memref<2xi32, #tpu.memory_space<smem>>) -> (i32, i32, i32) {
    %c0_i32 = arith.constant 0 : i32
    %c0_i32_0 = arith.constant 0 : i32
    %c0_i32_1 = arith.constant 0 : i32
    return %arg0, %c0_i32, %c0_i32_0 : i32, i32, i32
  }
  func.func @transform_1(%arg0: i32, %arg1: memref<2xi32, #tpu.memory_space<smem>>) -> (i32, i32, i32) {
    %c0_i32 = arith.constant 0 : i32
    %c0_i32_0 = arith.constant 0 : i32
    %c0_i32_1 = arith.constant 0 : i32
    return %arg0, %c0_i32, %c0_i32_0 : i32, i32, i32
  }
  func.func @transform_2(%arg0: i32, %arg1: memref<2xi32, #tpu.memory_space<smem>>) -> (i32, i32) {
    %c0_i32 = arith.constant 0 : i32
    %c0_i32_0 = arith.constant 0 : i32
    %c0_i32_1 = arith.constant 0 : i32
    return %c0_i32, %c0_i32_0 : i32, i32
  }
  func.func @transform_3(%arg0: i32, %arg1: memref<2xi32, #tpu.memory_space<smem>>) -> (i32, i32) {
    %c0_i32 = arith.constant 0 : i32
    %c0_i32_0 = arith.constant 0 : i32
    %c0_i32_1 = arith.constant 0 : i32
    return %c0_i32, %c0_i32_0 : i32, i32
  }
  func.func @transform_4(%arg0: i32, %arg1: memref<2xi32, #tpu.memory_space<smem>>) -> (i32, i32) {
    %c0_i32 = arith.constant 0 : i32
    %c0_i32_0 = arith.constant 0 : i32
    %c0_i32_1 = arith.constant 0 : i32
    return %c0_i32, %c0_i32_0 : i32, i32
  }
  func.func @transform_5(%arg0: i32, %arg1: memref<2xi32, #tpu.memory_space<smem>>) -> (i32, i32) {
    %c0_i32 = arith.constant 0 : i32
    %c0_i32_0 = arith.constant 0 : i32
    %c0_i32_1 = arith.constant 0 : i32
    return %c0_i32, %c0_i32_0 : i32, i32
  }
  func.func @transform_6(%arg0: i32, %arg1: memref<2xi32, #tpu.memory_space<smem>>) -> (i32, i32) {
    %c0_i32 = arith.constant 0 : i32
    %c0_i32_0 = arith.constant 0 : i32
    %c0_i32_1 = arith.constant 0 : i32
    return %c0_i32, %c0_i32_0 : i32, i32
  }
  func.func @transform_7(%arg0: i32, %arg1: memref<2xi32, #tpu.memory_space<smem>>) -> (i32, i32) {
    %c0_i32 = arith.constant 0 : i32
    %c0_i32_0 = arith.constant 0 : i32
    %c0_i32_1 = arith.constant 0 : i32
    return %c0_i32, %c0_i32_0 : i32, i32
  }
  func.func @transform_8(%arg0: i32, %arg1: memref<2xi32, #tpu.memory_space<smem>>) -> (i32, i32) {
    %c0_i32 = arith.constant 0 : i32
    %c0_i32_0 = arith.constant 0 : i32
    %c0_i32_1 = arith.constant 0 : i32
    return %c0_i32, %c0_i32_0 : i32, i32
  }
  func.func @transform_9(%arg0: i32, %arg1: memref<2xi32, #tpu.memory_space<smem>>) -> (i32, i32) {
    %c0_i32 = arith.constant 0 : i32
    %c0_i32_0 = arith.constant 0 : i32
    %c0_i32_1 = arith.constant 0 : i32
    return %c0_i32, %c0_i32_0 : i32, i32
  }
  func.func @transform_10(%arg0: i32, %arg1: memref<2xi32, #tpu.memory_space<smem>>) -> (i32, i32, i32) {
    %c0_i32 = arith.constant 0 : i32
    %c0_i32_0 = arith.constant 0 : i32
    %c0_i32_1 = arith.constant 0 : i32
    return %arg0, %c0_i32, %c0_i32_0 : i32, i32, i32
  }
  func.func @transform_11(%arg0: i32, %arg1: memref<2xi32, #tpu.memory_space<smem>>) -> (i32, i32, i32) {
    %c0_i32 = arith.constant 0 : i32
    %c0_i32_0 = arith.constant 0 : i32
    %c0_i32_1 = arith.constant 0 : i32
    return %arg0, %c0_i32, %c0_i32_0 : i32, i32, i32
  }
}

</mosaic_0001>

<llo_original>
// kernel: tpu_custom_call.1
$region0: #{tpu_custom_call.1}
  #allocation0 [shape = 'u32[]', space=smem, size = 0x4, offset = 0x4, fixed_abs, tag = 'smem constant byte address 0x4 - core index']
  #allocation1 [shape = 'u32[144,128]{1,0:T(1,128)}', space=vmem, size = 0x12000, scoped, tag = 'internal scratch']
  #allocation2 [shape = 'f32[20,128]{1,0:T(8,128)}', space=vmem, size = 0x3000, scoped, tag = 'scratch operand']
  #allocation3 [shape = 'f32[100,128]{1,0:T(8,128)}', space=vmem, size = 0xd000, scoped, tag = 'scratch operand']
  #allocation4 [shape = 'f32[200,128]{1,0:T(8,128)}', space=vmem, size = 0x19000, scoped, tag = 'scratch operand']
  #allocation5 [shape = 's32[1]{0}', space=sflag, size = 0x4, scoped, tag = 'scoped memory for tpu_custom_call.1']
  #allocation6 [shape = 'u8[512]{0}', space=smem, size = 0x200, scoped, tag = 'prefetched SMEM operand 0']
  %s0 = inlined_call_operand.vmem [shape: s32[2], index: 0, kind: input, shape index: {}]
  %s1 = inlined_call_operand.hbm [shape: f32[2,24,128], index: 1, kind: input, shape index: {}]
  %s2 = inlined_call_operand.hbm [shape: f32[2,8,128], index: 2, kind: input, shape index: {}]
  %s3 = inlined_call_operand.hbm [shape: f32[40,100], index: 3, kind: input, shape index: {}]
  %s4 = inlined_call_operand.vmem [shape: f32[40,1], index: 4, kind: input, shape index: {}]
  %s5 = inlined_call_operand.vmem [shape: f32[80,200], index: 5, kind: input, shape index: {}]
  %s6 = inlined_call_operand.vmem [shape: f32[80,1], index: 6, kind: input, shape index: {}]
  %s7 = inlined_call_operand.vmem [shape: f32[12,80], index: 7, kind: input, shape index: {}]
  %s8 = inlined_call_operand.vmem [shape: f32[12,1], index: 8, kind: input, shape index: {}]
  %s9 = inlined_call_operand.hbm [shape: f32[12,80], index: 9, kind: input, shape index: {}]
  %s10 = inlined_call_operand.vmem [shape: f32[12,1], index: 10, kind: input, shape index: {}]
  %s11 = inlined_call_operand.hbm [shape: f32[2,24,128], index: 11, kind: output, shape index: {0}]
  %s12 = inlined_call_operand.vmem [shape: f32[2,12,128], index: 12, kind: output, shape index: {1}]
  %13 = xla_tuple %s11, %s12
  %s14 = sld [smem:[#allocation0]]
  $region74: #{tpu_custom_call.1} parent=0
    _
  %s16 = ssub.s32 1, %s14
  %s17 = scalar_select 0, %s16, %s14
  %s18 = sshll.u32 %s0, 4
  %s19 = int_to_ptr.vmem [resolvable:$true] %s18
  %21 = dma.vmem_to_smem %s19, 16, [#allocation6], [#allocation5]
  %22 = dma.done [#allocation5], 16
  %23 = sfence
  $region1: #{tpu_custom_call.1} parent=0
    #allocation7 [shape = 'u8[24576]{0}', space=vmem, size = 0x6000, scoped, tag = 'input window, operand 1, single buffered']
    #allocation8 [shape = 's32[1]{0}', space=sflag, size = 0x4, scoped, tag = 'scoped memory for tpu_custom_call.1']
    #allocation9 [shape = 's32[1]{0}', space=sflag, size = 0x4, scoped, tag = 'scoped memory for tpu_custom_call.1']
    #allocation10 [shape = 'u8[8192]{0}', space=vmem, size = 0x2000, scoped, tag = 'input window, operand 2, single buffered']
    #allocation11 [shape = 's32[1]{0}', space=sflag, size = 0x4, scoped, tag = 'scoped memory for tpu_custom_call.1']
    #allocation12 [shape = 'u8[20480]{0}', space=vmem, size = 0x5000, scoped, tag = 'input window, operand 3, single buffered']
    #allocation13 [shape = 'u8[8192]{0}', space=vmem, size = 0x2000, scoped, tag = 'input window, operand 9, single buffered']
    #allocation14 [shape = 's32[1]{0}', space=sflag, size = 0x4, scoped, tag = 'scoped memory for tpu_custom_call.1']
    #allocation15 [shape = 'u8[24576]{0}', space=vmem, size = 0x6000, scoped, tag = 'output window, operand 0, single buffered']
    %24 = vsyncpa [#allocation8], 0
    %25 = vsyncpa [#allocation11], 0
    %26 = vsyncpa [#allocation14], 0
    %27 = vsyncpa [#allocation9], 0
    // Predicated region
    $region2: #{tpu_custom_call.1} parent=1 // pred_check
      _
    $region3: #{tpu_custom_call.1} parent=1 // pred_check_branch
      %29 = sbr.rel (0) target = $region5
    $region4: #{tpu_custom_call.1} parent=1 // pred_region
      %s31 = ssub.s32 768, 768
      %32 = vsyncadd [#allocation8], %s31
      %s33 = sshll.u32 [#allocation7], 4
      %s34 = int_to_ptr.vmem [resolvable:$true] %s33
      %39 = dma.hbm_to_vmem [thread:$0]  %s1, 768, %s34, [#allocation8], 128, 128, 8
    $region5: #{tpu_custom_call.1} parent=1 // pred_fallthru
      _
    // Predicated region
    $region6: #{tpu_custom_call.1} parent=1 // pred_check
      _
    $region7: #{tpu_custom_call.1} parent=1 // pred_check_branch
      %41 = sbr.rel (0) target = $region9
    $region8: #{tpu_custom_call.1} parent=1 // pred_region
      %s43 = ssub.s32 256, 256
      %44 = vsyncadd [#allocation11], %s43
      %s45 = sshll.u32 [#allocation10], 4
      %s46 = int_to_ptr.vmem [resolvable:$true] %s45
      %51 = dma.hbm_to_vmem [thread:$0]  %s2, 256, %s46, [#allocation11], 128, 128, 8
    $region9: #{tpu_custom_call.1} parent=1 // pred_fallthru
      _
    // Predicated region
    $region10: #{tpu_custom_call.1} parent=1 // pred_check
      _
    $region11: #{tpu_custom_call.1} parent=1 // pred_check_branch
      %53 = sbr.rel (0) target = $region13
    $region12: #{tpu_custom_call.1} parent=1 // pred_region
      %s55 = ssub.s32 640, 640
      %56 = vsyncadd [#allocation11], %s55
      %s57 = sshll.u32 [#allocation12], 4
      %s58 = int_to_ptr.vmem [resolvable:$true] %s57
      %63 = dma.hbm_to_vmem [thread:$0]  %s3, 640, %s58, [#allocation11], 128, 128, 8
    $region13: #{tpu_custom_call.1} parent=1 // pred_fallthru
      _
    // Predicated region
    $region14: #{tpu_custom_call.1} parent=1 // pred_check
      _
    $region15: #{tpu_custom_call.1} parent=1 // pred_check_branch
      %65 = sbr.rel (0) target = $region17
    $region16: #{tpu_custom_call.1} parent=1 // pred_region
      _
    $region17: #{tpu_custom_call.1} parent=1 // pred_fallthru
      _
    // Predicated region
    $region18: #{tpu_custom_call.1} parent=1 // pred_check
      _
    $region19: #{tpu_custom_call.1} parent=1 // pred_check_branch
      %67 = sbr.rel (0) target = $region21
    $region20: #{tpu_custom_call.1} parent=1 // pred_region
      _
    $region21: #{tpu_custom_call.1} parent=1 // pred_fallthru
      _
    // Predicated region
    $region22: #{tpu_custom_call.1} parent=1 // pred_check
      _
    $region23: #{tpu_custom_call.1} parent=1 // pred_check_branch
      %69 = sbr.rel (0) target = $region25
    $region24: #{tpu_custom_call.1} parent=1 // pred_region
      _
    $region25: #{tpu_custom_call.1} parent=1 // pred_fallthru
      _
    // Predicated region
    $region26: #{tpu_custom_call.1} parent=1 // pred_check
      _
    $region27: #{tpu_custom_call.1} parent=1 // pred_check_branch
      %71 = sbr.rel (0) target = $region29
    $region28: #{tpu_custom_call.1} parent=1 // pred_region
      _
    $region29: #{tpu_custom_call.1} parent=1 // pred_fallthru
      _
    // Predicated region
    $region30: #{tpu_custom_call.1} parent=1 // pred_check
      _
    $region31: #{tpu_custom_call.1} parent=1 // pred_check_branch
      %73 = sbr.rel (0) target = $region33
    $region32: #{tpu_custom_call.1} parent=1 // pred_region
      _
    $region33: #{tpu_custom_call.1} parent=1 // pred_fallthru
      _
    // Predicated region
    $region34: #{tpu_custom_call.1} parent=1 // pred_check
      _
    $region35: #{tpu_custom_call.1} parent=1 // pred_check_branch
      %75 = sbr.rel (0) target = $region37
    $region36: #{tpu_custom_call.1} parent=1 // pred_region
      %s77 = ssub.s32 256, 256
      %78 = vsyncadd [#allocation14], %s77
      %s79 = sshll.u32 [#allocation13], 4
      %s80 = int_to_ptr.vmem [resolvable:$true] %s79
      %85 = dma.hbm_to_vmem [thread:$0]  %s9, 256, %s80, [#allocation14], 128, 128, 8
    $region37: #{tpu_custom_call.1} parent=1 // pred_fallthru
      _
    // Predicated region
    $region38: #{tpu_custom_call.1} parent=1 // pred_check
      _
    $region39: #{tpu_custom_call.1} parent=1 // pred_check_branch
      %87 = sbr.rel (0) target = $region41
    $region40: #{tpu_custom_call.1} parent=1 // pred_region
      _
    $region41: #{tpu_custom_call.1} parent=1 // pred_fallthru
      _
    // Predicated region
    $region42: #{tpu_custom_call.1} parent=1 // pred_check
      _
    $region43: #{tpu_custom_call.1} parent=1 // pred_check_branch
      %89 = sbr.rel (0) target = $region45
    $region44: #{tpu_custom_call.1} parent=1 // pred_region
      %90 = dma.done [#allocation8], 768
    $region45: #{tpu_custom_call.1} parent=1 // pred_fallthru
      _
    // Predicated region
    $region46: #{tpu_custom_call.1} parent=1 // pred_check
      _
    $region47: #{tpu_custom_call.1} parent=1 // pred_check_branch
      %92 = sbr.rel (0) target = $region49
    $region48: #{tpu_custom_call.1} parent=1 // pred_region
      %93 = dma.done [#allocation11], 256
    $region49: #{tpu_custom_call.1} parent=1 // pred_fallthru
      _
    // Predicated region
    $region50: #{tpu_custom_call.1} parent=1 // pred_check
      _
    $region51: #{tpu_custom_call.1} parent=1 // pred_check_branch
      %95 = sbr.rel (0) target = $region53
    $region52: #{tpu_custom_call.1} parent=1 // pred_region
      %96 = dma.done [#allocation11], 640
    $region53: #{tpu_custom_call.1} parent=1 // pred_fallthru
      _
    // Predicated region
    $region54: #{tpu_custom_call.1} parent=1 // pred_check
      _
    $region55: #{tpu_custom_call.1} parent=1 // pred_check_branch
      %98 = sbr.rel (0) target = $region57
    $region56: #{tpu_custom_call.1} parent=1 // pred_region
      %99 = dma.done [#allocation14], 256
    $region57: #{tpu_custom_call.1} parent=1 // pred_fallthru
      _
    %v100 = vlaneseq
    %v101 = vand.u32 %v100, 127
    %v102 = vlaneseq
    %v103 = vshrl.u32 %v102, 7
    %v104 = vadd.s32 %v103, 8
    %v105 = vadd.s32 %v103, 16
    %v106 = vadd.s32 %v103, 24
    %v107 = vadd.s32 %v103, 32
    %v108 = vadd.s32 %v103, 40
    %v109 = vadd.s32 %v103, 48
    %v110 = vadd.s32 %v103, 56
    %v111 = vadd.s32 %v103, 64
    %v112 = vadd.s32 %v103, 72
    %v113 = vadd.s32 %v103, 80
    %v114 = vadd.s32 %v103, 88
    %v115 = vadd.s32 %v103, 96
    %v116 = vadd.s32 %v103, 104
    %v117 = vadd.s32 %v103, 112
    %v118 = vadd.s32 %v103, 120
    %v119 = vsub.s32 %v103, %v101
    %v120 = vsub.s32 %v104, %v101
    %v121 = vsub.s32 %v105, %v101
    %v122 = vsub.s32 %v106, %v101
    %v123 = vsub.s32 %v107, %v101
    %v124 = vsub.s32 %v108, %v101
    %v125 = vsub.s32 %v109, %v101
    %v126 = vsub.s32 %v110, %v101
    %v127 = vsub.s32 %v111, %v101
    %v128 = vsub.s32 %v112, %v101
    %v129 = vsub.s32 %v113, %v101
    %v130 = vsub.s32 %v114, %v101
    %v131 = vsub.s32 %v115, %v101
    %v132 = vsub.s32 %v116, %v101
    %v133 = vsub.s32 %v117, %v101
    %v134 = vsub.s32 %v118, %v101
    %vm135 = vcmp.eq.s32.totalorder %v119, 4294967292
    %vm136 = vcmp.eq.s32.totalorder %v120, 4294967292
    %vm137 = vcmp.eq.s32.totalorder %v121, 4294967292
    %vm138 = vcmp.eq.s32.totalorder %v122, 4294967292
    %vm139 = vcmp.eq.s32.totalorder %v123, 4294967292
    %vm140 = vcmp.eq.s32.totalorder %v124, 4294967292
    %vm141 = vcmp.eq.s32.totalorder %v125, 4294967292
    %vm142 = vcmp.eq.s32.totalorder %v126, 4294967292
    %vm143 = vcmp.eq.s32.totalorder %v127, 4294967292
    %vm144 = vcmp.eq.s32.totalorder %v128, 4294967292
    %vm145 = vcmp.eq.s32.totalorder %v129, 4294967292
    %vm146 = vcmp.eq.s32.totalorder %v130, 4294967292
    %vm147 = vcmp.eq.s32.totalorder %v131, 4294967292
    %vm148 = vcmp.eq.s32.totalorder %v132, 4294967292
    %vm149 = vcmp.eq.s32.totalorder %v133, 4294967292
    %vm150 = vcmp.eq.s32.totalorder %v134, 4294967292
    %v151 = vsel %vm135, 1, 0
    %v152 = vsel %vm136, 1, 0
    %v153 = vsel %vm137, 1, 0
    %v154 = vsel %vm138, 1, 0
    %v155 = vsel %vm139, 1, 0
    %v156 = vsel %vm140, 1, 0
    %v157 = vsel %vm141, 1, 0
    %v158 = vsel %vm142, 1, 0
    %v159 = vsel %vm143, 1, 0
    %v160 = vsel %vm144, 1, 0
    %v161 = vsel %vm145, 1, 0
    %v162 = vsel %vm146, 1, 0
    %v163 = vsel %vm147, 1, 0
    %v164 = vsel %vm148, 1, 0
    %v165 = vsel %vm149, 1, 0
    %v166 = vsel %vm150, 1, 0
    %v167 = vcvt.s32.f32 %v151
    %v168 = vcvt.s32.f32 %v152
    %v169 = vcvt.s32.f32 %v153
    %v170 = vcvt.s32.f32 %v154
    %v171 = vcvt.s32.f32 %v155
    %v172 = vcvt.s32.f32 %v156
    %v173 = vcvt.s32.f32 %v157
    %v174 = vcvt.s32.f32 %v158
    %v175 = vcvt.s32.f32 %v159
    %v176 = vcvt.s32.f32 %v160
    %v177 = vcvt.s32.f32 %v161
    %v178 = vcvt.s32.f32 %v162
    %v179 = vcvt.s32.f32 %v163
    %v180 = vcvt.s32.f32 %v164
    %v181 = vcvt.s32.f32 %v165
    %v182 = vcvt.s32.f32 %v166
    %vm183 = vcmp.eq.s32.totalorder %v119, 4294967294
    %vm184 = vcmp.eq.s32.totalorder %v120, 4294967294
    %vm185 = vcmp.eq.s32.totalorder %v121, 4294967294
    %vm186 = vcmp.eq.s32.totalorder %v122, 4294967294
    %vm187 = vcmp.eq.s32.totalorder %v123, 4294967294
    %vm188 = vcmp.eq.s32.totalorder %v124, 4294967294
    %vm189 = vcmp.eq.s32.totalorder %v125, 4294967294
    %vm190 = vcmp.eq.s32.totalorder %v126, 4294967294
    %vm191 = vcmp.eq.s32.totalorder %v127, 4294967294
    %vm192 = vcmp.eq.s32.totalorder %v128, 4294967294
    %vm193 = vcmp.eq.s32.totalorder %v129, 4294967294
    %vm194 = vcmp.eq.s32.totalorder %v130, 4294967294
    %vm195 = vcmp.eq.s32.totalorder %v131, 4294967294
    %vm196 = vcmp.eq.s32.totalorder %v132, 4294967294
    %vm197 = vcmp.eq.s32.totalorder %v133, 4294967294
    %vm198 = vcmp.eq.s32.totalorder %v134, 4294967294
    %v199 = vsel %vm183, 1, 0
    %v200 = vsel %vm184, 1, 0
    %v201 = vsel %vm185, 1, 0
    %v202 = vsel %vm186, 1, 0
    %v203 = vsel %vm187, 1, 0
    %v204 = vsel %vm188, 1, 0
    %v205 = vsel %vm189, 1, 0
    %v206 = vsel %vm190, 1, 0
    %v207 = vsel %vm191, 1, 0
    %v208 = vsel %vm192, 1, 0
    %v209 = vsel %vm193, 1, 0
    %v210 = vsel %vm194, 1, 0
    %v211 = vsel %vm195, 1, 0
    %v212 = vsel %vm196, 1, 0
    %v213 = vsel %vm197, 1, 0
    %v214 = vsel %vm198, 1, 0
    %v215 = vcvt.s32.f32 %v199
    %v216 = vcvt.s32.f32 %v200
    %v217 = vcvt.s32.f32 %v201
    %v218 = vcvt.s32.f32 %v202
    %v219 = vcvt.s32.f32 %v203
    %v220 = vcvt.s32.f32 %v204
    %v221 = vcvt.s32.f32 %v205
    %v222 = vcvt.s32.f32 %v206
    %v223 = vcvt.s32.f32 %v207
    %v224 = vcvt.s32.f32 %v208
    %v225 = vcvt.s32.f32 %v209
    %v226 = vcvt.s32.f32 %v210
    %v227 = vcvt.s32.f32 %v211
    %v228 = vcvt.s32.f32 %v212
    %v229 = vcvt.s32.f32 %v213
    %v230 = vcvt.s32.f32 %v214
    %vm231 = vcmp.eq.s32.totalorder %v119, 4294967295
    %vm232 = vcmp.eq.s32.totalorder %v120, 4294967295
    %vm233 = vcmp.eq.s32.totalorder %v121, 4294967295
    %vm234 = vcmp.eq.s32.totalorder %v122, 4294967295
    %vm235 = vcmp.eq.s32.totalorder %v123, 4294967295
    %vm236 = vcmp.eq.s32.totalorder %v124, 4294967295
    %vm237 = vcmp.eq.s32.totalorder %v125, 4294967295
    %vm238 = vcmp.eq.s32.totalorder %v126, 4294967295
    %vm239 = vcmp.eq.s32.totalorder %v127, 4294967295
    %vm240 = vcmp.eq.s32.totalorder %v128, 4294967295
    %vm241 = vcmp.eq.s32.totalorder %v129, 4294967295
    %vm242 = vcmp.eq.s32.totalorder %v130, 4294967295
    %vm243 = vcmp.eq.s32.totalorder %v131, 4294967295
    %vm244 = vcmp.eq.s32.totalorder %v132, 4294967295
    %vm245 = vcmp.eq.s32.totalorder %v133, 4294967295
    %vm246 = vcmp.eq.s32.totalorder %v134, 4294967295
    %v247 = vsel %vm231, 1, 0
    %v248 = vsel %vm232, 1, 0
    %v249 = vsel %vm233, 1, 0
    %v250 = vsel %vm234, 1, 0
    %v251 = vsel %vm235, 1, 0
    %v252 = vsel %vm236, 1, 0
    %v253 = vsel %vm237, 1, 0
    %v254 = vsel %vm238, 1, 0
    %v255 = vsel %vm239, 1, 0
    %v256 = vsel %vm240, 1, 0
    %v257 = vsel %vm241, 1, 0
    %v258 = vsel %vm242, 1, 0
    %v259 = vsel %vm243, 1, 0
    %v260 = vsel %vm244, 1, 0
    %v261 = vsel %vm245, 1, 0
    %v262 = vsel %vm246, 1, 0
    %v263 = vcvt.s32.f32 %v247
    %v264 = vcvt.s32.f32 %v248
    %v265 = vcvt.s32.f32 %v249
    %v266 = vcvt.s32.f32 %v250
    %v267 = vcvt.s32.f32 %v251
    %v268 = vcvt.s32.f32 %v252
    %v269 = vcvt.s32.f32 %v253
    %v270 = vcvt.s32.f32 %v254
    %v271 = vcvt.s32.f32 %v255
    %v272 = vcvt.s32.f32 %v256
    %v273 = vcvt.s32.f32 %v257
    %v274 = vcvt.s32.f32 %v258
    %v275 = vcvt.s32.f32 %v259
    %v276 = vcvt.s32.f32 %v260
    %v277 = vcvt.s32.f32 %v261
    %v278 = vcvt.s32.f32 %v262
    %vm279 = vcmp.eq.s32.totalorder %v119, 1
    %vm280 = vcmp.eq.s32.totalorder %v120, 1
    %vm281 = vcmp.eq.s32.totalorder %v121, 1
    %vm282 = vcmp.eq.s32.totalorder %v122, 1
    %vm283 = vcmp.eq.s32.totalorder %v123, 1
    %vm284 = vcmp.eq.s32.totalorder %v124, 1
    %vm285 = vcmp.eq.s32.totalorder %v125, 1
    %vm286 = vcmp.eq.s32.totalorder %v126, 1
    %vm287 = vcmp.eq.s32.totalorder %v127, 1
    %vm288 = vcmp.eq.s32.totalorder %v128, 1
    %vm289 = vcmp.eq.s32.totalorder %v129, 1
    %vm290 = vcmp.eq.s32.totalorder %v130, 1
    %vm291 = vcmp.eq.s32.totalorder %v131, 1
    %vm292 = vcmp.eq.s32.totalorder %v132, 1
    %vm293 = vcmp.eq.s32.totalorder %v133, 1
    %vm294 = vcmp.eq.s32.totalorder %v134, 1
    %v295 = vsel %vm279, 1, 0
    %v296 = vsel %vm280, 1, 0
    %v297 = vsel %vm281, 1, 0
    %v298 = vsel %vm282, 1, 0
    %v299 = vsel %vm283, 1, 0
    %v300 = vsel %vm284, 1, 0
    %v301 = vsel %vm285, 1, 0
    %v302 = vsel %vm286, 1, 0
    %v303 = vsel %vm287, 1, 0
    %v304 = vsel %vm288, 1, 0
    %v305 = vsel %vm289, 1, 0
    %v306 = vsel %vm290, 1, 0
    %v307 = vsel %vm291, 1, 0
    %v308 = vsel %vm292, 1, 0
    %v309 = vsel %vm293, 1, 0
    %v310 = vsel %vm294, 1, 0
    %v311 = vcvt.s32.f32 %v295
    %v312 = vcvt.s32.f32 %v296
    %v313 = vcvt.s32.f32 %v297
    %v314 = vcvt.s32.f32 %v298
    %v315 = vcvt.s32.f32 %v299
    %v316 = vcvt.s32.f32 %v300
    %v317 = vcvt.s32.f32 %v301
    %v318 = vcvt.s32.f32 %v302
    %v319 = vcvt.s32.f32 %v303
    %v320 = vcvt.s32.f32 %v304
    %v321 = vcvt.s32.f32 %v305
    %v322 = vcvt.s32.f32 %v306
    %v323 = vcvt.s32.f32 %v307
    %v324 = vcvt.s32.f32 %v308
    %v325 = vcvt.s32.f32 %v309
    %v326 = vcvt.s32.f32 %v310
    %vm327 = vcmp.eq.s32.totalorder %v119, 2
    %vm328 = vcmp.eq.s32.totalorder %v120, 2
    %vm329 = vcmp.eq.s32.totalorder %v121, 2
    %vm330 = vcmp.eq.s32.totalorder %v122, 2
    %vm331 = vcmp.eq.s32.totalorder %v123, 2
    %vm332 = vcmp.eq.s32.totalorder %v124, 2
    %vm333 = vcmp.eq.s32.totalorder %v125, 2
    %vm334 = vcmp.eq.s32.totalorder %v126, 2
    %vm335 = vcmp.eq.s32.totalorder %v127, 2
    %vm336 = vcmp.eq.s32.totalorder %v128, 2
    %vm337 = vcmp.eq.s32.totalorder %v129, 2
    %vm338 = vcmp.eq.s32.totalorder %v130, 2
    %vm339 = vcmp.eq.s32.totalorder %v131, 2
    %vm340 = vcmp.eq.s32.totalorder %v132, 2
    %vm341 = vcmp.eq.s32.totalorder %v133, 2
    %vm342 = vcmp.eq.s32.totalorder %v134, 2
    %v343 = vsel %vm327, 1, 0
    %v344 = vsel %vm328, 1, 0
    %v345 = vsel %vm329, 1, 0
    %v346 = vsel %vm330, 1, 0
    %v347 = vsel %vm331, 1, 0
    %v348 = vsel %vm332, 1, 0
    %v349 = vsel %vm333, 1, 0
    %v350 = vsel %vm334, 1, 0
    %v351 = vsel %vm335, 1, 0
    %v352 = vsel %vm336, 1, 0
    %v353 = vsel %vm337, 1, 0
    %v354 = vsel %vm338, 1, 0
    %v355 = vsel %vm339, 1, 0
    %v356 = vsel %vm340, 1, 0
    %v357 = vsel %vm341, 1, 0
    %v358 = vsel %vm342, 1, 0
    %v359 = vcvt.s32.f32 %v343
    %v360 = vcvt.s32.f32 %v344
    %v361 = vcvt.s32.f32 %v345
    %v362 = vcvt.s32.f32 %v346
    %v363 = vcvt.s32.f32 %v347
    %v364 = vcvt.s32.f32 %v348
    %v365 = vcvt.s32.f32 %v349
    %v366 = vcvt.s32.f32 %v350
    %v367 = vcvt.s32.f32 %v351
    %v368 = vcvt.s32.f32 %v352
    %v369 = vcvt.s32.f32 %v353
    %v370 = vcvt.s32.f32 %v354
    %v371 = vcvt.s32.f32 %v355
    %v372 = vcvt.s32.f32 %v356
    %v373 = vcvt.s32.f32 %v357
    %v374 = vcvt.s32.f32 %v358
    %vm375 = vcmp.eq.s32.totalorder %v119, 4
    %vm376 = vcmp.eq.s32.totalorder %v120, 4
    %vm377 = vcmp.eq.s32.totalorder %v121, 4
    %vm378 = vcmp.eq.s32.totalorder %v122, 4
    %vm379 = vcmp.eq.s32.totalorder %v123, 4
    %vm380 = vcmp.eq.s32.totalorder %v124, 4
    %vm381 = vcmp.eq.s32.totalorder %v125, 4
    %vm382 = vcmp.eq.s32.totalorder %v126, 4
    %vm383 = vcmp.eq.s32.totalorder %v127, 4
    %vm384 = vcmp.eq.s32.totalorder %v128, 4
    %vm385 = vcmp.eq.s32.totalorder %v129, 4
    %vm386 = vcmp.eq.s32.totalorder %v130, 4
    %vm387 = vcmp.eq.s32.totalorder %v131, 4
    %vm388 = vcmp.eq.s32.totalorder %v132, 4
    %vm389 = vcmp.eq.s32.totalorder %v133, 4
    %vm390 = vcmp.eq.s32.totalorder %v134, 4
    %v391 = vsel %vm375, 1, 0
    %v392 = vsel %vm376, 1, 0
    %v393 = vsel %vm377, 1, 0
    %v394 = vsel %vm378, 1, 0
    %v395 = vsel %vm379, 1, 0
    %v396 = vsel %vm380, 1, 0
    %v397 = vsel %vm381, 1, 0
    %v398 = vsel %vm382, 1, 0
    %v399 = vsel %vm383, 1, 0
    %v400 = vsel %vm384, 1, 0
    %v401 = vsel %vm385, 1, 0
    %v402 = vsel %vm386, 1, 0
    %v403 = vsel %vm387, 1, 0
    %v404 = vsel %vm388, 1, 0
    %v405 = vsel %vm389, 1, 0
    %v406 = vsel %vm390, 1, 0
    %v407 = vcvt.s32.f32 %v391
    %v408 = vcvt.s32.f32 %v392
    %v409 = vcvt.s32.f32 %v393
    %v410 = vcvt.s32.f32 %v394
    %v411 = vcvt.s32.f32 %v395
    %v412 = vcvt.s32.f32 %v396
    %v413 = vcvt.s32.f32 %v397
    %v414 = vcvt.s32.f32 %v398
    %v415 = vcvt.s32.f32 %v399
    %v416 = vcvt.s32.f32 %v400
    %v417 = vcvt.s32.f32 %v401
    %v418 = vcvt.s32.f32 %v402
    %v419 = vcvt.s32.f32 %v403
    %v420 = vcvt.s32.f32 %v404
    %v421 = vcvt.s32.f32 %v405
    %v422 = vcvt.s32.f32 %v406
    %s423 = smul.u32 0, 2
    %s424 = sld [smem:[#allocation6 + %s423]]
    %v425 = vstv %s424
    %vm426 = vcmp.lt.s32.totalorder %v101, %v425
    %v427 = vsel %vm426, 1, 0
    %v428 = vcvt.s32.f32 %v427
    %v429 = vld [vmem:[#allocation7] sm:$0xff]
    %v430 = vld [vmem:[#allocation7 + $0x8] sm:$0xf]
    %431 = vst [vmem:[#allocation2] sm:$0xff] %v429
    %432 = vst [vmem:[#allocation2 + $0x8] sm:$0xf] %v430
    %v433 = vld [vmem:[#allocation10] sm:$0xff]
    %434 = vst [vmem:[#allocation2 + $0xc] sm:$0xff] %v433
    %v435 = vld [vmem:[#allocation2] sm:$0xff]
    %v436 = vld [vmem:[#allocation2 + $0x8] sm:$0xff]
    %v437 = vld [vmem:[#allocation2 + $0x10] sm:$0xf]
    %v438 = vld [vmem:[#allocation12] sm:$0xff]
    %v439 = vld [vmem:[#allocation12 + $0x8] sm:$0xff]
    %v440 = vld [vmem:[#allocation12 + $0x10] sm:$0xff]
    %v441 = vld [vmem:[#allocation12 + $0x18] sm:$0xff]
    %v442 = vld [vmem:[#allocation12 + $0x20] sm:$0xff]
    %v443 = vld [vmem:[%s4] sm:$0xff]
    %v444 = vld [vmem:[%s4 + $0x8] sm:$0xff]
    %v445 = vld [vmem:[%s4 + $0x10] sm:$0xff]
    %v446 = vld [vmem:[%s4 + $0x18] sm:$0xff]
    %v447 = vld [vmem:[%s4 + $0x20] sm:$0xff]
    %v448 = vmul.f32 %v435, %v428
    %v449 = vmul.f32 %v436, %v428
    %v450 = vmul.f32 %v437, %v428
    %451 = vmatprep.subr.mxu0 0.0
    %452 = vmatpush1.msra.mxu0 %v215
    %453 = vmatprep.subr.mxu0 0.0
    %454 = vmatpush1.msra.mxu0 %v216
    %455 = vmatprep.subr.mxu0 0.0
    %456 = vmatpush1.msra.mxu0 %v217
    %457 = vmatprep.subr.mxu0 0.0
    %458 = vmatpush1.msra.mxu0 %v218
    %459 = vmatprep.subr.mxu0 0.0
    %460 = vmatpush1.msra.mxu0 %v219
    %461 = vmatprep.subr.mxu0 0.0
    %462 = vmatpush1.msra.mxu0 %v220
    %463 = vmatprep.subr.mxu0 0.0
    %464 = vmatpush1.msra.mxu0 %v221
    %465 = vmatprep.subr.mxu0 0.0
    %466 = vmatpush1.msra.mxu0 %v222
    %467 = vmatprep.subr.mxu0 0.0
    %468 = vmatpush1.msra.mxu0 %v223
    %469 = vmatprep.subr.mxu0 0.0
    %470 = vmatpush1.msra.mxu0 %v224
    %471 = vmatprep.subr.mxu0 0.0
    %472 = vmatpush1.msra.mxu0 %v225
    %473 = vmatprep.subr.mxu0 0.0
    %474 = vmatpush1.msra.mxu0 %v226
    %475 = vmatprep.subr.mxu0 0.0
    %476 = vmatpush1.msra.mxu0 %v227
    %477 = vmatprep.subr.mxu0 0.0
    %478 = vmatpush1.msra.mxu0 %v228
    %479 = vmatprep.subr.mxu0 0.0
    %480 = vmatpush1.msra.mxu0 %v229
    %481 = vmatprep.subr.mxu0 0.0
    %482 = vmatpush1.msra.mxu0 %v230
    %483 = vmatprep.subr.mxu0 0.0
    %484 = vmatpush1.msra.mxu0 0.0
    %485 = vmatprep.subr.mxu0 0.0
    %486 = vmatpush1.msra.mxu0 0.0
    %487 = vmatprep.subr.mxu0 0.0
    %488 = vmatpush1.msra.mxu0 0.0
    %489 = vmatprep.subr.mxu0 0.0
    %490 = vmatpush1.msra.mxu0 0.0
    %491 = vmatprep.subr.mxu0 0.0
    %492 = vmatpush1.msra.mxu0 0.0
    %493 = vmatprep.subr.mxu0 0.0
    %494 = vmatpush1.msra.mxu0 0.0
    %495 = vmatprep.subr.mxu0 0.0
    %496 = vmatpush1.msra.mxu0 0.0
    %497 = vmatprep.subr.mxu0 0.0
    %498 = vmatpush1.msra.mxu0 0.0
    %499 = vmatprep.subr.mxu0 0.0
    %500 = vmatpush1.msra.mxu0 0.0
    %501 = vmatprep.subr.mxu0 0.0
    %502 = vmatpush1.msra.mxu0 0.0
    %503 = vmatprep.subr.mxu0 0.0
    %504 = vmatpush1.msra.mxu0 0.0
    %505 = vmatprep.subr.mxu0 0.0
    %506 = vmatpush1.msra.mxu0 0.0
    %507 = vmatprep.subr.mxu0 0.0
    %508 = vmatpush1.msra.mxu0 0.0
    %509 = vmatprep.subr.mxu0 0.0
    %510 = vmatpush1.msra.mxu0 0.0
    %511 = vmatprep.subr.mxu0 0.0
    %512 = vmatpush1.msra.mxu0 0.0
    %513 = vmatprep.subr.mxu0 0.0
    %514 = vmatpush1.msra.mxu0 0.0
    %515 = vmatprep.mubr.f32.mxu0 0.0
    %516 = vmatmul.mubr.f32.gmra.mrb[0].mxu0 %v448
    %v517 = vpop.f32.mrb[0].mxu0
    %v518 = vadd.f32 0.0, %v517
    %v519 = vpop.f32.mrb[0].mxu0
    %520 = vmatprep.mubr.f32.mxu0 0.0
    %521 = vmatmul.mubr.f32.gmra.mrb[0].mxu0 %v449
    %v522 = vpop.f32.mrb[0].mxu0
    %v523 = vadd.f32 0.0, %v522
    %v524 = vpop.f32.mrb[0].mxu0
    %525 = vmatprep.mubr.f32.mxu0 0.0
    %526 = vmatmul.mubr.f32.gmra.mrb[0].mxu0 %v450
    %v527 = vpop.f32.mrb[0].mxu0
    %v528 = vadd.f32 0.0, %v527
    %v529 = vpop.f32.mrb[0].mxu0
    %530 = vdwg.mxu0
    %531 = vst [vmem:[#allocation3] sm:$0xff] %v518
    %532 = vst [vmem:[#allocation3 + $0x8] sm:$0xff] %v523
    %533 = vst [vmem:[#allocation3 + $0x10] sm:$0xf] %v528
    %534 = vmatprep.subr.mxu0 0.0
    %535 = vmatpush1.msra.mxu0 %v263
    %536 = vmatprep.subr.mxu0 0.0
    %537 = vmatpush1.msra.mxu0 %v264
    %538 = vmatprep.subr.mxu0 0.0
    %539 = vmatpush1.msra.mxu0 %v265
    %540 = vmatprep.subr.mxu0 0.0
    %541 = vmatpush1.msra.mxu0 %v266
    %542 = vmatprep.subr.mxu0 0.0
    %543 = vmatpush1.msra.mxu0 %v267
    %544 = vmatprep.subr.mxu0 0.0
    %545 = vmatpush1.msra.mxu0 %v268
    %546 = vmatprep.subr.mxu0 0.0
    %547 = vmatpush1.msra.mxu0 %v269
    %548 = vmatprep.subr.mxu0 0.0
    %549 = vmatpush1.msra.mxu0 %v270
    %550 = vmatprep.subr.mxu0 0.0
    %551 = vmatpush1.msra.mxu0 %v271
    %552 = vmatprep.subr.mxu0 0.0
    %553 = vmatpush1.msra.mxu0 %v272
    %554 = vmatprep.subr.mxu0 0.0
    %555 = vmatpush1.msra.mxu0 %v273
    %556 = vmatprep.subr.mxu0 0.0
    %557 = vmatpush1.msra.mxu0 %v274
    %558 = vmatprep.subr.mxu0 0.0
    %559 = vmatpush1.msra.mxu0 %v275
    %560 = vmatprep.subr.mxu0 0.0
    %561 = vmatpush1.msra.mxu0 %v276
    %562 = vmatprep.subr.mxu0 0.0
    %563 = vmatpush1.msra.mxu0 %v277
    %564 = vmatprep.subr.mxu0 0.0
    %565 = vmatpush1.msra.mxu0 %v278
    %566 = vmatprep.subr.mxu0 0.0
    %567 = vmatpush1.msra.mxu0 0.0
    %568 = vmatprep.subr.mxu0 0.0
    %569 = vmatpush1.msra.mxu0 0.0
    %570 = vmatprep.subr.mxu0 0.0
    %571 = vmatpush1.msra.mxu0 0.0
    %572 = vmatprep.subr.mxu0 0.0
    %573 = vmatpush1.msra.mxu0 0.0
    %574 = vmatprep.subr.mxu0 0.0
    %575 = vmatpush1.msra.mxu0 0.0
    %576 = vmatprep.subr.mxu0 0.0
    %577 = vmatpush1.msra.mxu0 0.0
    %578 = vmatprep.subr.mxu0 0.0
    %579 = vmatpush1.msra.mxu0 0.0
    %580 = vmatprep.subr.mxu0 0.0
    %581 = vmatpush1.msra.mxu0 0.0
    %582 = vmatprep.subr.mxu0 0.0
    %583 = vmatpush1.msra.mxu0 0.0
    %584 = vmatprep.subr.mxu0 0.0
    %585 = vmatpush1.msra.mxu0 0.0
    %586 = vmatprep.subr.mxu0 0.0
    %587 = vmatpush1.msra.mxu0 0.0
    %588 = vmatprep.subr.mxu0 0.0
    %589 = vmatpush1.msra.mxu0 0.0
    %590 = vmatprep.subr.mxu0 0.0
    %591 = vmatpush1.msra.mxu0 0.0
    %592 = vmatprep.subr.mxu0 0.0
    %593 = vmatpush1.msra.mxu0 0.0
    %594 = vmatprep.subr.mxu0 0.0
    %595 = vmatpush1.msra.mxu0 0.0
    %596 = vmatprep.subr.mxu0 0.0
    %597 = vmatpush1.msra.mxu0 0.0
    %598 = vmatprep.mubr.f32.mxu0 0.0
    %599 = vmatmul.mubr.f32.gmra.mrb[0].mxu0 %v448
    %v600 = vpop.f32.mrb[0].mxu0
    %v601 = vadd.f32 0.0, %v600
    %v602 = vpop.f32.mrb[0].mxu0
    %603 = vmatprep.mubr.f32.mxu0 0.0
    %604 = vmatmul.mubr.f32.gmra.mrb[0].mxu0 %v449
    %v605 = vpop.f32.mrb[0].mxu0
    %v606 = vadd.f32 0.0, %v605
    %v607 = vpop.f32.mrb[0].mxu0
    %608 = vmatprep.mubr.f32.mxu0 0.0
    %609 = vmatmul.mubr.f32.gmra.mrb[0].mxu0 %v450
    %v610 = vpop.f32.mrb[0].mxu0
    %v611 = vadd.f32 0.0, %v610
    %v612 = vpop.f32.mrb[0].mxu0
    %613 = vdwg.mxu0
    %614 = vst [vmem:[#allocation3 + $0x14] sm:$0xff] %v601
    %615 = vst [vmem:[#allocation3 + $0x1c] sm:$0xff] %v606
    %616 = vst [vmem:[#allocation3 + $0x24] sm:$0xf] %v611
    %617 = vst [vmem:[#allocation3 + $0x28] sm:$0xff] %v448
    %618 = vst [vmem:[#allocation3 + $0x30] sm:$0xff] %v449
    %619 = vst [vmem:[#allocation3 + $0x38] sm:$0xf] %v450
    %620 = vmatprep.subr.mxu0 0.0
    %621 = vmatpush1.msra.mxu0 %v311
    %622 = vmatprep.subr.mxu0 0.0
    %623 = vmatpush1.msra.mxu0 %v312
    %624 = vmatprep.subr.mxu0 0.0
    %625 = vmatpush1.msra.mxu0 %v313
    %626 = vmatprep.subr.mxu0 0.0
    %627 = vmatpush1.msra.mxu0 %v314
    %628 = vmatprep.subr.mxu0 0.0
    %629 = vmatpush1.msra.mxu0 %v315
    %630 = vmatprep.subr.mxu0 0.0
    %631 = vmatpush1.msra.mxu0 %v316
    %632 = vmatprep.subr.mxu0 0.0
    %633 = vmatpush1.msra.mxu0 %v317
    %634 = vmatprep.subr.mxu0 0.0
    %635 = vmatpush1.msra.mxu0 %v318
    %636 = vmatprep.subr.mxu0 0.0
    %637 = vmatpush1.msra.mxu0 %v319
    %638 = vmatprep.subr.mxu0 0.0
    %639 = vmatpush1.msra.mxu0 %v320
    %640 = vmatprep.subr.mxu0 0.0
    %641 = vmatpush1.msra.mxu0 %v321
    %642 = vmatprep.subr.mxu0 0.0
    %643 = vmatpush1.msra.mxu0 %v322
    %644 = vmatprep.subr.mxu0 0.0
    %645 = vmatpush1.msra.mxu0 %v323
    %646 = vmatprep.subr.mxu0 0.0
    %647 = vmatpush1.msra.mxu0 %v324
    %648 = vmatprep.subr.mxu0 0.0
    %649 = vmatpush1.msra.mxu0 %v325
    %650 = vmatprep.subr.mxu0 0.0
    %651 = vmatpush1.msra.mxu0 %v326
    %652 = vmatprep.subr.mxu0 0.0
    %653 = vmatpush1.msra.mxu0 0.0
    %654 = vmatprep.subr.mxu0 0.0
    %655 = vmatpush1.msra.mxu0 0.0
    %656 = vmatprep.subr.mxu0 0.0
    %657 = vmatpush1.msra.mxu0 0.0
    %658 = vmatprep.subr.mxu0 0.0
    %659 = vmatpush1.msra.mxu0 0.0
    %660 = vmatprep.subr.mxu0 0.0
    %661 = vmatpush1.msra.mxu0 0.0
    %662 = vmatprep.subr.mxu0 0.0
    %663 = vmatpush1.msra.mxu0 0.0
    %664 = vmatprep.subr.mxu0 0.0
    %665 = vmatpush1.msra.mxu0 0.0
    %666 = vmatprep.subr.mxu0 0.0
    %667 = vmatpush1.msra.mxu0 0.0
    %668 = vmatprep.subr.mxu0 0.0
    %669 = vmatpush1.msra.mxu0 0.0
    %670 = vmatprep.subr.mxu0 0.0
    %671 = vmatpush1.msra.mxu0 0.0
    %672 = vmatprep.subr.mxu0 0.0
    %673 = vmatpush1.msra.mxu0 0.0
    %674 = vmatprep.subr.mxu0 0.0
    %675 = vmatpush1.msra.mxu0 0.0
    %676 = vmatprep.subr.mxu0 0.0
    %677 = vmatpush1.msra.mxu0 0.0
    %678 = vmatprep.subr.mxu0 0.0
    %679 = vmatpush1.msra.mxu0 0.0
    %680 = vmatprep.subr.mxu0 0.0
    %681 = vmatpush1.msra.mxu0 0.0
    %682 = vmatprep.subr.mxu0 0.0
    %683 = vmatpush1.msra.mxu0 0.0
    %684 = vmatprep.mubr.f32.mxu0 0.0
    %685 = vmatmul.mubr.f32.gmra.mrb[0].mxu0 %v448
    %v686 = vpop.f32.mrb[0].mxu0
    %v687 = vadd.f32 0.0, %v686
    %v688 = vpop.f32.mrb[0].mxu0
    %689 = vmatprep.mubr.f32.mxu0 0.0
    %690 = vmatmul.mubr.f32.gmra.mrb[0].mxu0 %v449
    %v691 = vpop.f32.mrb[0].mxu0
    %v692 = vadd.f32 0.0, %v691
    %v693 = vpop.f32.mrb[0].mxu0
    %694 = vmatprep.mubr.f32.mxu0 0.0
    %695 = vmatmul.mubr.f32.gmra.mrb[0].mxu0 %v450
    %v696 = vpop.f32.mrb[0].mxu0
    %v697 = vadd.f32 0.0, %v696
    %v698 = vpop.f32.mrb[0].mxu0
    %699 = vdwg.mxu0
    %700 = vst [vmem:[#allocation3 + $0x3c] sm:$0xff] %v687
    %701 = vst [vmem:[#allocation3 + $0x44] sm:$0xff] %v692
    %702 = vst [vmem:[#allocation3 + $0x4c] sm:$0xf] %v697
    %703 = vmatprep.subr.mxu0 0.0
    %704 = vmatpush1.msra.mxu0 %v359
    %705 = vmatprep.subr.mxu0 0.0
    %706 = vmatpush1.msra.mxu0 %v360
    %707 = vmatprep.subr.mxu0 0.0
    %708 = vmatpush1.msra.mxu0 %v361
    %709 = vmatprep.subr.mxu0 0.0
    %710 = vmatpush1.msra.mxu0 %v362
    %711 = vmatprep.subr.mxu0 0.0
    %712 = vmatpush1.msra.mxu0 %v363
    %713 = vmatprep.subr.mxu0 0.0
    %714 = vmatpush1.msra.mxu0 %v364
    %715 = vmatprep.subr.mxu0 0.0
    %716 = vmatpush1.msra.mxu0 %v365
    %717 = vmatprep.subr.mxu0 0.0
    %718 = vmatpush1.msra.mxu0 %v366
    %719 = vmatprep.subr.mxu0 0.0
    %720 = vmatpush1.msra.mxu0 %v367
    %721 = vmatprep.subr.mxu0 0.0
    %722 = vmatpush1.msra.mxu0 %v368
    %723 = vmatprep.subr.mxu0 0.0
    %724 = vmatpush1.msra.mxu0 %v369
    %725 = vmatprep.subr.mxu0 0.0
    %726 = vmatpush1.msra.mxu0 %v370
    %727 = vmatprep.subr.mxu0 0.0
    %728 = vmatpush1.msra.mxu0 %v371
    %729 = vmatprep.subr.mxu0 0.0
    %730 = vmatpush1.msra.mxu0 %v372
    %731 = vmatprep.subr.mxu0 0.0
    %732 = vmatpush1.msra.mxu0 %v373
    %733 = vmatprep.subr.mxu0 0.0
    %734 = vmatpush1.msra.mxu0 %v374
    %735 = vmatprep.subr.mxu0 0.0
    %736 = vmatpush1.msra.mxu0 0.0
    %737 = vmatprep.subr.mxu0 0.0
    %738 = vmatpush1.msra.mxu0 0.0
    %739 = vmatprep.subr.mxu0 0.0
    %740 = vmatpush1.msra.mxu0 0.0
    %741 = vmatprep.subr.mxu0 0.0
    %742 = vmatpush1.msra.mxu0 0.0
    %743 = vmatprep.subr.mxu0 0.0
    %744 = vmatpush1.msra.mxu0 0.0
    %745 = vmatprep.subr.mxu0 0.0
    %746 = vmatpush1.msra.mxu0 0.0
    %747 = vmatprep.subr.mxu0 0.0
    %748 = vmatpush1.msra.mxu0 0.0
    %749 = vmatprep.subr.mxu0 0.0
    %750 = vmatpush1.msra.mxu0 0.0
    %751 = vmatprep.subr.mxu0 0.0
    %752 = vmatpush1.msra.mxu0 0.0
    %753 = vmatprep.subr.mxu0 0.0
    %754 = vmatpush1.msra.mxu0 0.0
    %755 = vmatprep.subr.mxu0 0.0
    %756 = vmatpush1.msra.mxu0 0.0
    %757 = vmatprep.subr.mxu0 0.0
    %758 = vmatpush1.msra.mxu0 0.0
    %759 = vmatprep.subr.mxu0 0.0
    %760 = vmatpush1.msra.mxu0 0.0
    %761 = vmatprep.subr.mxu0 0.0
    %762 = vmatpush1.msra.mxu0 0.0
    %763 = vmatprep.subr.mxu0 0.0
    %764 = vmatpush1.msra.mxu0 0.0
    %765 = vmatprep.subr.mxu0 0.0
    %766 = vmatpush1.msra.mxu0 0.0
    %767 = vmatprep.mubr.f32.mxu0 0.0
    %768 = vmatmul.mubr.f32.gmra.mrb[0].mxu0 %v448
    %v769 = vpop.f32.mrb[0].mxu0
    %v770 = vadd.f32 0.0, %v769
    %v771 = vpop.f32.mrb[0].mxu0
    %772 = vmatprep.mubr.f32.mxu0 0.0
    %773 = vmatmul.mubr.f32.gmra.mrb[0].mxu0 %v449
    %v774 = vpop.f32.mrb[0].mxu0
    %v775 = vadd.f32 0.0, %v774
    %v776 = vpop.f32.mrb[0].mxu0
    %777 = vmatprep.mubr.f32.mxu0 0.0
    %778 = vmatmul.mubr.f32.gmra.mrb[0].mxu0 %v450
    %v779 = vpop.f32.mrb[0].mxu0
    %v780 = vadd.f32 0.0, %v779
    %v781 = vpop.f32.mrb[0].mxu0
    %782 = vdwg.mxu0
    %783 = vst [vmem:[#allocation3 + $0x50] sm:$0xff] %v770
    %784 = vst [vmem:[#allocation3 + $0x58] sm:$0xff] %v775
    %785 = vst [vmem:[#allocation3 + $0x60] sm:$0xf] %v780
    %v786 = vld [vmem:[#allocation3] sm:$0xff]
    %v787 = vld [vmem:[#allocation3 + $0x8] sm:$0xff]
    %v788 = vld [vmem:[#allocation3 + $0x10] sm:$0xff]
    %v789 = vld [vmem:[#allocation3 + $0x18] sm:$0xff]
    %v790 = vld [vmem:[#allocation3 + $0x20] sm:$0xff]
    %v791 = vld [vmem:[#allocation3 + $0x28] sm:$0xff]
    %v792 = vld [vmem:[#allocation3 + $0x30] sm:$0xff]
    %v793 = vld [vmem:[#allocation3 + $0x38] sm:$0xff]
    %v794 = vld [vmem:[#allocation3 + $0x40] sm:$0xff]
    %v795 = vld [vmem:[#allocation3 + $0x48] sm:$0xff]
    %v796 = vld [vmem:[#allocation3 + $0x50] sm:$0xff]
    %v797 = vld [vmem:[#allocation3 + $0x58] sm:$0xff]
    %v798 = vld [vmem:[#allocation3 + $0x60] sm:$0xf]
    %800 = vset.pattern.permute.xlu0 0
    %801 = vperm.xlu0 %800, %v443
    %v802 = vpop.permute.xlu0 %801
    %805 = vset.pattern.permute.xlu0 0
    %806 = vperm.xlu0 %805, %v444
    %v807 = vpop.permute.xlu0 %806
    %810 = vset.pattern.permute.xlu0 0
    %811 = vperm.xlu0 %810, %v445
    %v812 = vpop.permute.xlu0 %811
    %815 = vset.pattern.permute.xlu0 0
    %816 = vperm.xlu0 %815, %v446
    %v817 = vpop.permute.xlu0 %816
    %820 = vset.pattern.permute.xlu0 0
    %821 = vperm.xlu0 %820, %v447
    %v822 = vpop.permute.xlu0 %821
    %vm824 = vcmask 818176
    %v826 = vsel %vm824, %v438, 0
    %v829 = vsel %vm824, %v439, 0
    %v832 = vsel %vm824, %v440, 0
    %v835 = vsel %vm824, %v441, 0
    %v838 = vsel %vm824, %v442, 0
    %vm840 = vcmask 1043456
    %v842 = vsel %vm840, %v798, 0
    %844 = vmatprep.subr.mxu0 0.0
    %845 = vmatpush1.msra.mxu0 %v786
    %846 = vmatprep.subr.mxu0 0.0
    %847 = vmatpush1.msra.mxu0 %v787
    %848 = vmatprep.subr.mxu0 0.0
    %849 = vmatpush1.msra.mxu0 %v788
    %850 = vmatprep.subr.mxu0 0.0
    %851 = vmatpush1.msra.mxu0 %v789
    %852 = vmatprep.subr.mxu0 0.0
    %853 = vmatpush1.msra.mxu0 %v790
    %854 = vmatprep.subr.mxu0 0.0
    %855 = vmatpush1.msra.mxu0 %v791
    %856 = vmatprep.subr.mxu0 0.0
    %857 = vmatpush1.msra.mxu0 %v792
    %858 = vmatprep.subr.mxu0 0.0
    %859 = vmatpush1.msra.mxu0 %v793
    %860 = vmatprep.subr.mxu0 0.0
    %861 = vmatpush1.msra.mxu0 %v794
    %862 = vmatprep.subr.mxu0 0.0
    %863 = vmatpush1.msra.mxu0 %v795
    %864 = vmatprep.subr.mxu0 0.0
    %865 = vmatpush1.msra.mxu0 %v796
    %866 = vmatprep.subr.mxu0 0.0
    %867 = vmatpush1.msra.mxu0 %v797
    %868 = vmatprep.subr.mxu0 0.0
    %869 = vmatpush1.msra.mxu0 %v842
    %870 = vmatprep.subr.mxu0 0.0
    %871 = vmatpush1.msra.mxu0 0.0
    %872 = vmatprep.subr.mxu0 0.0
    %873 = vmatpush1.msra.mxu0 0.0
    %874 = vmatprep.subr.mxu0 0.0
    %875 = vmatpush1.msra.mxu0 0.0
    %876 = vmatprep.subr.mxu0 0.0
    %877 = vmatpush1.msra.mxu0 0.0
    %878 = vmatprep.subr.mxu0 0.0
    %879 = vmatpush1.msra.mxu0 0.0
    %880 = vmatprep.subr.mxu0 0.0
    %881 = vmatpush1.msra.mxu0 0.0
    %882 = vmatprep.subr.mxu0 0.0
    %883 = vmatpush1.msra.mxu0 0.0
    %884 = vmatprep.subr.mxu0 0.0
    %885 = vmatpush1.msra.mxu0 0.0
    %886 = vmatprep.subr.mxu0 0.0
    %887 = vmatpush1.msra.mxu0 0.0
    %888 = vmatprep.subr.mxu0 0.0
    %889 = vmatpush1.msra.mxu0 0.0
    %890 = vmatprep.subr.mxu0 0.0
    %891 = vmatpush1.msra.mxu0 0.0
    %892 = vmatprep.subr.mxu0 0.0
    %893 = vmatpush1.msra.mxu0 0.0
    %894 = vmatprep.subr.mxu0 0.0
    %895 = vmatpush1.msra.mxu0 0.0
    %896 = vmatprep.subr.mxu0 0.0
    %897 = vmatpush1.msra.mxu0 0.0
    %898 = vmatprep.subr.mxu0 0.0
    %899 = vmatpush1.msra.mxu0 0.0
    %900 = vmatprep.subr.mxu0 0.0
    %901 = vmatpush1.msra.mxu0 0.0
    %902 = vmatprep.subr.mxu0 0.0
    %903 = vmatpush1.msra.mxu0 0.0
    %904 = vmatprep.subr.mxu0 0.0
    %905 = vmatpush1.msra.mxu0 0.0
    %906 = vmatprep.subr.mxu0 0.0
    %907 = vmatpush1.msra.mxu0 0.0
    %908 = vmatprep.mubr.f32.mxu0 0.0
    %909 = vmatmul.mubr.f32.gmra.mrb[0].mxu0 %v826
    %v910 = vpop.f32.mrb[0].mxu0
    %v911 = vadd.f32 %v802, %v910
    %v912 = vpop.f32.mrb[0].mxu0
    %913 = vmatprep.mubr.f32.mxu0 0.0
    %914 = vmatmul.mubr.f32.gmra.mrb[0].mxu0 %v829
    %v915 = vpop.f32.mrb[0].mxu0
    %v916 = vadd.f32 %v807, %v915
    %v917 = vpop.f32.mrb[0].mxu0
    %918 = vmatprep.mubr.f32.mxu0 0.0
    %919 = vmatmul.mubr.f32.gmra.mrb[0].mxu0 %v832
    %v920 = vpop.f32.mrb[0].mxu0
    %v921 = vadd.f32 %v812, %v920
    %v922 = vpop.f32.mrb[0].mxu0
    %923 = vmatprep.mubr.f32.mxu0 0.0
    %924 = vmatmul.mubr.f32.gmra.mrb[0].mxu0 %v835
    %v925 = vpop.f32.mrb[0].mxu0
    %v926 = vadd.f32 %v817, %v925
    %v927 = vpop.f32.mrb[0].mxu0
    %928 = vmatprep.mubr.f32.mxu0 0.0
    %929 = vmatmul.mubr.f32.gmra.mrb[0].mxu0 %v838
    %v930 = vpop.f32.mrb[0].mxu0
    %v931 = vadd.f32 %v822, %v930
    %v932 = vpop.f32.mrb[0].mxu0
    %933 = vdwg.mxu0
    %v934 = vmax.f32 %v911, 0.0
    %v935 = vmax.f32 %v916, 0.0
    %v936 = vmax.f32 %v921, 0.0
    %v937 = vmax.f32 %v926, 0.0
    %v938 = vmax.f32 %v931, 0.0
    %v939 = vld [vmem:[%s5] sm:$0xff]
    %v940 = vld [vmem:[%s5 + $0x8] sm:$0xff]
    %v941 = vld [vmem:[%s5 + $0x10] sm:$0xff]
    %v942 = vld [vmem:[%s5 + $0x18] sm:$0xff]
    %v943 = vld [vmem:[%s5 + $0x20] sm:$0xff]
    %v944 = vld [vmem:[%s5 + $0x28] sm:$0xff]
    %v945 = vld [vmem:[%s5 + $0x30] sm:$0xff]
    %v946 = vld [vmem:[%s5 + $0x38] sm:$0xff]
    %v947 = vld [vmem:[%s5 + $0x40] sm:$0xff]
    %v948 = vld [vmem:[%s5 + $0x48] sm:$0xff]
    %v949 = vld [vmem:[%s5 + $0x50] sm:$0xff]
    %v950 = vld [vmem:[%s5 + $0x58] sm:$0xff]
    %v951 = vld [vmem:[%s5 + $0x60] sm:$0xff]
    %v952 = vld [vmem:[%s5 + $0x68] sm:$0xff]
    %v953 = vld [vmem:[%s5 + $0x70] sm:$0xff]
    %v954 = vld [vmem:[%s5 + $0x78] sm:$0xff]
    %v955 = vld [vmem:[%s5 + $0x80] sm:$0xff]
    %v956 = vld [vmem:[%s5 + $0x88] sm:$0xff]
    %v957 = vld [vmem:[%s5 + $0x90] sm:$0xff]
    %v958 = vld [vmem:[%s5 + $0x98] sm:$0xff]
    %v959 = vld [vmem:[%s6] sm:$0xff]
    %v960 = vld [vmem:[%s6 + $0x8] sm:$0xff]
    %v961 = vld [vmem:[%s6 + $0x10] sm:$0xff]
    %v962 = vld [vmem:[%s6 + $0x18] sm:$0xff]
    %v963 = vld [vmem:[%s6 + $0x20] sm:$0xff]
    %v964 = vld [vmem:[%s6 + $0x28] sm:$0xff]
    %v965 = vld [vmem:[%s6 + $0x30] sm:$0xff]
    %v966 = vld [vmem:[%s6 + $0x38] sm:$0xff]
    %v967 = vld [vmem:[%s6 + $0x40] sm:$0xff]
    %v968 = vld [vmem:[%s6 + $0x48] sm:$0xff]
    %v969 = vmul.f32 %v934, %v428
    %v970 = vmul.f32 %v935, %v428
    %v971 = vmul.f32 %v936, %v428
    %v972 = vmul.f32 %v937, %v428
    %v973 = vmul.f32 %v938, %v428
    %974 = vmatprep.subr.mxu0 0.0
    %975 = vmatpush1.msra.mxu0 %v167
    %976 = vmatprep.subr.mxu0 0.0
    %977 = vmatpush1.msra.mxu0 %v168
    %978 = vmatprep.subr.mxu0 0.0
    %979 = vmatpush1.msra.mxu0 %v169
    %980 = vmatprep.subr.mxu0 0.0
    %981 = vmatpush1.msra.mxu0 %v170
    %982 = vmatprep.subr.mxu0 0.0
    %983 = vmatpush1.msra.mxu0 %v171
    %984 = vmatprep.subr.mxu0 0.0
    %985 = vmatpush1.msra.mxu0 %v172
    %986 = vmatprep.subr.mxu0 0.0
    %987 = vmatpush1.msra.mxu0 %v173
    %988 = vmatprep.subr.mxu0 0.0
    %989 = vmatpush1.msra.mxu0 %v174
    %990 = vmatprep.subr.mxu0 0.0
    %991 = vmatpush1.msra.mxu0 %v175
    %992 = vmatprep.subr.mxu0 0.0
    %993 = vmatpush1.msra.mxu0 %v176
    %994 = vmatprep.subr.mxu0 0.0
    %995 = vmatpush1.msra.mxu0 %v177
    %996 = vmatprep.subr.mxu0 0.0
    %997 = vmatpush1.msra.mxu0 %v178
    %998 = vmatprep.subr.mxu0 0.0
    %999 = vmatpush1.msra.mxu0 %v179
    %1000 = vmatprep.subr.mxu0 0.0
    %1001 = vmatpush1.msra.mxu0 %v180
    %1002 = vmatprep.subr.mxu0 0.0
    %1003 = vmatpush1.msra.mxu0 %v181
    %1004 = vmatprep.subr.mxu0 0.0
    %1005 = vmatpush1.msra.mxu0 %v182
    %1006 = vmatprep.subr.mxu0 0.0
    %1007 = vmatpush1.msra.mxu0 0.0
    %1008 = vmatprep.subr.mxu0 0.0
    %1009 = vmatpush1.msra.mxu0 0.0
    %1010 = vmatprep.subr.mxu0 0.0
    %1011 = vmatpush1.msra.mxu0 0.0
    %1012 = vmatprep.subr.mxu0 0.0
    %1013 = vmatpush1.msra.mxu0 0.0
    %1014 = vmatprep.subr.mxu0 0.0
    %1015 = vmatpush1.msra.mxu0 0.0
    %1016 = vmatprep.subr.mxu0 0.0
    %1017 = vmatpush1.msra.mxu0 0.0
    %1018 = vmatprep.subr.mxu0 0.0
    %1019 = vmatpush1.msra.mxu0 0.0
    %1020 = vmatprep.subr.mxu0 0.0
    %1021 = vmatpush1.msra.mxu0 0.0
    %1022 = vmatprep.subr.mxu0 0.0
    %1023 = vmatpush1.msra.mxu0 0.0
    %1024 = vmatprep.subr.mxu0 0.0
    %1025 = vmatpush1.msra.mxu0 0.0
    %1026 = vmatprep.subr.mxu0 0.0
    %1027 = vmatpush1.msra.mxu0 0.0
    %1028 = vmatprep.subr.mxu0 0.0
    %1029 = vmatpush1.msra.mxu0 0.0
    %1030 = vmatprep.subr.mxu0 0.0
    %1031 = vmatpush1.msra.mxu0 0.0
    %1032 = vmatprep.subr.mxu0 0.0
    %1033 = vmatpush1.msra.mxu0 0.0
    %1034 = vmatprep.subr.mxu0 0.0
    %1035 = vmatpush1.msra.mxu0 0.0
    %1036 = vmatprep.subr.mxu0 0.0
    %1037 = vmatpush1.msra.mxu0 0.0
    %1038 = vmatprep.mubr.f32.mxu0 0.0
    %1039 = vmatmul.mubr.f32.gmra.mrb[0].mxu0 %v969
    %v1040 = vpop.f32.mrb[0].mxu0
    %v1041 = vadd.f32 0.0, %v1040
    %v1042 = vpop.f32.mrb[0].mxu0
    %1043 = vmatprep.mubr.f32.mxu0 0.0
    %1044 = vmatmul.mubr.f32.gmra.mrb[0].mxu0 %v970
    %v1045 = vpop.f32.mrb[0].mxu0
    %v1046 = vadd.f32 0.0, %v1045
    %v1047 = vpop.f32.mrb[0].mxu0
    %1048 = vmatprep.mubr.f32.mxu0 0.0
    %1049 = vmatmul.mubr.f32.gmra.mrb[0].mxu0 %v971
    %v1050 = vpop.f32.mrb[0].mxu0
    %v1051 = vadd.f32 0.0, %v1050
    %v1052 = vpop.f32.mrb[0].mxu0
    %1053 = vmatprep.mubr.f32.mxu0 0.0
    %1054 = vmatmul.mubr.f32.gmra.mrb[0].mxu0 %v972
    %v1055 = vpop.f32.mrb[0].mxu0
    %v1056 = vadd.f32 0.0, %v1055
    %v1057 = vpop.f32.mrb[0].mxu0
    %1058 = vmatprep.mubr.f32.mxu0 0.0
    %1059 = vmatmul.mubr.f32.gmra.mrb[0].mxu0 %v973
    %v1060 = vpop.f32.mrb[0].mxu0
    %v1061 = vadd.f32 0.0, %v1060
    %v1062 = vpop.f32.mrb[0].mxu0
    %1063 = vdwg.mxu0
    %1064 = vst [vmem:[#allocation4] sm:$0xff] %v1041
    %1065 = vst [vmem:[#allocation4 + $0x8] sm:$0xff] %v1046
    %1066 = vst [vmem:[#allocation4 + $0x10] sm:$0xff] %v1051
    %1067 = vst [vmem:[#allocation4 + $0x18] sm:$0xff] %v1056
    %1068 = vst [vmem:[#allocation4 + $0x20] sm:$0xff] %v1061
    %1069 = vmatprep.subr.mxu0 0.0
    %1070 = vmatpush1.msra.mxu0 %v215
    %1071 = vmatprep.subr.mxu0 0.0
    %1072 = vmatpush1.msra.mxu0 %v216
    %1073 = vmatprep.subr.mxu0 0.0
    %1074 = vmatpush1.msra.mxu0 %v217
    %1075 = vmatprep.subr.mxu0 0.0
    %1076 = vmatpush1.msra.mxu0 %v218
    %1077 = vmatprep.subr.mxu0 0.0
    %1078 = vmatpush1.msra.mxu0 %v219
    %1079 = vmatprep.subr.mxu0 0.0
    %1080 = vmatpush1.msra.mxu0 %v220
    %1081 = vmatprep.subr.mxu0 0.0
    %1082 = vmatpush1.msra.mxu0 %v221
    %1083 = vmatprep.subr.mxu0 0.0
    %1084 = vmatpush1.msra.mxu0 %v222
    %1085 = vmatprep.subr.mxu0 0.0
    %1086 = vmatpush1.msra.mxu0 %v223
    %1087 = vmatprep.subr.mxu0 0.0
    %1088 = vmatpush1.msra.mxu0 %v224
    %1089 = vmatprep.subr.mxu0 0.0
    %1090 = vmatpush1.msra.mxu0 %v225
    %1091 = vmatprep.subr.mxu0 0.0
    %1092 = vmatpush1.msra.mxu0 %v226
    %1093 = vmatprep.subr.mxu0 0.0
    %1094 = vmatpush1.msra.mxu0 %v227
    %1095 = vmatprep.subr.mxu0 0.0
    %1096 = vmatpush1.msra.mxu0 %v228
    %1097 = vmatprep.subr.mxu0 0.0
    %1098 = vmatpush1.msra.mxu0 %v229
    %1099 = vmatprep.subr.mxu0 0.0
    %1100 = vmatpush1.msra.mxu0 %v230
    %1101 = vmatprep.subr.mxu0 0.0
    %1102 = vmatpush1.msra.mxu0 0.0
    %1103 = vmatprep.subr.mxu0 0.0
    %1104 = vmatpush1.msra.mxu0 0.0
    %1105 = vmatprep.subr.mxu0 0.0
    %1106 = vmatpush1.msra.mxu0 0.0
    %1107 = vmatprep.subr.mxu0 0.0
    %1108 = vmatpush1.msra.mxu0 0.0
    %1109 = vmatprep.subr.mxu0 0.0
    %1110 = vmatpush1.msra.mxu0 0.0
    %1111 = vmatprep.subr.mxu0 0.0
    %1112 = vmatpush1.msra.mxu0 0.0
    %1113 = vmatprep.subr.mxu0 0.0
    %1114 = vmatpush1.msra.mxu0 0.0
    %1115 = vmatprep.subr.mxu0 0.0
    %1116 = vmatpush1.msra.mxu0 0.0
    %1117 = vmatprep.subr.mxu0 0.0
    %1118 = vmatpush1.msra.mxu0 0.0
    %1119 = vmatprep.subr.mxu0 0.0
    %1120 = vmatpush1.msra.mxu0 0.0
    %1121 = vmatprep.subr.mxu0 0.0
    %1122 = vmatpush1.msra.mxu0 0.0
    %1123 = vmatprep.subr.mxu0 0.0
    %1124 = vmatpush1.msra.mxu0 0.0
    %1125 = vmatprep.subr.mxu0 0.0
    %1126 = vmatpush1.msra.mxu0 0.0
    %1127 = vmatprep.subr.mxu0 0.0
    %1128 = vmatpush1.msra.mxu0 0.0
    %1129 = vmatprep.subr.mxu0 0.0
    %1130 = vmatpush1.msra.mxu0 0.0
    %1131 = vmatprep.subr.mxu0 0.0
    %1132 = vmatpush1.msra.mxu0 0.0
    %1133 = vmatprep.mubr.f32.mxu0 0.0
    %1134 = vmatmul.mubr.f32.gmra.mrb[0].mxu0 %v969
    %v1135 = vpop.f32.mrb[0].mxu0
    %v1136 = vadd.f32 0.0, %v1135
    %v1137 = vpop.f32.mrb[0].mxu0
    %1138 = vmatprep.mubr.f32.mxu0 0.0
    %1139 = vmatmul.mubr.f32.gmra.mrb[0].mxu0 %v970
    %v1140 = vpop.f32.mrb[0].mxu0
    %v1141 = vadd.f32 0.0, %v1140
    %v1142 = vpop.f32.mrb[0].mxu0
    %1143 = vmatprep.mubr.f32.mxu0 0.0
    %1144 = vmatmul.mubr.f32.gmra.mrb[0].mxu0 %v971
    %v1145 = vpop.f32.mrb[0].mxu0
    %v1146 = vadd.f32 0.0, %v1145
    %v1147 = vpop.f32.mrb[0].mxu0
    %1148 = vmatprep.mubr.f32.mxu0 0.0
    %1149 = vmatmul.mubr.f32.gmra.mrb[0].mxu0 %v972
    %v1150 = vpop.f32.mrb[0].mxu0
    %v1151 = vadd.f32 0.0, %v1150
    %v1152 = vpop.f32.mrb[0].mxu0
    %1153 = vmatprep.mubr.f32.mxu0 0.0
    %1154 = vmatmul.mubr.f32.gmra.mrb[0].mxu0 %v973
    %v1155 = vpop.f32.mrb[0].mxu0
    %v1156 = vadd.f32 0.0, %v1155
    %v1157 = vpop.f32.mrb[0].mxu0
    %1158 = vdwg.mxu0
    %1159 = vst [vmem:[#allocation4 + $0x28] sm:$0xff] %v1136
    %1160 = vst [vmem:[#allocation4 + $0x30] sm:$0xff] %v1141
    %1161 = vst [vmem:[#allocation4 + $0x38] sm:$0xff] %v1146
    %1162 = vst [vmem:[#allocation4 + $0x40] sm:$0xff] %v1151
    %1163 = vst [vmem:[#allocation4 + $0x48] sm:$0xff] %v1156
    %1164 = vst [vmem:[#allocation4 + $0x50] sm:$0xff] %v969
    %1165 = vst [vmem:[#allocation4 + $0x58] sm:$0xff] %v970
    %1166 = vst [vmem:[#allocation4 + $0x60] sm:$0xff] %v971
    %1167 = vst [vmem:[#allocation4 + $0x68] sm:$0xff] %v972
    %1168 = vst [vmem:[#allocation4 + $0x70] sm:$0xff] %v973
    %1169 = vmatprep.subr.mxu0 0.0
    %1170 = vmatpush1.msra.mxu0 %v359
    %1171 = vmatprep.subr.mxu0 0.0
    %1172 = vmatpush1.msra.mxu0 %v360
    %1173 = vmatprep.subr.mxu0 0.0
    %1174 = vmatpush1.msra.mxu0 %v361
    %1175 = vmatprep.subr.mxu0 0.0
    %1176 = vmatpush1.msra.mxu0 %v362
    %1177 = vmatprep.subr.mxu0 0.0
    %1178 = vmatpush1.msra.mxu0 %v363
    %1179 = vmatprep.subr.mxu0 0.0
    %1180 = vmatpush1.msra.mxu0 %v364
    %1181 = vmatprep.subr.mxu0 0.0
    %1182 = vmatpush1.msra.mxu0 %v365
    %1183 = vmatprep.subr.mxu0 0.0
    %1184 = vmatpush1.msra.mxu0 %v366
    %1185 = vmatprep.subr.mxu0 0.0
    %1186 = vmatpush1.msra.mxu0 %v367
    %1187 = vmatprep.subr.mxu0 0.0
    %1188 = vmatpush1.msra.mxu0 %v368
    %1189 = vmatprep.subr.mxu0 0.0
    %1190 = vmatpush1.msra.mxu0 %v369
    %1191 = vmatprep.subr.mxu0 0.0
    %1192 = vmatpush1.msra.mxu0 %v370
    %1193 = vmatprep.subr.mxu0 0.0
    %1194 = vmatpush1.msra.mxu0 %v371
    %1195 = vmatprep.subr.mxu0 0.0
    %1196 = vmatpush1.msra.mxu0 %v372
    %1197 = vmatprep.subr.mxu0 0.0
    %1198 = vmatpush1.msra.mxu0 %v373
    %1199 = vmatprep.subr.mxu0 0.0
    %1200 = vmatpush1.msra.mxu0 %v374
    %1201 = vmatprep.subr.mxu0 0.0
    %1202 = vmatpush1.msra.mxu0 0.0
    %1203 = vmatprep.subr.mxu0 0.0
    %1204 = vmatpush1.msra.mxu0 0.0
    %1205 = vmatprep.subr.mxu0 0.0
    %1206 = vmatpush1.msra.mxu0 0.0
    %1207 = vmatprep.subr.mxu0 0.0
    %1208 = vmatpush1.msra.mxu0 0.0
    %1209 = vmatprep.subr.mxu0 0.0
    %1210 = vmatpush1.msra.mxu0 0.0
    %1211 = vmatprep.subr.mxu0 0.0
    %1212 = vmatpush1.msra.mxu0 0.0
    %1213 = vmatprep.subr.mxu0 0.0
    %1214 = vmatpush1.msra.mxu0 0.0
    %1215 = vmatprep.subr.mxu0 0.0
    %1216 = vmatpush1.msra.mxu0 0.0
    %1217 = vmatprep.subr.mxu0 0.0
    %1218 = vmatpush1.msra.mxu0 0.0
    %1219 = vmatprep.subr.mxu0 0.0
    %1220 = vmatpush1.msra.mxu0 0.0
    %1221 = vmatprep.subr.mxu0 0.0
    %1222 = vmatpush1.msra.mxu0 0.0
    %1223 = vmatprep.subr.mxu0 0.0
    %1224 = vmatpush1.msra.mxu0 0.0
    %1225 = vmatprep.subr.mxu0 0.0
    %1226 = vmatpush1.msra.mxu0 0.0
    %1227 = vmatprep.subr.mxu0 0.0
    %1228 = vmatpush1.msra.mxu0 0.0
    %1229 = vmatprep.subr.mxu0 0.0
    %1230 = vmatpush1.msra.mxu0 0.0
    %1231 = vmatprep.subr.mxu0 0.0
    %1232 = vmatpush1.msra.mxu0 0.0
    %1233 = vmatprep.mubr.f32.mxu0 0.0
    %1234 = vmatmul.mubr.f32.gmra.mrb[0].mxu0 %v969
    %v1235 = vpop.f32.mrb[0].mxu0
    %v1236 = vadd.f32 0.0, %v1235
    %v1237 = vpop.f32.mrb[0].mxu0
    %1238 = vmatprep.mubr.f32.mxu0 0.0
    %1239 = vmatmul.mubr.f32.gmra.mrb[0].mxu0 %v970
    %v1240 = vpop.f32.mrb[0].mxu0
    %v1241 = vadd.f32 0.0, %v1240
    %v1242 = vpop.f32.mrb[0].mxu0
    %1243 = vmatprep.mubr.f32.mxu0 0.0
    %1244 = vmatmul.mubr.f32.gmra.mrb[0].mxu0 %v971
    %v1245 = vpop.f32.mrb[0].mxu0
    %v1246 = vadd.f32 0.0, %v1245
    %v1247 = vpop.f32.mrb[0].mxu0
    %1248 = vmatprep.mubr.f32.mxu0 0.0
    %1249 = vmatmul.mubr.f32.gmra.mrb[0].mxu0 %v972
    %v1250 = vpop.f32.mrb[0].mxu0
    %v1251 = vadd.f32 0.0, %v1250
    %v1252 = vpop.f32.mrb[0].mxu0
    %1253 = vmatprep.mubr.f32.mxu0 0.0
    %1254 = vmatmul.mubr.f32.gmra.mrb[0].mxu0 %v973
    %v1255 = vpop.f32.mrb[0].mxu0
    %v1256 = vadd.f32 0.0, %v1255
    %v1257 = vpop.f32.mrb[0].mxu0
    %1258 = vdwg.mxu0
    %1259 = vst [vmem:[#allocation4 + $0x78] sm:$0xff] %v1236
    %1260 = vst [vmem:[#allocation4 + $0x80] sm:$0xff] %v1241
    %1261 = vst [vmem:[#allocation4 + $0x88] sm:$0xff] %v1246
    %1262 = vst [vmem:[#allocation4 + $0x90] sm:$0xff] %v1251
    %1263 = vst [vmem:[#allocation4 + $0x98] sm:$0xff] %v1256
    %1264 = vmatprep.subr.mxu0 0.0
    %1265 = vmatpush1.msra.mxu0 %v407
    %1266 = vmatprep.subr.mxu0 0.0
    %1267 = vmatpush1.msra.mxu0 %v408
    %1268 = vmatprep.subr.mxu0 0.0
    %1269 = vmatpush1.msra.mxu0 %v409
    %1270 = vmatprep.subr.mxu0 0.0
    %1271 = vmatpush1.msra.mxu0 %v410
    %1272 = vmatprep.subr.mxu0 0.0
    %1273 = vmatpush1.msra.mxu0 %v411
    %1274 = vmatprep.subr.mxu0 0.0
    %1275 = vmatpush1.msra.mxu0 %v412
    %1276 = vmatprep.subr.mxu0 0.0
    %1277 = vmatpush1.msra.mxu0 %v413
    %1278 = vmatprep.subr.mxu0 0.0
    %1279 = vmatpush1.msra.mxu0 %v414
    %1280 = vmatprep.subr.mxu0 0.0
    %1281 = vmatpush1.msra.mxu0 %v415
    %1282 = vmatprep.subr.mxu0 0.0
    %1283 = vmatpush1.msra.mxu0 %v416
    %1284 = vmatprep.subr.mxu0 0.0
    %1285 = vmatpush1.msra.mxu0 %v417
    %1286 = vmatprep.subr.mxu0 0.0
    %1287 = vmatpush1.msra.mxu0 %v418
    %1288 = vmatprep.subr.mxu0 0.0
    %1289 = vmatpush1.msra.mxu0 %v419
    %1290 = vmatprep.subr.mxu0 0.0
    %1291 = vmatpush1.msra.mxu0 %v420
    %1292 = vmatprep.subr.mxu0 0.0
    %1293 = vmatpush1.msra.mxu0 %v421
    %1294 = vmatprep.subr.mxu0 0.0
    %1295 = vmatpush1.msra.mxu0 %v422
    %1296 = vmatprep.subr.mxu0 0.0
    %1297 = vmatpush1.msra.mxu0 0.0
    %1298 = vmatprep.subr.mxu0 0.0
    %1299 = vmatpush1.msra.mxu0 0.0
    %1300 = vmatprep.subr.mxu0 0.0
    %1301 = vmatpush1.msra.mxu0 0.0
    %1302 = vmatprep.subr.mxu0 0.0
    %1303 = vmatpush1.msra.mxu0 0.0
    %1304 = vmatprep.subr.mxu0 0.0
    %1305 = vmatpush1.msra.mxu0 0.0
    %1306 = vmatprep.subr.mxu0 0.0
    %1307 = vmatpush1.msra.mxu0 0.0
    %1308 = vmatprep.subr.mxu0 0.0
    %1309 = vmatpush1.msra.mxu0 0.0
    %1310 = vmatprep.subr.mxu0 0.0
    %1311 = vmatpush1.msra.mxu0 0.0
    %1312 = vmatprep.subr.mxu0 0.0
    %1313 = vmatpush1.msra.mxu0 0.0
    %1314 = vmatprep.subr.mxu0 0.0
    %1315 = vmatpush1.msra.mxu0 0.0
    %1316 = vmatprep.subr.mxu0 0.0
    %1317 = vmatpush1.msra.mxu0 0.0
    %1318 = vmatprep.subr.mxu0 0.0
    %1319 = vmatpush1.msra.mxu0 0.0
    %1320 = vmatprep.subr.mxu0 0.0
    %1321 = vmatpush1.msra.mxu0 0.0
    %1322 = vmatprep.subr.mxu0 0.0
    %1323 = vmatpush1.msra.mxu0 0.0
    %1324 = vmatprep.subr.mxu0 0.0
    %1325 = vmatpush1.msra.mxu0 0.0
    %1326 = vmatprep.subr.mxu0 0.0
    %1327 = vmatpush1.msra.mxu0 0.0
    %1328 = vmatprep.mubr.f32.mxu0 0.0
    %1329 = vmatmul.mubr.f32.gmra.mrb[0].mxu0 %v969
    %v1330 = vpop.f32.mrb[0].mxu0
    %v1331 = vadd.f32 0.0, %v1330
    %v1332 = vpop.f32.mrb[0].mxu0
    %1333 = vmatprep.mubr.f32.mxu0 0.0
    %1334 = vmatmul.mubr.f32.gmra.mrb[0].mxu0 %v970
    %v1335 = vpop.f32.mrb[0].mxu0
    %v1336 = vadd.f32 0.0, %v1335
    %v1337 = vpop.f32.mrb[0].mxu0
    %1338 = vmatprep.mubr.f32.mxu0 0.0
    %1339 = vmatmul.mubr.f32.gmra.mrb[0].mxu0 %v971
    %v1340 = vpop.f32.mrb[0].mxu0
    %v1341 = vadd.f32 0.0, %v1340
    %v1342 = vpop.f32.mrb[0].mxu0
    %1343 = vmatprep.mubr.f32.mxu0 0.0
    %1344 = vmatmul.mubr.f32.gmra.mrb[0].mxu0 %v972
    %v1345 = vpop.f32.mrb[0].mxu0
    %v1346 = vadd.f32 0.0, %v1345
    %v1347 = vpop.f32.mrb[0].mxu0
    %1348 = vmatprep.mubr.f32.mxu0 0.0
    %1349 = vmatmul.mubr.f32.gmra.mrb[0].mxu0 %v973
    %v1350 = vpop.f32.mrb[0].mxu0
    %v1351 = vadd.f32 0.0, %v1350
    %v1352 = vpop.f32.mrb[0].mxu0
    %1353 = vdwg.mxu0
    %1354 = vst [vmem:[#allocation4 + $0xa0] sm:$0xff] %v1331
    %1355 = vst [vmem:[#allocation4 + $0xa8] sm:$0xff] %v1336
    %1356 = vst [vmem:[#allocation4 + $0xb0] sm:$0xff] %v1341
    %1357 = vst [vmem:[#allocation4 + $0xb8] sm:$0xff] %v1346
    %1358 = vst [vmem:[#allocation4 + $0xc0] sm:$0xff] %v1351
    %v1359 = vld [vmem:[#allocation4] sm:$0xff]
    %v1360 = vld [vmem:[#allocation4 + $0x8] sm:$0xff]
    %v1361 = vld [vmem:[#allocation4 + $0x10] sm:$0xff]
    %v1362 = vld [vmem:[#allocation4 + $0x18] sm:$0xff]
    %v1363 = vld [vmem:[#allocation4 + $0x20] sm:$0xff]
    %v1364 = vld [vmem:[#allocation4 + $0x28] sm:$0xff]
    %v1365 = vld [vmem:[#allocation4 + $0x30] sm:$0xff]
    %v1366 = vld [vmem:[#allocation4 + $0x38] sm:$0xff]
    %v1367 = vld [vmem:[#allocation4 + $0x40] sm:$0xff]
    %v1368 = vld [vmem:[#allocation4 + $0x48] sm:$0xff]
    %v1369 = vld [vmem:[#allocation4 + $0x50] sm:$0xff]
    %v1370 = vld [vmem:[#allocation4 + $0x58] sm:$0xff]
    %v1371 = vld [vmem:[#allocation4 + $0x60] sm:$0xff]
    %v1372 = vld [vmem:[#allocation4 + $0x68] sm:$0xff]
    %v1373 = vld [vmem:[#allocation4 + $0x70] sm:$0xff]
    %v1374 = vld [vmem:[#allocation4 + $0x78] sm:$0xff]
    %v1375 = vld [vmem:[#allocation4 + $0x80] sm:$0xff]
    %v1376 = vld [vmem:[#allocation4 + $0x88] sm:$0xff]
    %v1377 = vld [vmem:[#allocation4 + $0x90] sm:$0xff]
    %v1378 = vld [vmem:[#allocation4 + $0x98] sm:$0xff]
    %v1379 = vld [vmem:[#allocation4 + $0xa0] sm:$0xff]
    %v1380 = vld [vmem:[#allocation4 + $0xa8] sm:$0xff]
    %v1381 = vld [vmem:[#allocation4 + $0xb0] sm:$0xff]
    %v1382 = vld [vmem:[#allocation4 + $0xb8] sm:$0xff]
    %v1383 = vld [vmem:[#allocation4 + $0xc0] sm:$0xff]
    %1385 = vset.pattern.permute.xlu0 0
    %1386 = vperm.xlu0 %1385, %v959
    %v1387 = vpop.permute.xlu0 %1386
    %1390 = vset.pattern.permute.xlu0 0
    %1391 = vperm.xlu0 %1390, %v960
    %v1392 = vpop.permute.xlu0 %1391
    %1395 = vset.pattern.permute.xlu0 0
    %1396 = vperm.xlu0 %1395, %v961
    %v1397 = vpop.permute.xlu0 %1396
    %1400 = vset.pattern.permute.xlu0 0
    %1401 = vperm.xlu0 %1400, %v962
    %v1402 = vpop.permute.xlu0 %1401
    %1405 = vset.pattern.permute.xlu0 0
    %1406 = vperm.xlu0 %1405, %v963
    %v1407 = vpop.permute.xlu0 %1406
    %1410 = vset.pattern.permute.xlu0 0
    %1411 = vperm.xlu0 %1410, %v964
    %v1412 = vpop.permute.xlu0 %1411
    %1415 = vset.pattern.permute.xlu0 0
    %1416 = vperm.xlu0 %1415, %v965
    %v1417 = vpop.permute.xlu0 %1416
    %1420 = vset.pattern.permute.xlu0 0
    %1421 = vperm.xlu0 %1420, %v966
    %v1422 = vpop.permute.xlu0 %1421
    %1425 = vset.pattern.permute.xlu0 0
    %1426 = vperm.xlu0 %1425, %v967
    %v1427 = vpop.permute.xlu0 %1426
    %1430 = vset.pattern.permute.xlu0 0
    %1431 = vperm.xlu0 %1430, %v968
    %v1432 = vpop.permute.xlu0 %1431
    %vm1434 = vcmask 588800
    %v1436 = vsel %vm1434, %v940, 0
    %v1439 = vsel %vm1434, %v942, 0
    %v1442 = vsel %vm1434, %v944, 0
    %v1445 = vsel %vm1434, %v946, 0
    %v1448 = vsel %vm1434, %v948, 0
    %v1451 = vsel %vm1434, %v950, 0
    %v1454 = vsel %vm1434, %v952, 0
    %v1457 = vsel %vm1434, %v954, 0
    %v1460 = vsel %vm1434, %v956, 0
    %v1463 = vsel %vm1434, %v958, 0
    %1465 = vmatprep.subr.mxu0 0.0
    %1466 = vmatpush1.msra.mxu0 %v1359
    %1467 = vmatprep.subr.mxu0 0.0
    %1468 = vmatpush1.msra.mxu0 %v1360
    %1469 = vmatprep.subr.mxu0 0.0
    %1470 = vmatpush1.msra.mxu0 %v1361
    %1471 = vmatprep.subr.mxu0 0.0
    %1472 = vmatpush1.msra.mxu0 %v1362
    %1473 = vmatprep.subr.mxu0 0.0
    %1474 = vmatpush1.msra.mxu0 %v1363
    %1475 = vmatprep.subr.mxu0 0.0
    %1476 = vmatpush1.msra.mxu0 %v1364
    %1477 = vmatprep.subr.mxu0 0.0
    %1478 = vmatpush1.msra.mxu0 %v1365
    %1479 = vmatprep.subr.mxu0 0.0
    %1480 = vmatpush1.msra.mxu0 %v1366
    %1481 = vmatprep.subr.mxu0 0.0
    %1482 = vmatpush1.msra.mxu0 %v1367
    %1483 = vmatprep.subr.mxu0 0.0
    %1484 = vmatpush1.msra.mxu0 %v1368
    %1485 = vmatprep.subr.mxu0 0.0
    %1486 = vmatpush1.msra.mxu0 %v1369
    %1487 = vmatprep.subr.mxu0 0.0
    %1488 = vmatpush1.msra.mxu0 %v1370
    %1489 = vmatprep.subr.mxu0 0.0
    %1490 = vmatpush1.msra.mxu0 %v1371
    %1491 = vmatprep.subr.mxu0 0.0
    %1492 = vmatpush1.msra.mxu0 %v1372
    %1493 = vmatprep.subr.mxu0 0.0
    %1494 = vmatpush1.msra.mxu0 %v1373
    %1495 = vmatprep.subr.mxu0 0.0
    %1496 = vmatpush1.msra.mxu0 %v1374
    %1497 = vmatprep.subr.mxu0 0.0
    %1498 = vmatpush1.msra.mxu0 %v1375
    %1499 = vmatprep.subr.mxu0 0.0
    %1500 = vmatpush1.msra.mxu0 %v1376
    %1501 = vmatprep.subr.mxu0 0.0
    %1502 = vmatpush1.msra.mxu0 %v1377
    %1503 = vmatprep.subr.mxu0 0.0
    %1504 = vmatpush1.msra.mxu0 %v1378
    %1505 = vmatprep.subr.mxu0 0.0
    %1506 = vmatpush1.msra.mxu0 %v1379
    %1507 = vmatprep.subr.mxu0 0.0
    %1508 = vmatpush1.msra.mxu0 %v1380
    %1509 = vmatprep.subr.mxu0 0.0
    %1510 = vmatpush1.msra.mxu0 %v1381
    %1511 = vmatprep.subr.mxu0 0.0
    %1512 = vmatpush1.msra.mxu0 %v1382
    %1513 = vmatprep.subr.mxu0 0.0
    %1514 = vmatpush1.msra.mxu0 %v1383
    %1515 = vmatprep.subr.mxu0 0.0
    %1516 = vmatpush1.msra.mxu0 0.0
    %1517 = vmatprep.subr.mxu0 0.0
    %1518 = vmatpush1.msra.mxu0 0.0
    %1519 = vmatprep.subr.mxu0 0.0
    %1520 = vmatpush1.msra.mxu0 0.0
    %1521 = vmatprep.subr.mxu0 0.0
    %1522 = vmatpush1.msra.mxu0 0.0
    %1523 = vmatprep.subr.mxu0 0.0
    %1524 = vmatpush1.msra.mxu0 0.0
    %1525 = vmatprep.subr.mxu0 0.0
    %1526 = vmatpush1.msra.mxu0 0.0
    %1527 = vmatprep.subr.mxu0 0.0
    %1528 = vmatpush1.msra.mxu0 0.0
    %1529 = vmatprep.mubr.f32.mxu0 %v1436
    %1530 = vmatmul.mubr.f32.gmra.mrb[0].mxu0 %v939
    %v1531 = vpop.f32.mrb[0].mxu0
    %v1532 = vadd.f32 %v1387, %v1531
    %v1533 = vpop.f32.mrb[0].mxu0
    %1534 = vmatprep.mubr.f32.mxu0 %v1439
    %1535 = vmatmul.mubr.f32.gmra.mrb[0].mxu0 %v941
    %v1536 = vpop.f32.mrb[0].mxu0
    %v1537 = vadd.f32 %v1392, %v1536
    %v1538 = vpop.f32.mrb[0].mxu0
    %1539 = vmatprep.mubr.f32.mxu0 %v1442
    %1540 = vmatmul.mubr.f32.gmra.mrb[0].mxu0 %v943
    %v1541 = vpop.f32.mrb[0].mxu0
    %v1542 = vadd.f32 %v1397, %v1541
    %v1543 = vpop.f32.mrb[0].mxu0
    %1544 = vmatprep.mubr.f32.mxu0 %v1445
    %1545 = vmatmul.mubr.f32.gmra.mrb[0].mxu0 %v945
    %v1546 = vpop.f32.mrb[0].mxu0
    %v1547 = vadd.f32 %v1402, %v1546
    %v1548 = vpop.f32.mrb[0].mxu0
    %1549 = vmatprep.mubr.f32.mxu0 %v1448
    %1550 = vmatmul.mubr.f32.gmra.mrb[0].mxu0 %v947
    %v1551 = vpop.f32.mrb[0].mxu0
    %v1552 = vadd.f32 %v1407, %v1551
    %v1553 = vpop.f32.mrb[0].mxu0
    %1554 = vmatprep.mubr.f32.mxu0 %v1451
    %1555 = vmatmul.mubr.f32.gmra.mrb[0].mxu0 %v949
    %v1556 = vpop.f32.mrb[0].mxu0
    %v1557 = vadd.f32 %v1412, %v1556
    %v1558 = vpop.f32.mrb[0].mxu0
    %1559 = vmatprep.mubr.f32.mxu0 %v1454
    %1560 = vmatmul.mubr.f32.gmra.mrb[0].mxu0 %v951
    %v1561 = vpop.f32.mrb[0].mxu0
    %v1562 = vadd.f32 %v1417, %v1561
    %v1563 = vpop.f32.mrb[0].mxu0
    %1564 = vmatprep.mubr.f32.mxu0 %v1457
    %1565 = vmatmul.mubr.f32.gmra.mrb[0].mxu0 %v953
    %v1566 = vpop.f32.mrb[0].mxu0
    %v1567 = vadd.f32 %v1422, %v1566
    %v1568 = vpop.f32.mrb[0].mxu0
    %1569 = vmatprep.mubr.f32.mxu0 %v1460
    %1570 = vmatmul.mubr.f32.gmra.mrb[0].mxu0 %v955
    %v1571 = vpop.f32.mrb[0].mxu0
    %v1572 = vadd.f32 %v1427, %v1571
    %v1573 = vpop.f32.mrb[0].mxu0
    %1574 = vmatprep.mubr.f32.mxu0 %v1463
    %1575 = vmatmul.mubr.f32.gmra.mrb[0].mxu0 %v957
    %v1576 = vpop.f32.mrb[0].mxu0
    %v1577 = vadd.f32 %v1432, %v1576
    %v1578 = vpop.f32.mrb[0].mxu0
    %1579 = vdwg.mxu0
    %v1580 = vmax.f32 %v1532, 0.0
    %v1581 = vmax.f32 %v1537, 0.0
    %v1582 = vmax.f32 %v1542, 0.0
    %v1583 = vmax.f32 %v1547, 0.0
    %v1584 = vmax.f32 %v1552, 0.0
    %v1585 = vmax.f32 %v1557, 0.0
    %v1586 = vmax.f32 %v1562, 0.0
    %v1587 = vmax.f32 %v1567, 0.0
    %v1588 = vmax.f32 %v1572, 0.0
    %v1589 = vmax.f32 %v1577, 0.0
    %v1590 = vld [vmem:[%s7] sm:$0xff]
    %v1591 = vld [vmem:[%s7 + $0x8] sm:$0xf]
    %v1592 = vld [vmem:[%s8] sm:$0xff]
    %v1593 = vld [vmem:[%s8 + $0x8] sm:$0xf]
    %1595 = vset.pattern.permute.xlu0 0
    %1596 = vperm.xlu0 %1595, %v1592
    %v1597 = vpop.permute.xlu0 %1596
    %1600 = vset.pattern.permute.xlu0 0
    %1601 = vperm.xlu0 %1600, %v1593
    %v1602 = vpop.permute.xlu0 %1601
    %vm1604 = vcmask 654336
    %v1606 = vsel %vm1604, %v1590, 0
    %v1609 = vsel %vm1604, %v1591, 0
    %1611 = vmatprep.subr.mxu0 0.0
    %1612 = vmatpush1.msra.mxu0 %v1580
    %1613 = vmatprep.subr.mxu0 0.0
    %1614 = vmatpush1.msra.mxu0 %v1581
    %1615 = vmatprep.subr.mxu0 0.0
    %1616 = vmatpush1.msra.mxu0 %v1582
    %1617 = vmatprep.subr.mxu0 0.0
    %1618 = vmatpush1.msra.mxu0 %v1583
    %1619 = vmatprep.subr.mxu0 0.0
    %1620 = vmatpush1.msra.mxu0 %v1584
    %1621 = vmatprep.subr.mxu0 0.0
    %1622 = vmatpush1.msra.mxu0 %v1585
    %1623 = vmatprep.subr.mxu0 0.0
    %1624 = vmatpush1.msra.mxu0 %v1586
    %1625 = vmatprep.subr.mxu0 0.0
    %1626 = vmatpush1.msra.mxu0 %v1587
    %1627 = vmatprep.subr.mxu0 0.0
    %1628 = vmatpush1.msra.mxu0 %v1588
    %1629 = vmatprep.subr.mxu0 0.0
    %1630 = vmatpush1.msra.mxu0 %v1589
    %1631 = vmatprep.subr.mxu0 0.0
    %1632 = vmatpush1.msra.mxu0 0.0
    %1633 = vmatprep.subr.mxu0 0.0
    %1634 = vmatpush1.msra.mxu0 0.0
    %1635 = vmatprep.subr.mxu0 0.0
    %1636 = vmatpush1.msra.mxu0 0.0
    %1637 = vmatprep.subr.mxu0 0.0
    %1638 = vmatpush1.msra.mxu0 0.0
    %1639 = vmatprep.subr.mxu0 0.0
    %1640 = vmatpush1.msra.mxu0 0.0
    %1641 = vmatprep.subr.mxu0 0.0
    %1642 = vmatpush1.msra.mxu0 0.0
    %1643 = vmatprep.subr.mxu0 0.0
    %1644 = vmatpush1.msra.mxu0 0.0
    %1645 = vmatprep.subr.mxu0 0.0
    %1646 = vmatpush1.msra.mxu0 0.0
    %1647 = vmatprep.subr.mxu0 0.0
    %1648 = vmatpush1.msra.mxu0 0.0
    %1649 = vmatprep.subr.mxu0 0.0
    %1650 = vmatpush1.msra.mxu0 0.0
    %1651 = vmatprep.subr.mxu0 0.0
    %1652 = vmatpush1.msra.mxu0 0.0
    %1653 = vmatprep.subr.mxu0 0.0
    %1654 = vmatpush1.msra.mxu0 0.0
    %1655 = vmatprep.subr.mxu0 0.0
    %1656 = vmatpush1.msra.mxu0 0.0
    %1657 = vmatprep.subr.mxu0 0.0
    %1658 = vmatpush1.msra.mxu0 0.0
    %1659 = vmatprep.subr.mxu0 0.0
    %1660 = vmatpush1.msra.mxu0 0.0
    %1661 = vmatprep.subr.mxu0 0.0
    %1662 = vmatpush1.msra.mxu0 0.0
    %1663 = vmatprep.subr.mxu0 0.0
    %1664 = vmatpush1.msra.mxu0 0.0
    %1665 = vmatprep.subr.mxu0 0.0
    %1666 = vmatpush1.msra.mxu0 0.0
    %1667 = vmatprep.subr.mxu0 0.0
    %1668 = vmatpush1.msra.mxu0 0.0
    %1669 = vmatprep.subr.mxu0 0.0
    %1670 = vmatpush1.msra.mxu0 0.0
    %1671 = vmatprep.subr.mxu0 0.0
    %1672 = vmatpush1.msra.mxu0 0.0
    %1673 = vmatprep.subr.mxu0 0.0
    %1674 = vmatpush1.msra.mxu0 0.0
    %1675 = vmatprep.mubr.f32.mxu0 0.0
    %1676 = vmatmul.mubr.f32.gmra.mrb[0].mxu0 %v1606
    %v1677 = vpop.f32.mrb[0].mxu0
    %v1678 = vadd.f32 %v1597, %v1677
    %v1679 = vpop.f32.mrb[0].mxu0
    %1680 = vmatprep.mubr.f32.mxu0 0.0
    %1681 = vmatmul.mubr.f32.gmra.mrb[0].mxu0 %v1609
    %v1682 = vpop.f32.mrb[0].mxu0
    %v1683 = vadd.f32 %v1602, %v1682
    %v1684 = vpop.f32.mrb[0].mxu0
    %1685 = vdwg.mxu0
    %v1686 = vld [vmem:[#allocation13] sm:$0xff]
    %v1687 = vld [vmem:[#allocation13 + $0x8] sm:$0xf]
    %v1688 = vld [vmem:[%s10] sm:$0xff]
    %v1689 = vld [vmem:[%s10 + $0x8] sm:$0xf]
    %1691 = vset.pattern.permute.xlu0 0
    %1692 = vperm.xlu0 %1691, %v1688
    %v1693 = vpop.permute.xlu0 %1692
    %1696 = vset.pattern.permute.xlu0 0
    %1697 = vperm.xlu0 %1696, %v1689
    %v1698 = vpop.permute.xlu0 %1697
    %v1701 = vsel %vm1604, %v1686, 0
    %v1704 = vsel %vm1604, %v1687, 0
    %1706 = vmatprep.subr.mxu0 0.0
    %1707 = vmatpush1.msra.mxu0 %v1580
    %1708 = vmatprep.subr.mxu0 0.0
    %1709 = vmatpush1.msra.mxu0 %v1581
    %1710 = vmatprep.subr.mxu0 0.0
    %1711 = vmatpush1.msra.mxu0 %v1582
    %1712 = vmatprep.subr.mxu0 0.0
    %1713 = vmatpush1.msra.mxu0 %v1583
    %1714 = vmatprep.subr.mxu0 0.0
    %1715 = vmatpush1.msra.mxu0 %v1584
    %1716 = vmatprep.subr.mxu0 0.0
    %1717 = vmatpush1.msra.mxu0 %v1585
    %1718 = vmatprep.subr.mxu0 0.0
    %1719 = vmatpush1.msra.mxu0 %v1586
    %1720 = vmatprep.subr.mxu0 0.0
    %1721 = vmatpush1.msra.mxu0 %v1587
    %1722 = vmatprep.subr.mxu0 0.0
    %1723 = vmatpush1.msra.mxu0 %v1588
    %1724 = vmatprep.subr.mxu0 0.0
    %1725 = vmatpush1.msra.mxu0 %v1589
    %1726 = vmatprep.subr.mxu0 0.0
    %1727 = vmatpush1.msra.mxu0 0.0
    %1728 = vmatprep.subr.mxu0 0.0
    %1729 = vmatpush1.msra.mxu0 0.0
    %1730 = vmatprep.subr.mxu0 0.0
    %1731 = vmatpush1.msra.mxu0 0.0
    %1732 = vmatprep.subr.mxu0 0.0
    %1733 = vmatpush1.msra.mxu0 0.0
    %1734 = vmatprep.subr.mxu0 0.0
    %1735 = vmatpush1.msra.mxu0 0.0
    %1736 = vmatprep.subr.mxu0 0.0
    %1737 = vmatpush1.msra.mxu0 0.0
    %1738 = vmatprep.subr.mxu0 0.0
    %1739 = vmatpush1.msra.mxu0 0.0
    %1740 = vmatprep.subr.mxu0 0.0
    %1741 = vmatpush1.msra.mxu0 0.0
    %1742 = vmatprep.subr.mxu0 0.0
    %1743 = vmatpush1.msra.mxu0 0.0
    %1744 = vmatprep.subr.mxu0 0.0
    %1745 = vmatpush1.msra.mxu0 0.0
    %1746 = vmatprep.subr.mxu0 0.0
    %1747 = vmatpush1.msra.mxu0 0.0
    %1748 = vmatprep.subr.mxu0 0.0
    %1749 = vmatpush1.msra.mxu0 0.0
    %1750 = vmatprep.subr.mxu0 0.0
    %1751 = vmatpush1.msra.mxu0 0.0
    %1752 = vmatprep.subr.mxu0 0.0
    %1753 = vmatpush1.msra.mxu0 0.0
    %1754 = vmatprep.subr.mxu0 0.0
    %1755 = vmatpush1.msra.mxu0 0.0
    %1756 = vmatprep.subr.mxu0 0.0
    %1757 = vmatpush1.msra.mxu0 0.0
    %1758 = vmatprep.subr.mxu0 0.0
    %1759 = vmatpush1.msra.mxu0 0.0
    %1760 = vmatprep.subr.mxu0 0.0
    %1761 = vmatpush1.msra.mxu0 0.0
    %1762 = vmatprep.subr.mxu0 0.0
    %1763 = vmatpush1.msra.mxu0 0.0
    %1764 = vmatprep.subr.mxu0 0.0
    %1765 = vmatpush1.msra.mxu0 0.0
    %1766 = vmatprep.subr.mxu0 0.0
    %1767 = vmatpush1.msra.mxu0 0.0
    %1768 = vmatprep.subr.mxu0 0.0
    %1769 = vmatpush1.msra.mxu0 0.0
    %1770 = vmatprep.mubr.f32.mxu0 0.0
    %1771 = vmatmul.mubr.f32.gmra.mrb[0].mxu0 %v1701
    %v1772 = vpop.f32.mrb[0].mxu0
    %v1773 = vadd.f32 %v1693, %v1772
    %v1774 = vpop.f32.mrb[0].mxu0
    %1775 = vmatprep.mubr.f32.mxu0 0.0
    %1776 = vmatmul.mubr.f32.gmra.mrb[0].mxu0 %v1704
    %v1777 = vpop.f32.mrb[0].mxu0
    %v1778 = vadd.f32 %v1698, %v1777
    %v1779 = vpop.f32.mrb[0].mxu0
    %1780 = vdwg.mxu0
    %v1781 = vld [vmem:[#allocation7 + $0xc] sm:$0xff]
    %v1782 = vld [vmem:[#allocation7 + $0x14] sm:$0xf]
    %v1783 = vld [vmem:[#allocation7] sm:$0xff]
    %v1784 = vld [vmem:[#allocation7 + $0x8] sm:$0xf]
    %1785 = vst [vmem:[#allocation15] sm:$0xff] %v1783
    %1786 = vst [vmem:[#allocation15 + $0x8] sm:$0xf] %v1784
    %v1787 = vmul.f32 %v1678, 1.442695
    %v1788 = vpow.pop %v1787
    %v1789 = vmul.f32 %v1683, 1.442695
    %v1790 = vpow.pop %v1789
    %v1791 = vmul.f32 %v1788, %v1781
    %v1792 = vmul.f32 %v1790, %v1782
    %v1793 = vadd.f32 %v1791, %v1773
    %v1794 = vadd.f32 %v1792, %v1778
    %1795 = vst [vmem:[#allocation15 + $0xc] sm:$0xff] %v1793
    %1796 = vst [vmem:[#allocation15 + $0x14] sm:$0xf] %v1794
    %1797 = vst [vmem:[%s12] sm:$0xff] %v1678
    %1798 = vst [vmem:[%s12 + $0x8] sm:$0xf] %v1683
    %s1799 = sadd.s32 %s423, 1
    %s1800 = sld [smem:[#allocation6 + %s1799]]
    %v1801 = vstv %s1800
    %vm1802 = vcmp.lt.s32.totalorder %v101, %v1801
    %v1803 = vsel %vm1802, 1, 0
    %v1804 = vcvt.s32.f32 %v1803
    %s1805 = scalar_lea.vmem [#allocation7], 24
    %v1806 = vld [vmem:[%s1805] sm:$0xff]
    %v1807 = vld [vmem:[%s1805 + $0x8] sm:$0xf]
    %1808 = vst [vmem:[#allocation2] sm:$0xff] %v1806
    %1809 = vst [vmem:[#allocation2 + $0x8] sm:$0xf] %v1807
    %s1810 = scalar_lea.vmem [#allocation10], 8
    %v1811 = vld [vmem:[%s1810] sm:$0xff]
    %1812 = vst [vmem:[#allocation2 + $0xc] sm:$0xff] %v1811
    %v1813 = vld [vmem:[#allocation2] sm:$0xff]
    %v1814 = vld [vmem:[#allocation2 + $0x8] sm:$0xff]
    %v1815 = vld [vmem:[#allocation2 + $0x10] sm:$0xf]
    %v1816 = vld [vmem:[#allocation12] sm:$0xff]
    %v1817 = vld [vmem:[#allocation12 + $0x8] sm:$0xff]
    %v1818 = vld [vmem:[#allocation12 + $0x10] sm:$0xff]
    %v1819 = vld [vmem:[#allocation12 + $0x18] sm:$0xff]
    %v1820 = vld [vmem:[#allocation12 + $0x20] sm:$0xff]
    %v1821 = vld [vmem:[%s4] sm:$0xff]
    %v1822 = vld [vmem:[%s4 + $0x8] sm:$0xff]
    %v1823 = vld [vmem:[%s4 + $0x10] sm:$0xff]
    %v1824 = vld [vmem:[%s4 + $0x18] sm:$0xff]
    %v1825 = vld [vmem:[%s4 + $0x20] sm:$0xff]
    %v1826 = vmul.f32 %v1813, %v1804
    %v1827 = vmul.f32 %v1814, %v1804
    %v1828 = vmul.f32 %v1815, %v1804
    %1829 = vmatprep.subr.mxu0 0.0
    %1830 = vmatpush1.msra.mxu0 %v215
    %1831 = vmatprep.subr.mxu0 0.0
    %1832 = vmatpush1.msra.mxu0 %v216
    %1833 = vmatprep.subr.mxu0 0.0
    %1834 = vmatpush1.msra.mxu0 %v217
    %1835 = vmatprep.subr.mxu0 0.0
    %1836 = vmatpush1.msra.mxu0 %v218
    %1837 = vmatprep.subr.mxu0 0.0
    %1838 = vmatpush1.msra.mxu0 %v219
    %1839 = vmatprep.subr.mxu0 0.0
    %1840 = vmatpush1.msra.mxu0 %v220
    %1841 = vmatprep.subr.mxu0 0.0
    %1842 = vmatpush1.msra.mxu0 %v221
    %1843 = vmatprep.subr.mxu0 0.0
    %1844 = vmatpush1.msra.mxu0 %v222
    %1845 = vmatprep.subr.mxu0 0.0
    %1846 = vmatpush1.msra.mxu0 %v223
    %1847 = vmatprep.subr.mxu0 0.0
    %1848 = vmatpush1.msra.mxu0 %v224
    %1849 = vmatprep.subr.mxu0 0.0
    %1850 = vmatpush1.msra.mxu0 %v225
    %1851 = vmatprep.subr.mxu0 0.0
    %1852 = vmatpush1.msra.mxu0 %v226
    %1853 = vmatprep.subr.mxu0 0.0
    %1854 = vmatpush1.msra.mxu0 %v227
    %1855 = vmatprep.subr.mxu0 0.0
    %1856 = vmatpush1.msra.mxu0 %v228
    %1857 = vmatprep.subr.mxu0 0.0
    %1858 = vmatpush1.msra.mxu0 %v229
    %1859 = vmatprep.subr.mxu0 0.0
    %1860 = vmatpush1.msra.mxu0 %v230
    %1861 = vmatprep.subr.mxu0 0.0
    %1862 = vmatpush1.msra.mxu0 0.0
    %1863 = vmatprep.subr.mxu0 0.0
    %1864 = vmatpush1.msra.mxu0 0.0
    %1865 = vmatprep.subr.mxu0 0.0
    %1866 = vmatpush1.msra.mxu0 0.0
    %1867 = vmatprep.subr.mxu0 0.0
    %1868 = vmatpush1.msra.mxu0 0.0
    %1869 = vmatprep.subr.mxu0 0.0
    %1870 = vmatpush1.msra.mxu0 0.0
    %1871 = vmatprep.subr.mxu0 0.0
    %1872 = vmatpush1.msra.mxu0 0.0
    %1873 = vmatprep.subr.mxu0 0.0
    %1874 = vmatpush1.msra.mxu0 0.0
    %1875 = vmatprep.subr.mxu0 0.0
    %1876 = vmatpush1.msra.mxu0 0.0
    %1877 = vmatprep.subr.mxu0 0.0
    %1878 = vmatpush1.msra.mxu0 0.0
    %1879 = vmatprep.subr.mxu0 0.0
    %1880 = vmatpush1.msra.mxu0 0.0
    %1881 = vmatprep.subr.mxu0 0.0
    %1882 = vmatpush1.msra.mxu0 0.0
    %1883 = vmatprep.subr.mxu0 0.0
    %1884 = vmatpush1.msra.mxu0 0.0
    %1885 = vmatprep.subr.mxu0 0.0
    %1886 = vmatpush1.msra.mxu0 0.0
    %1887 = vmatprep.subr.mxu0 0.0
    %1888 = vmatpush1.msra.mxu0 0.0
    %1889 = vmatprep.subr.mxu0 0.0
    %1890 = vmatpush1.msra.mxu0 0.0
    %1891 = vmatprep.subr.mxu0 0.0
    %1892 = vmatpush1.msra.mxu0 0.0
    %1893 = vmatprep.mubr.f32.mxu0 0.0
    %1894 = vmatmul.mubr.f32.gmra.mrb[0].mxu0 %v1826
    %v1895 = vpop.f32.mrb[0].mxu0
    %v1896 = vadd.f32 0.0, %v1895
    %v1897 = vpop.f32.mrb[0].mxu0
    %1898 = vmatprep.mubr.f32.mxu0 0.0
    %1899 = vmatmul.mubr.f32.gmra.mrb[0].mxu0 %v1827
    %v1900 = vpop.f32.mrb[0].mxu0
    %v1901 = vadd.f32 0.0, %v1900
    %v1902 = vpop.f32.mrb[0].mxu0
    %1903 = vmatprep.mubr.f32.mxu0 0.0
    %1904 = vmatmul.mubr.f32.gmra.mrb[0].mxu0 %v1828
    %v1905 = vpop.f32.mrb[0].mxu0
    %v1906 = vadd.f32 0.0, %v1905
    %v1907 = vpop.f32.mrb[0].mxu0
    %1908 = vdwg.mxu0
    %1909 = vst [vmem:[#allocation3] sm:$0xff] %v1896
    %1910 = vst [vmem:[#allocation3 + $0x8] sm:$0xff] %v1901
    %1911 = vst [vmem:[#allocation3 + $0x10] sm:$0xf] %v1906
    %1912 = vmatprep.subr.mxu0 0.0
    %1913 = vmatpush1.msra.mxu0 %v263
    %1914 = vmatprep.subr.mxu0 0.0
    %1915 = vmatpush1.msra.mxu0 %v264
    %1916 = vmatprep.subr.mxu0 0.0
    %1917 = vmatpush1.msra.mxu0 %v265
    %1918 = vmatprep.subr.mxu0 0.0
    %1919 = vmatpush1.msra.mxu0 %v266
    %1920 = vmatprep.subr.mxu0 0.0
    %1921 = vmatpush1.msra.mxu0 %v267
    %1922 = vmatprep.subr.mxu0 0.0
    %1923 = vmatpush1.msra.mxu0 %v268
    %1924 = vmatprep.subr.mxu0 0.0
    %1925 = vmatpush1.msra.mxu0 %v269
    %1926 = vmatprep.subr.mxu0 0.0
    %1927 = vmatpush1.msra.mxu0 %v270
    %1928 = vmatprep.subr.mxu0 0.0
    %1929 = vmatpush1.msra.mxu0 %v271
    %1930 = vmatprep.subr.mxu0 0.0
    %1931 = vmatpush1.msra.mxu0 %v272
    %1932 = vmatprep.subr.mxu0 0.0
    %1933 = vmatpush1.msra.mxu0 %v273
    %1934 = vmatprep.subr.mxu0 0.0
    %1935 = vmatpush1.msra.mxu0 %v274
    %1936 = vmatprep.subr.mxu0 0.0
    %1937 = vmatpush1.msra.mxu0 %v275
    %1938 = vmatprep.subr.mxu0 0.0
    %1939 = vmatpush1.msra.mxu0 %v276
    %1940 = vmatprep.subr.mxu0 0.0
    %1941 = vmatpush1.msra.mxu0 %v277
    %1942 = vmatprep.subr.mxu0 0.0
    %1943 = vmatpush1.msra.mxu0 %v278
    %1944 = vmatprep.subr.mxu0 0.0
    %1945 = vmatpush1.msra.mxu0 0.0
    %1946 = vmatprep.subr.mxu0 0.0
    %1947 = vmatpush1.msra.mxu0 0.0
    %1948 = vmatprep.subr.mxu0 0.0
    %1949 = vmatpush1.msra.mxu0 0.0
    %1950 = vmatprep.subr.mxu0 0.0
    %1951 = vmatpush1.msra.mxu0 0.0
    %1952 = vmatprep.subr.mxu0 0.0
    %1953 = vmatpush1.msra.mxu0 0.0
    %1954 = vmatprep.subr.mxu0 0.0
    %1955 = vmatpush1.msra.mxu0 0.0
    %1956 = vmatprep.subr.mxu0 0.0
    %1957 = vmatpush1.msra.mxu0 0.0
    %1958 = vmatprep.subr.mxu0 0.0
    %1959 = vmatpush1.msra.mxu0 0.0
    %1960 = vmatprep.subr.mxu0 0.0
    %1961 = vmatpush1.msra.mxu0 0.0
    %1962 = vmatprep.subr.mxu0 0.0
    %1963 = vmatpush1.msra.mxu0 0.0
    %1964 = vmatprep.subr.mxu0 0.0
    %1965 = vmatpush1.msra.mxu0 0.0
    %1966 = vmatprep.subr.mxu0 0.0
    %1967 = vmatpush1.msra.mxu0 0.0
    %1968 = vmatprep.subr.mxu0 0.0
    %1969 = vmatpush1.msra.mxu0 0.0
    %1970 = vmatprep.subr.mxu0 0.0
    %1971 = vmatpush1.msra.mxu0 0.0
    %1972 = vmatprep.subr.mxu0 0.0
    %1973 = vmatpush1.msra.mxu0 0.0
    %1974 = vmatprep.subr.mxu0 0.0
    %1975 = vmatpush1.msra.mxu0 0.0
    %1976 = vmatprep.mubr.f32.mxu0 0.0
    %1977 = vmatmul.mubr.f32.gmra.mrb[0].mxu0 %v1826
    %v1978 = vpop.f32.mrb[0].mxu0
    %v1979 = vadd.f32 0.0, %v1978
    %v1980 = vpop.f32.mrb[0].mxu0
    %1981 = vmatprep.mubr.f32.mxu0 0.0
    %1982 = vmatmul.mubr.f32.gmra.mrb[0].mxu0 %v1827
    %v1983 = vpop.f32.mrb[0].mxu0
    %v1984 = vadd.f32 0.0, %v1983
    %v1985 = vpop.f32.mrb[0].mxu0
    %1986 = vmatprep.mubr.f32.mxu0 0.0
    %1987 = vmatmul.mubr.f32.gmra.mrb[0].mxu0 %v1828
    %v1988 = vpop.f32.mrb[0].mxu0
    %v1989 = vadd.f32 0.0, %v1988
    %v1990 = vpop.f32.mrb[0].mxu0
    %1991 = vdwg.mxu0
    %1992 = vst [vmem:[#allocation3 + $0x14] sm:$0xff] %v1979
    %1993 = vst [vmem:[#allocation3 + $0x1c] sm:$0xff] %v1984
    %1994 = vst [vmem:[#allocation3 + $0x24] sm:$0xf] %v1989
    %1995 = vst [vmem:[#allocation3 + $0x28] sm:$0xff] %v1826
    %1996 = vst [vmem:[#allocation3 + $0x30] sm:$0xff] %v1827
    %1997 = vst [vmem:[#allocation3 + $0x38] sm:$0xf] %v1828
    %1998 = vmatprep.subr.mxu0 0.0
    %1999 = vmatpush1.msra.mxu0 %v311
    %2000 = vmatprep.subr.mxu0 0.0
    %2001 = vmatpush1.msra.mxu0 %v312
    %2002 = vmatprep.subr.mxu0 0.0
    %2003 = vmatpush1.msra.mxu0 %v313
    %2004 = vmatprep.subr.mxu0 0.0
    %2005 = vmatpush1.msra.mxu0 %v314
    %2006 = vmatprep.subr.mxu0 0.0
    %2007 = vmatpush1.msra.mxu0 %v315
    %2008 = vmatprep.subr.mxu0 0.0
    %2009 = vmatpush1.msra.mxu0 %v316
    %2010 = vmatprep.subr.mxu0 0.0
    %2011 = vmatpush1.msra.mxu0 %v317
    %2012 = vmatprep.subr.mxu0 0.0
    %2013 = vmatpush1.msra.mxu0 %v318
    %2014 = vmatprep.subr.mxu0 0.0
    %2015 = vmatpush1.msra.mxu0 %v319
    %2016 = vmatprep.subr.mxu0 0.0
    %2017 = vmatpush1.msra.mxu0 %v320
    %2018 = vmatprep.subr.mxu0 0.0
    %2019 = vmatpush1.msra.mxu0 %v321
    %2020 = vmatprep.subr.mxu0 0.0
    %2021 = vmatpush1.msra.mxu0 %v322
    %2022 = vmatprep.subr.mxu0 0.0
    %2023 = vmatpush1.msra.mxu0 %v323
    %2024 = vmatprep.subr.mxu0 0.0
    %2025 = vmatpush1.msra.mxu0 %v324
    %2026 = vmatprep.subr.mxu0 0.0
    %2027 = vmatpush1.msra.mxu0 %v325
    %2028 = vmatprep.subr.mxu0 0.0
    %2029 = vmatpush1.msra.mxu0 %v326
    %2030 = vmatprep.subr.mxu0 0.0
    %2031 = vmatpush1.msra.mxu0 0.0
    %2032 = vmatprep.subr.mxu0 0.0
    %2033 = vmatpush1.msra.mxu0 0.0
    %2034 = vmatprep.subr.mxu0 0.0
    %2035 = vmatpush1.msra.mxu0 0.0
    %2036 = vmatprep.subr.mxu0 0.0
    %2037 = vmatpush1.msra.mxu0 0.0
    %2038 = vmatprep.subr.mxu0 0.0
    %2039 = vmatpush1.msra.mxu0 0.0
    %2040 = vmatprep.subr.mxu0 0.0
    %2041 = vmatpush1.msra.mxu0 0.0
    %2042 = vmatprep.subr.mxu0 0.0
    %2043 = vmatpush1.msra.mxu0 0.0
    %2044 = vmatprep.subr.mxu0 0.0
    %2045 = vmatpush1.msra.mxu0 0.0
    %2046 = vmatprep.subr.mxu0 0.0
    %2047 = vmatpush1.msra.mxu0 0.0
    %2048 = vmatprep.subr.mxu0 0.0
    %2049 = vmatpush1.msra.mxu0 0.0
    %2050 = vmatprep.subr.mxu0 0.0
    %2051 = vmatpush1.msra.mxu0 0.0
    %2052 = vmatprep.subr.mxu0 0.0
    %2053 = vmatpush1.msra.mxu0 0.0
    %2054 = vmatprep.subr.mxu0 0.0
    %2055 = vmatpush1.msra.mxu0 0.0
    %2056 = vmatprep.subr.mxu0 0.0
    %2057 = vmatpush1.msra.mxu0 0.0
    %2058 = vmatprep.subr.mxu0 0.0
    %2059 = vmatpush1.msra.mxu0 0.0
    %2060 = vmatprep.subr.mxu0 0.0
    %2061 = vmatpush1.msra.mxu0 0.0
    %2062 = vmatprep.mubr.f32.mxu0 0.0
    %2063 = vmatmul.mubr.f32.gmra.mrb[0].mxu0 %v1826
    %v2064 = vpop.f32.mrb[0].mxu0
    %v2065 = vadd.f32 0.0, %v2064
    %v2066 = vpop.f32.mrb[0].mxu0
    %2067 = vmatprep.mubr.f32.mxu0 0.0
    %2068 = vmatmul.mubr.f32.gmra.mrb[0].mxu0 %v1827
    %v2069 = vpop.f32.mrb[0].mxu0
    %v2070 = vadd.f32 0.0, %v2069
    %v2071 = vpop.f32.mrb[0].mxu0
    %2072 = vmatprep.mubr.f32.mxu0 0.0
    %2073 = vmatmul.mubr.f32.gmra.mrb[0].mxu0 %v1828
    %v2074 = vpop.f32.mrb[0].mxu0
    %v2075 = vadd.f32 0.0, %v2074
    %v2076 = vpop.f32.mrb[0].mxu0
    %2077 = vdwg.mxu0
    %2078 = vst [vmem:[#allocation3 + $0x3c] sm:$0xff] %v2065
    %2079 = vst [vmem:[#allocation3 + $0x44] sm:$0xff] %v2070
    %2080 = vst [vmem:[#allocation3 + $0x4c] sm:$0xf] %v2075
    %2081 = vmatprep.subr.mxu0 0.0
    %2082 = vmatpush1.msra.mxu0 %v359
    %2083 = vmatprep.subr.mxu0 0.0
    %2084 = vmatpush1.msra.mxu0 %v360
    %2085 = vmatprep.subr.mxu0 0.0
    %2086 = vmatpush1.msra.mxu0 %v361
    %2087 = vmatprep.subr.mxu0 0.0
    %2088 = vmatpush1.msra.mxu0 %v362
    %2089 = vmatprep.subr.mxu0 0.0
    %2090 = vmatpush1.msra.mxu0 %v363
    %2091 = vmatprep.subr.mxu0 0.0
    %2092 = vmatpush1.msra.mxu0 %v364
    %2093 = vmatprep.subr.mxu0 0.0
    %2094 = vmatpush1.msra.mxu0 %v365
    %2095 = vmatprep.subr.mxu0 0.0
    %2096 = vmatpush1.msra.mxu0 %v366
    %2097 = vmatprep.subr.mxu0 0.0
    %2098 = vmatpush1.msra.mxu0 %v367
    %2099 = vmatprep.subr.mxu0 0.0
    %2100 = vmatpush1.msra.mxu0 %v368
    %2101 = vmatprep.subr.mxu0 0.0
    %2102 = vmatpush1.msra.mxu0 %v369
    %2103 = vmatprep.subr.mxu0 0.0
    %2104 = vmatpush1.msra.mxu0 %v370
    %2105 = vmatprep.subr.mxu0 0.0
    %2106 = vmatpush1.msra.mxu0 %v371
    %2107 = vmatprep.subr.mxu0 0.0
    %2108 = vmatpush1.msra.mxu0 %v372
    %2109 = vmatprep.subr.mxu0 0.0
    %2110 = vmatpush1.msra.mxu0 %v373
    %2111 = vmatprep.subr.mxu0 0.0
    %2112 = vmatpush1.msra.mxu0 %v374
    %2113 = vmatprep.subr.mxu0 0.0
    %2114 = vmatpush1.msra.mxu0 0.0
    %2115 = vmatprep.subr.mxu0 0.0
    %2116 = vmatpush1.msra.mxu0 0.0
    %2117 = vmatprep.subr.mxu0 0.0
    %2118 = vmatpush1.msra.mxu0 0.0
    %2119 = vmatprep.subr.mxu0 0.0
    %2120 = vmatpush1.msra.mxu0 0.0
    %2121 = vmatprep.subr.mxu0 0.0
    %2122 = vmatpush1.msra.mxu0 0.0
    %2123 = vmatprep.subr.mxu0 0.0
    %2124 = vmatpush1.msra.mxu0 0.0
    %2125 = vmatprep.subr.mxu0 0.0
    %2126 = vmatpush1.msra.mxu0 0.0
    %2127 = vmatprep.subr.mxu0 0.0
    %2128 = vmatpush1.msra.mxu0 0.0
    %2129 = vmatprep.subr.mxu0 0.0
    %2130 = vmatpush1.msra.mxu0 0.0
    %2131 = vmatprep.subr.mxu0 0.0
    %2132 = vmatpush1.msra.mxu0 0.0
    %2133 = vmatprep.subr.mxu0 0.0
    %2134 = vmatpush1.msra.mxu0 0.0
    %2135 = vmatprep.subr.mxu0 0.0
    %2136 = vmatpush1.msra.mxu0 0.0
    %2137 = vmatprep.subr.mxu0 0.0
    %2138 = vmatpush1.msra.mxu0 0.0
    %2139 = vmatprep.subr.mxu0 0.0
    %2140 = vmatpush1.msra.mxu0 0.0
    %2141 = vmatprep.subr.mxu0 0.0
    %2142 = vmatpush1.msra.mxu0 0.0
    %2143 = vmatprep.subr.mxu0 0.0
    %2144 = vmatpush1.msra.mxu0 0.0
    %2145 = vmatprep.mubr.f32.mxu0 0.0
    %2146 = vmatmul.mubr.f32.gmra.mrb[0].mxu0 %v1826
    %v2147 = vpop.f32.mrb[0].mxu0
    %v2148 = vadd.f32 0.0, %v2147
    %v2149 = vpop.f32.mrb[0].mxu0
    %2150 = vmatprep.mubr.f32.mxu0 0.0
    %2151 = vmatmul.mubr.f32.gmra.mrb[0].mxu0 %v1827
    %v2152 = vpop.f32.mrb[0].mxu0
    %v2153 = vadd.f32 0.0, %v2152
    %v2154 = vpop.f32.mrb[0].mxu0
    %2155 = vmatprep.mubr.f32.mxu0 0.0
    %2156 = vmatmul.mubr.f32.gmra.mrb[0].mxu0 %v1828
    %v2157 = vpop.f32.mrb[0].mxu0
    %v2158 = vadd.f32 0.0, %v2157
    %v2159 = vpop.f32.mrb[0].mxu0
    %2160 = vdwg.mxu0
    %2161 = vst [vmem:[#allocation3 + $0x50] sm:$0xff] %v2148
    %2162 = vst [vmem:[#allocation3 + $0x58] sm:$0xff] %v2153
    %2163 = vst [vmem:[#allocation3 + $0x60] sm:$0xf] %v2158
    %v2164 = vld [vmem:[#allocation3] sm:$0xff]
    %v2165 = vld [vmem:[#allocation3 + $0x8] sm:$0xff]
    %v2166 = vld [vmem:[#allocation3 + $0x10] sm:$0xff]
    %v2167 = vld [vmem:[#allocation3 + $0x18] sm:$0xff]
    %v2168 = vld [vmem:[#allocation3 + $0x20] sm:$0xff]
    %v2169 = vld [vmem:[#allocation3 + $0x28] sm:$0xff]
    %v2170 = vld [vmem:[#allocation3 + $0x30] sm:$0xff]
    %v2171 = vld [vmem:[#allocation3 + $0x38] sm:$0xff]
    %v2172 = vld [vmem:[#allocation3 + $0x40] sm:$0xff]
    %v2173 = vld [vmem:[#allocation3 + $0x48] sm:$0xff]
    %v2174 = vld [vmem:[#allocation3 + $0x50] sm:$0xff]
    %v2175 = vld [vmem:[#allocation3 + $0x58] sm:$0xff]
    %v2176 = vld [vmem:[#allocation3 + $0x60] sm:$0xf]
    %2178 = vset.pattern.permute.xlu0 0
    %2179 = vperm.xlu0 %2178, %v1821
    %v2180 = vpop.permute.xlu0 %2179
    %2183 = vset.pattern.permute.xlu0 0
    %2184 = vperm.xlu0 %2183, %v1822
    %v2185 = vpop.permute.xlu0 %2184
    %2188 = vset.pattern.permute.xlu0 0
    %2189 = vperm.xlu0 %2188, %v1823
    %v2190 = vpop.permute.xlu0 %2189
    %2193 = vset.pattern.permute.xlu0 0
    %2194 = vperm.xlu0 %2193, %v1824
    %v2195 = vpop.permute.xlu0 %2194
    %2198 = vset.pattern.permute.xlu0 0
    %2199 = vperm.xlu0 %2198, %v1825
    %v2200 = vpop.permute.xlu0 %2199
    %v2203 = vsel %vm824, %v1816, 0
    %v2206 = vsel %vm824, %v1817, 0
    %v2209 = vsel %vm824, %v1818, 0
    %v2212 = vsel %vm824, %v1819, 0
    %v2215 = vsel %vm824, %v1820, 0
    %v2218 = vsel %vm840, %v2176, 0
    %2220 = vmatprep.subr.mxu0 0.0
    %2221 = vmatpush1.msra.mxu0 %v2164
    %2222 = vmatprep.subr.mxu0 0.0
    %2223 = vmatpush1.msra.mxu0 %v2165
    %2224 = vmatprep.subr.mxu0 0.0
    %2225 = vmatpush1.msra.mxu0 %v2166
    %2226 = vmatprep.subr.mxu0 0.0
    %2227 = vmatpush1.msra.mxu0 %v2167
    %2228 = vmatprep.subr.mxu0 0.0
    %2229 = vmatpush1.msra.mxu0 %v2168
    %2230 = vmatprep.subr.mxu0 0.0
    %2231 = vmatpush1.msra.mxu0 %v2169
    %2232 = vmatprep.subr.mxu0 0.0
    %2233 = vmatpush1.msra.mxu0 %v2170
    %2234 = vmatprep.subr.mxu0 0.0
    %2235 = vmatpush1.msra.mxu0 %v2171
    %2236 = vmatprep.subr.mxu0 0.0
    %2237 = vmatpush1.msra.mxu0 %v2172
    %2238 = vmatprep.subr.mxu0 0.0
    %2239 = vmatpush1.msra.mxu0 %v2173
    %2240 = vmatprep.subr.mxu0 0.0
    %2241 = vmatpush1.msra.mxu0 %v2174
    %2242 = vmatprep.subr.mxu0 0.0
    %2243 = vmatpush1.msra.mxu0 %v2175
    %2244 = vmatprep.subr.mxu0 0.0
    %2245 = vmatpush1.msra.mxu0 %v2218
    %2246 = vmatprep.subr.mxu0 0.0
    %2247 = vmatpush1.msra.mxu0 0.0
    %2248 = vmatprep.subr.mxu0 0.0
    %2249 = vmatpush1.msra.mxu0 0.0
    %2250 = vmatprep.subr.mxu0 0.0
    %2251 = vmatpush1.msra.mxu0 0.0
    %2252 = vmatprep.subr.mxu0 0.0
    %2253 = vmatpush1.msra.mxu0 0.0
    %2254 = vmatprep.subr.mxu0 0.0
    %2255 = vmatpush1.msra.mxu0 0.0
    %2256 = vmatprep.subr.mxu0 0.0
    %2257 = vmatpush1.msra.mxu0 0.0
    %2258 = vmatprep.subr.mxu0 0.0
    %2259 = vmatpush1.msra.mxu0 0.0
    %2260 = vmatprep.subr.mxu0 0.0
    %2261 = vmatpush1.msra.mxu0 0.0
    %2262 = vmatprep.subr.mxu0 0.0
    %2263 = vmatpush1.msra.mxu0 0.0
    %2264 = vmatprep.subr.mxu0 0.0
    %2265 = vmatpush1.msra.mxu0 0.0
    %2266 = vmatprep.subr.mxu0 0.0
    %2267 = vmatpush1.msra.mxu0 0.0
    %2268 = vmatprep.subr.mxu0 0.0
    %2269 = vmatpush1.msra.mxu0 0.0
    %2270 = vmatprep.subr.mxu0 0.0
    %2271 = vmatpush1.msra.mxu0 0.0
    %2272 = vmatprep.subr.mxu0 0.0
    %2273 = vmatpush1.msra.mxu0 0.0
    %2274 = vmatprep.subr.mxu0 0.0
    %2275 = vmatpush1.msra.mxu0 0.0
    %2276 = vmatprep.subr.mxu0 0.0
    %2277 = vmatpush1.msra.mxu0 0.0
    %2278 = vmatprep.subr.mxu0 0.0
    %2279 = vmatpush1.msra.mxu0 0.0
    %2280 = vmatprep.subr.mxu0 0.0
    %2281 = vmatpush1.msra.mxu0 0.0
    %2282 = vmatprep.subr.mxu0 0.0
    %2283 = vmatpush1.msra.mxu0 0.0
    %2284 = vmatprep.mubr.f32.mxu0 0.0
    %2285 = vmatmul.mubr.f32.gmra.mrb[0].mxu0 %v2203
    %v2286 = vpop.f32.mrb[0].mxu0
    %v2287 = vadd.f32 %v2180, %v2286
    %v2288 = vpop.f32.mrb[0].mxu0
    %2289 = vmatprep.mubr.f32.mxu0 0.0
    %2290 = vmatmul.mubr.f32.gmra.mrb[0].mxu0 %v2206
    %v2291 = vpop.f32.mrb[0].mxu0
    %v2292 = vadd.f32 %v2185, %v2291
    %v2293 = vpop.f32.mrb[0].mxu0
    %2294 = vmatprep.mubr.f32.mxu0 0.0
    %2295 = vmatmul.mubr.f32.gmra.mrb[0].mxu0 %v2209
    %v2296 = vpop.f32.mrb[0].mxu0
    %v2297 = vadd.f32 %v2190, %v2296
    %v2298 = vpop.f32.mrb[0].mxu0
    %2299 = vmatprep.mubr.f32.mxu0 0.0
    %2300 = vmatmul.mubr.f32.gmra.mrb[0].mxu0 %v2212
    %v2301 = vpop.f32.mrb[0].mxu0
    %v2302 = vadd.f32 %v2195, %v2301
    %v2303 = vpop.f32.mrb[0].mxu0
    %2304 = vmatprep.mubr.f32.mxu0 0.0
    %2305 = vmatmul.mubr.f32.gmra.mrb[0].mxu0 %v2215
    %v2306 = vpop.f32.mrb[0].mxu0
    %v2307 = vadd.f32 %v2200, %v2306
    %v2308 = vpop.f32.mrb[0].mxu0
    %2309 = vdwg.mxu0
    %v2310 = vmax.f32 %v2287, 0.0
    %v2311 = vmax.f32 %v2292, 0.0
    %v2312 = vmax.f32 %v2297, 0.0
    %v2313 = vmax.f32 %v2302, 0.0
    %v2314 = vmax.f32 %v2307, 0.0
    %v2315 = vld [vmem:[%s5] sm:$0xff]
    %v2316 = vld [vmem:[%s5 + $0x8] sm:$0xff]
    %v2317 = vld [vmem:[%s5 + $0x10] sm:$0xff]
    %v2318 = vld [vmem:[%s5 + $0x18] sm:$0xff]
    %v2319 = vld [vmem:[%s5 + $0x20] sm:$0xff]
    %v2320 = vld [vmem:[%s5 + $0x28] sm:$0xff]
    %v2321 = vld [vmem:[%s5 + $0x30] sm:$0xff]
    %v2322 = vld [vmem:[%s5 + $0x38] sm:$0xff]
    %v2323 = vld [vmem:[%s5 + $0x40] sm:$0xff]
    %v2324 = vld [vmem:[%s5 + $0x48] sm:$0xff]
    %v2325 = vld [vmem:[%s5 + $0x50] sm:$0xff]
    %v2326 = vld [vmem:[%s5 + $0x58] sm:$0xff]
    %v2327 = vld [vmem:[%s5 + $0x60] sm:$0xff]
    %v2328 = vld [vmem:[%s5 + $0x68] sm:$0xff]
    %v2329 = vld [vmem:[%s5 + $0x70] sm:$0xff]
    %v2330 = vld [vmem:[%s5 + $0x78] sm:$0xff]
    %v2331 = vld [vmem:[%s5 + $0x80] sm:$0xff]
    %v2332 = vld [vmem:[%s5 + $0x88] sm:$0xff]
    %v2333 = vld [vmem:[%s5 + $0x90] sm:$0xff]
    %v2334 = vld [vmem:[%s5 + $0x98] sm:$0xff]
    %v2335 = vld [vmem:[%s6] sm:$0xff]
    %v2336 = vld [vmem:[%s6 + $0x8] sm:$0xff]
    %v2337 = vld [vmem:[%s6 + $0x10] sm:$0xff]
    %v2338 = vld [vmem:[%s6 + $0x18] sm:$0xff]
    %v2339 = vld [vmem:[%s6 + $0x20] sm:$0xff]
    %v2340 = vld [vmem:[%s6 + $0x28] sm:$0xff]
    %v2341 = vld [vmem:[%s6 + $0x30] sm:$0xff]
    %v2342 = vld [vmem:[%s6 + $0x38] sm:$0xff]
    %v2343 = vld [vmem:[%s6 + $0x40] sm:$0xff]
    %v2344 = vld [vmem:[%s6 + $0x48] sm:$0xff]
    %v2345 = vmul.f32 %v2310, %v1804
    %v2346 = vmul.f32 %v2311, %v1804
    %v2347 = vmul.f32 %v2312, %v1804
    %v2348 = vmul.f32 %v2313, %v1804
    %v2349 = vmul.f32 %v2314, %v1804
    %2350 = vmatprep.subr.mxu0 0.0
    %2351 = vmatpush1.msra.mxu0 %v167
    %2352 = vmatprep.subr.mxu0 0.0
    %2353 = vmatpush1.msra.mxu0 %v168
    %2354 = vmatprep.subr.mxu0 0.0
    %2355 = vmatpush1.msra.mxu0 %v169
    %2356 = vmatprep.subr.mxu0 0.0
    %2357 = vmatpush1.msra.mxu0 %v170
    %2358 = vmatprep.subr.mxu0 0.0
    %2359 = vmatpush1.msra.mxu0 %v171
    %2360 = vmatprep.subr.mxu0 0.0
    %2361 = vmatpush1.msra.mxu0 %v172
    %2362 = vmatprep.subr.mxu0 0.0
    %2363 = vmatpush1.msra.mxu0 %v173
    %2364 = vmatprep.subr.mxu0 0.0
    %2365 = vmatpush1.msra.mxu0 %v174
    %2366 = vmatprep.subr.mxu0 0.0
    %2367 = vmatpush1.msra.mxu0 %v175
    %2368 = vmatprep.subr.mxu0 0.0
    %2369 = vmatpush1.msra.mxu0 %v176
    %2370 = vmatprep.subr.mxu0 0.0
    %2371 = vmatpush1.msra.mxu0 %v177
    %2372 = vmatprep.subr.mxu0 0.0
    %2373 = vmatpush1.msra.mxu0 %v178
    %2374 = vmatprep.subr.mxu0 0.0
    %2375 = vmatpush1.msra.mxu0 %v179
    %2376 = vmatprep.subr.mxu0 0.0
    %2377 = vmatpush1.msra.mxu0 %v180
    %2378 = vmatprep.subr.mxu0 0.0
    %2379 = vmatpush1.msra.mxu0 %v181
    %2380 = vmatprep.subr.mxu0 0.0
    %2381 = vmatpush1.msra.mxu0 %v182
    %2382 = vmatprep.subr.mxu0 0.0
    %2383 = vmatpush1.msra.mxu0 0.0
    %2384 = vmatprep.subr.mxu0 0.0
    %2385 = vmatpush1.msra.mxu0 0.0
    %2386 = vmatprep.subr.mxu0 0.0
    %2387 = vmatpush1.msra.mxu0 0.0
    %2388 = vmatprep.subr.mxu0 0.0
    %2389 = vmatpush1.msra.mxu0 0.0
    %2390 = vmatprep.subr.mxu0 0.0
    %2391 = vmatpush1.msra.mxu0 0.0
    %2392 = vmatprep.subr.mxu0 0.0
    %2393 = vmatpush1.msra.mxu0 0.0
    %2394 = vmatprep.subr.mxu0 0.0
    %2395 = vmatpush1.msra.mxu0 0.0
    %2396 = vmatprep.subr.mxu0 0.0
    %2397 = vmatpush1.msra.mxu0 0.0
    %2398 = vmatprep.subr.mxu0 0.0
    %2399 = vmatpush1.msra.mxu0 0.0
    %2400 = vmatprep.subr.mxu0 0.0
    %2401 = vmatpush1.msra.mxu0 0.0
    %2402 = vmatprep.subr.mxu0 0.0
    %2403 = vmatpush1.msra.mxu0 0.0
    %2404 = vmatprep.subr.mxu0 0.0
    %2405 = vmatpush1.msra.mxu0 0.0
    %2406 = vmatprep.subr.mxu0 0.0
    %2407 = vmatpush1.msra.mxu0 0.0
    %2408 = vmatprep.subr.mxu0 0.0
    %2409 = vmatpush1.msra.mxu0 0.0
    %2410 = vmatprep.subr.mxu0 0.0
    %2411 = vmatpush1.msra.mxu0 0.0
    %2412 = vmatprep.subr.mxu0 0.0
    %2413 = vmatpush1.msra.mxu0 0.0
    %2414 = vmatprep.mubr.f32.mxu0 0.0
    %2415 = vmatmul.mubr.f32.gmra.mrb[0].mxu0 %v2345
    %v2416 = vpop.f32.mrb[0].mxu0
    %v2417 = vadd.f32 0.0, %v2416
    %v2418 = vpop.f32.mrb[0].mxu0
    %2419 = vmatprep.mubr.f32.mxu0 0.0
    %2420 = vmatmul.mubr.f32.gmra.mrb[0].mxu0 %v2346
    %v2421 = vpop.f32.mrb[0].mxu0
    %v2422 = vadd.f32 0.0, %v2421
    %v2423 = vpop.f32.mrb[0].mxu0
    %2424 = vmatprep.mubr.f32.mxu0 0.0
    %2425 = vmatmul.mubr.f32.gmra.mrb[0].mxu0 %v2347
    %v2426 = vpop.f32.mrb[0].mxu0
    %v2427 = vadd.f32 0.0, %v2426
    %v2428 = vpop.f32.mrb[0].mxu0
    %2429 = vmatprep.mubr.f32.mxu0 0.0
    %2430 = vmatmul.mubr.f32.gmra.mrb[0].mxu0 %v2348
    %v2431 = vpop.f32.mrb[0].mxu0
    %v2432 = vadd.f32 0.0, %v2431
    %v2433 = vpop.f32.mrb[0].mxu0
    %2434 = vmatprep.mubr.f32.mxu0 0.0
    %2435 = vmatmul.mubr.f32.gmra.mrb[0].mxu0 %v2349
    %v2436 = vpop.f32.mrb[0].mxu0
    %v2437 = vadd.f32 0.0, %v2436
    %v2438 = vpop.f32.mrb[0].mxu0
    %2439 = vdwg.mxu0
    %2440 = vst [vmem:[#allocation4] sm:$0xff] %v2417
    %2441 = vst [vmem:[#allocation4 + $0x8] sm:$0xff] %v2422
    %2442 = vst [vmem:[#allocation4 + $0x10] sm:$0xff] %v2427
    %2443 = vst [vmem:[#allocation4 + $0x18] sm:$0xff] %v2432
    %2444 = vst [vmem:[#allocation4 + $0x20] sm:$0xff] %v2437
    %2445 = vmatprep.subr.mxu0 0.0
    %2446 = vmatpush1.msra.mxu0 %v215
    %2447 = vmatprep.subr.mxu0 0.0
    %2448 = vmatpush1.msra.mxu0 %v216
    %2449 = vmatprep.subr.mxu0 0.0
    %2450 = vmatpush1.msra.mxu0 %v217
    %2451 = vmatprep.subr.mxu0 0.0
    %2452 = vmatpush1.msra.mxu0 %v218
    %2453 = vmatprep.subr.mxu0 0.0
    %2454 = vmatpush1.msra.mxu0 %v219
    %2455 = vmatprep.subr.mxu0 0.0
    %2456 = vmatpush1.msra.mxu0 %v220
    %2457 = vmatprep.subr.mxu0 0.0
    %2458 = vmatpush1.msra.mxu0 %v221
    %2459 = vmatprep.subr.mxu0 0.0
    %2460 = vmatpush1.msra.mxu0 %v222
    %2461 = vmatprep.subr.mxu0 0.0
    %2462 = vmatpush1.msra.mxu0 %v223
    %2463 = vmatprep.subr.mxu0 0.0
    %2464 = vmatpush1.msra.mxu0 %v224
    %2465 = vmatprep.subr.mxu0 0.0
    %2466 = vmatpush1.msra.mxu0 %v225
    %2467 = vmatprep.subr.mxu0 0.0
    %2468 = vmatpush1.msra.mxu0 %v226
    %2469 = vmatprep.subr.mxu0 0.0
    %2470 = vmatpush1.msra.mxu0 %v227
    %2471 = vmatprep.subr.mxu0 0.0
    %2472 = vmatpush1.msra.mxu0 %v228
    %2473 = vmatprep.subr.mxu0 0.0
    %2474 = vmatpush1.msra.mxu0 %v229
    %2475 = vmatprep.subr.mxu0 0.0
    %2476 = vmatpush1.msra.mxu0 %v230
    %2477 = vmatprep.subr.mxu0 0.0
    %2478 = vmatpush1.msra.mxu0 0.0
    %2479 = vmatprep.subr.mxu0 0.0
    %2480 = vmatpush1.msra.mxu0 0.0
    %2481 = vmatprep.subr.mxu0 0.0
    %2482 = vmatpush1.msra.mxu0 0.0
    %2483 = vmatprep.subr.mxu0 0.0
    %2484 = vmatpush1.msra.mxu0 0.0
    %2485 = vmatprep.subr.mxu0 0.0
    %2486 = vmatpush1.msra.mxu0 0.0
    %2487 = vmatprep.subr.mxu0 0.0
    %2488 = vmatpush1.msra.mxu0 0.0
    %2489 = vmatprep.subr.mxu0 0.0
    %2490 = vmatpush1.msra.mxu0 0.0
    %2491 = vmatprep.subr.mxu0 0.0
    %2492 = vmatpush1.msra.mxu0 0.0
    %2493 = vmatprep.subr.mxu0 0.0
    %2494 = vmatpush1.msra.mxu0 0.0
    %2495 = vmatprep.subr.mxu0 0.0
    %2496 = vmatpush1.msra.mxu0 0.0
    %2497 = vmatprep.subr.mxu0 0.0
    %2498 = vmatpush1.msra.mxu0 0.0
    %2499 = vmatprep.subr.mxu0 0.0
    %2500 = vmatpush1.msra.mxu0 0.0
    %2501 = vmatprep.subr.mxu0 0.0
    %2502 = vmatpush1.msra.mxu0 0.0
    %2503 = vmatprep.subr.mxu0 0.0
    %2504 = vmatpush1.msra.mxu0 0.0
    %2505 = vmatprep.subr.mxu0 0.0
    %2506 = vmatpush1.msra.mxu0 0.0
    %2507 = vmatprep.subr.mxu0 0.0
    %2508 = vmatpush1.msra.mxu0 0.0
    %2509 = vmatprep.mubr.f32.mxu0 0.0
    %2510 = vmatmul.mubr.f32.gmra.mrb[0].mxu0 %v2345
    %v2511 = vpop.f32.mrb[0].mxu0
    %v2512 = vadd.f32 0.0, %v2511
    %v2513 = vpop.f32.mrb[0].mxu0
    %2514 = vmatprep.mubr.f32.mxu0 0.0
    %2515 = vmatmul.mubr.f32.gmra.mrb[0].mxu0 %v2346
    %v2516 = vpop.f32.mrb[0].mxu0
    %v2517 = vadd.f32 0.0, %v2516
    %v2518 = vpop.f32.mrb[0].mxu0
    %2519 = vmatprep.mubr.f32.mxu0 0.0
    %2520 = vmatmul.mubr.f32.gmra.mrb[0].mxu0 %v2347
    %v2521 = vpop.f32.mrb[0].mxu0
    %v2522 = vadd.f32 0.0, %v2521
    %v2523 = vpop.f32.mrb[0].mxu0
    %2524 = vmatprep.mubr.f32.mxu0 0.0
    %2525 = vmatmul.mubr.f32.gmra.mrb[0].mxu0 %v2348
    %v2526 = vpop.f32.mrb[0].mxu0
    %v2527 = vadd.f32 0.0, %v2526
    %v2528 = vpop.f32.mrb[0].mxu0
    %2529 = vmatprep.mubr.f32.mxu0 0.0
    %2530 = vmatmul.mubr.f32.gmra.mrb[0].mxu0 %v2349
    %v2531 = vpop.f32.mrb[0].mxu0
    %v2532 = vadd.f32 0.0, %v2531
    %v2533 = vpop.f32.mrb[0].mxu0
    %2534 = vdwg.mxu0
    %2535 = vst [vmem:[#allocation4 + $0x28] sm:$0xff] %v2512
    %2536 = vst [vmem:[#allocation4 + $0x30] sm:$0xff] %v2517
    %2537 = vst [vmem:[#allocation4 + $0x38] sm:$0xff] %v2522
    %2538 = vst [vmem:[#allocation4 + $0x40] sm:$0xff] %v2527
    %2539 = vst [vmem:[#allocation4 + $0x48] sm:$0xff] %v2532
    %2540 = vst [vmem:[#allocation4 + $0x50] sm:$0xff] %v2345
    %2541 = vst [vmem:[#allocation4 + $0x58] sm:$0xff] %v2346
    %2542 = vst [vmem:[#allocation4 + $0x60] sm:$0xff] %v2347
    %2543 = vst [vmem:[#allocation4 + $0x68] sm:$0xff] %v2348
    %2544 = vst [vmem:[#allocation4 + $0x70] sm:$0xff] %v2349
    %2545 = vmatprep.subr.mxu0 0.0
    %2546 = vmatpush1.msra.mxu0 %v359
    %2547 = vmatprep.subr.mxu0 0.0
    %2548 = vmatpush1.msra.mxu0 %v360
    %2549 = vmatprep.subr.mxu0 0.0
    %2550 = vmatpush1.msra.mxu0 %v361
    %2551 = vmatprep.subr.mxu0 0.0
    %2552 = vmatpush1.msra.mxu0 %v362
    %2553 = vmatprep.subr.mxu0 0.0
    %2554 = vmatpush1.msra.mxu0 %v363
    %2555 = vmatprep.subr.mxu0 0.0
    %2556 = vmatpush1.msra.mxu0 %v364
    %2557 = vmatprep.subr.mxu0 0.0
    %2558 = vmatpush1.msra.mxu0 %v365
    %2559 = vmatprep.subr.mxu0 0.0
    %2560 = vmatpush1.msra.mxu0 %v366
    %2561 = vmatprep.subr.mxu0 0.0
    %2562 = vmatpush1.msra.mxu0 %v367
    %2563 = vmatprep.subr.mxu0 0.0
    %2564 = vmatpush1.msra.mxu0 %v368
    %2565 = vmatprep.subr.mxu0 0.0
    %2566 = vmatpush1.msra.mxu0 %v369
    %2567 = vmatprep.subr.mxu0 0.0
    %2568 = vmatpush1.msra.mxu0 %v370
    %2569 = vmatprep.subr.mxu0 0.0
    %2570 = vmatpush1.msra.mxu0 %v371
    %2571 = vmatprep.subr.mxu0 0.0
    %2572 = vmatpush1.msra.mxu0 %v372
    %2573 = vmatprep.subr.mxu0 0.0
    %2574 = vmatpush1.msra.mxu0 %v373
    %2575 = vmatprep.subr.mxu0 0.0
    %2576 = vmatpush1.msra.mxu0 %v374
    %2577 = vmatprep.subr.mxu0 0.0
    %2578 = vmatpush1.msra.mxu0 0.0
    %2579 = vmatprep.subr.mxu0 0.0
    %2580 = vmatpush1.msra.mxu0 0.0
    %2581 = vmatprep.subr.mxu0 0.0
    %2582 = vmatpush1.msra.mxu0 0.0
    %2583 = vmatprep.subr.mxu0 0.0
    %2584 = vmatpush1.msra.mxu0 0.0
    %2585 = vmatprep.subr.mxu0 0.0
    %2586 = vmatpush1.msra.mxu0 0.0
    %2587 = vmatprep.subr.mxu0 0.0
    %2588 = vmatpush1.msra.mxu0 0.0
    %2589 = vmatprep.subr.mxu0 0.0
    %2590 = vmatpush1.msra.mxu0 0.0
    %2591 = vmatprep.subr.mxu0 0.0
    %2592 = vmatpush1.msra.mxu0 0.0
    %2593 = vmatprep.subr.mxu0 0.0
    %2594 = vmatpush1.msra.mxu0 0.0
    %2595 = vmatprep.subr.mxu0 0.0
    %2596 = vmatpush1.msra.mxu0 0.0
    %2597 = vmatprep.subr.mxu0 0.0
    %2598 = vmatpush1.msra.mxu0 0.0
    %2599 = vmatprep.subr.mxu0 0.0
    %2600 = vmatpush1.msra.mxu0 0.0
    %2601 = vmatprep.subr.mxu0 0.0
    %2602 = vmatpush1.msra.mxu0 0.0
    %2603 = vmatprep.subr.mxu0 0.0
    %2604 = vmatpush1.msra.mxu0 0.0
    %2605 = vmatprep.subr.mxu0 0.0
    %2606 = vmatpush1.msra.mxu0 0.0
    %2607 = vmatprep.subr.mxu0 0.0
    %2608 = vmatpush1.msra.mxu0 0.0
    %2609 = vmatprep.mubr.f32.mxu0 0.0
    %2610 = vmatmul.mubr.f32.gmra.mrb[0].mxu0 %v2345
    %v2611 = vpop.f32.mrb[0].mxu0
    %v2612 = vadd.f32 0.0, %v2611
    %v2613 = vpop.f32.mrb[0].mxu0
    %2614 = vmatprep.mubr.f32.mxu0 0.0
    %2615 = vmatmul.mubr.f32.gmra.mrb[0].mxu0 %v2346
    %v2616 = vpop.f32.mrb[0].mxu0
    %v2617 = vadd.f32 0.0, %v2616
    %v2618 = vpop.f32.mrb[0].mxu0
    %2619 = vmatprep.mubr.f32.mxu0 0.0
    %2620 = vmatmul.mubr.f32.gmra.mrb[0].mxu0 %v2347
    %v2621 = vpop.f32.mrb[0].mxu0
    %v2622 = vadd.f32 0.0, %v2621
    %v2623 = vpop.f32.mrb[0].mxu0
    %2624 = vmatprep.mubr.f32.mxu0 0.0
    %2625 = vmatmul.mubr.f32.gmra.mrb[0].mxu0 %v2348
    %v2626 = vpop.f32.mrb[0].mxu0
    %v2627 = vadd.f32 0.0, %v2626
    %v2628 = vpop.f32.mrb[0].mxu0
    %2629 = vmatprep.mubr.f32.mxu0 0.0
    %2630 = vmatmul.mubr.f32.gmra.mrb[0].mxu0 %v2349
    %v2631 = vpop.f32.mrb[0].mxu0
    %v2632 = vadd.f32 0.0, %v2631
    %v2633 = vpop.f32.mrb[0].mxu0
    %2634 = vdwg.mxu0
    %2635 = vst [vmem:[#allocation4 + $0x78] sm:$0xff] %v2612
    %2636 = vst [vmem:[#allocation4 + $0x80] sm:$0xff] %v2617
    %2637 = vst [vmem:[#allocation4 + $0x88] sm:$0xff] %v2622
    %2638 = vst [vmem:[#allocation4 + $0x90] sm:$0xff] %v2627
    %2639 = vst [vmem:[#allocation4 + $0x98] sm:$0xff] %v2632
    %2640 = vmatprep.subr.mxu0 0.0
    %2641 = vmatpush1.msra.mxu0 %v407
    %2642 = vmatprep.subr.mxu0 0.0
    %2643 = vmatpush1.msra.mxu0 %v408
    %2644 = vmatprep.subr.mxu0 0.0
    %2645 = vmatpush1.msra.mxu0 %v409
    %2646 = vmatprep.subr.mxu0 0.0
    %2647 = vmatpush1.msra.mxu0 %v410
    %2648 = vmatprep.subr.mxu0 0.0
    %2649 = vmatpush1.msra.mxu0 %v411
    %2650 = vmatprep.subr.mxu0 0.0
    %2651 = vmatpush1.msra.mxu0 %v412
    %2652 = vmatprep.subr.mxu0 0.0
    %2653 = vmatpush1.msra.mxu0 %v413
    %2654 = vmatprep.subr.mxu0 0.0
    %2655 = vmatpush1.msra.mxu0 %v414
    %2656 = vmatprep.subr.mxu0 0.0
    %2657 = vmatpush1.msra.mxu0 %v415
    %2658 = vmatprep.subr.mxu0 0.0
    %2659 = vmatpush1.msra.mxu0 %v416
    %2660 = vmatprep.subr.mxu0 0.0
    %2661 = vmatpush1.msra.mxu0 %v417
    %2662 = vmatprep.subr.mxu0 0.0
    %2663 = vmatpush1.msra.mxu0 %v418
    %2664 = vmatprep.subr.mxu0 0.0
    %2665 = vmatpush1.msra.mxu0 %v419
    %2666 = vmatprep.subr.mxu0 0.0
    %2667 = vmatpush1.msra.mxu0 %v420
    %2668 = vmatprep.subr.mxu0 0.0
    %2669 = vmatpush1.msra.mxu0 %v421
    %2670 = vmatprep.subr.mxu0 0.0
    %2671 = vmatpush1.msra.mxu0 %v422
    %2672 = vmatprep.subr.mxu0 0.0
    %2673 = vmatpush1.msra.mxu0 0.0
    %2674 = vmatprep.subr.mxu0 0.0
    %2675 = vmatpush1.msra.mxu0 0.0
    %2676 = vmatprep.subr.mxu0 0.0
    %2677 = vmatpush1.msra.mxu0 0.0
    %2678 = vmatprep.subr.mxu0 0.0
    %2679 = vmatpush1.msra.mxu0 0.0
    %2680 = vmatprep.subr.mxu0 0.0
    %2681 = vmatpush1.msra.mxu0 0.0
    %2682 = vmatprep.subr.mxu0 0.0
    %2683 = vmatpush1.msra.mxu0 0.0
    %2684 = vmatprep.subr.mxu0 0.0
    %2685 = vmatpush1.msra.mxu0 0.0
    %2686 = vmatprep.subr.mxu0 0.0
    %2687 = vmatpush1.msra.mxu0 0.0
    %2688 = vmatprep.subr.mxu0 0.0
    %2689 = vmatpush1.msra.mxu0 0.0
    %2690 = vmatprep.subr.mxu0 0.0
    %2691 = vmatpush1.msra.mxu0 0.0
    %2692 = vmatprep.subr.mxu0 0.0
    %2693 = vmatpush1.msra.mxu0 0.0
    %2694 = vmatprep.subr.mxu0 0.0
    %2695 = vmatpush1.msra.mxu0 0.0
    %2696 = vmatprep.subr.mxu0 0.0
    %2697 = vmatpush1.msra.mxu0 0.0
    %2698 = vmatprep.subr.mxu0 0.0
    %2699 = vmatpush1.msra.mxu0 0.0
    %2700 = vmatprep.subr.mxu0 0.0
    %2701 = vmatpush1.msra.mxu0 0.0
    %2702 = vmatprep.subr.mxu0 0.0
    %2703 = vmatpush1.msra.mxu0 0.0
    %2704 = vmatprep.mubr.f32.mxu0 0.0
    %2705 = vmatmul.mubr.f32.gmra.mrb[0].mxu0 %v2345
    %v2706 = vpop.f32.mrb[0].mxu0
    %v2707 = vadd.f32 0.0, %v2706
    %v2708 = vpop.f32.mrb[0].mxu0
    %2709 = vmatprep.mubr.f32.mxu0 0.0
    %2710 = vmatmul.mubr.f32.gmra.mrb[0].mxu0 %v2346
    %v2711 = vpop.f32.mrb[0].mxu0
    %v2712 = vadd.f32 0.0, %v2711
    %v2713 = vpop.f32.mrb[0].mxu0
    %2714 = vmatprep.mubr.f32.mxu0 0.0
    %2715 = vmatmul.mubr.f32.gmra.mrb[0].mxu0 %v2347
    %v2716 = vpop.f32.mrb[0].mxu0
    %v2717 = vadd.f32 0.0, %v2716
    %v2718 = vpop.f32.mrb[0].mxu0
    %2719 = vmatprep.mubr.f32.mxu0 0.0
    %2720 = vmatmul.mubr.f32.gmra.mrb[0].mxu0 %v2348
    %v2721 = vpop.f32.mrb[0].mxu0
    %v2722 = vadd.f32 0.0, %v2721
    %v2723 = vpop.f32.mrb[0].mxu0
    %2724 = vmatprep.mubr.f32.mxu0 0.0
    %2725 = vmatmul.mubr.f32.gmra.mrb[0].mxu0 %v2349
    %v2726 = vpop.f32.mrb[0].mxu0
    %v2727 = vadd.f32 0.0, %v2726
    %v2728 = vpop.f32.mrb[0].mxu0
    %2729 = vdwg.mxu0
    %2730 = vst [vmem:[#allocation4 + $0xa0] sm:$0xff] %v2707
    %2731 = vst [vmem:[#allocation4 + $0xa8] sm:$0xff] %v2712
    %2732 = vst [vmem:[#allocation4 + $0xb0] sm:$0xff] %v2717
    %2733 = vst [vmem:[#allocation4 + $0xb8] sm:$0xff] %v2722
    %2734 = vst [vmem:[#allocation4 + $0xc0] sm:$0xff] %v2727
    %v2735 = vld [vmem:[#allocation4] sm:$0xff]
    %v2736 = vld [vmem:[#allocation4 + $0x8] sm:$0xff]
    %v2737 = vld [vmem:[#allocation4 + $0x10] sm:$0xff]
    %v2738 = vld [vmem:[#allocation4 + $0x18] sm:$0xff]
    %v2739 = vld [vmem:[#allocation4 + $0x20] sm:$0xff]
    %v2740 = vld [vmem:[#allocation4 + $0x28] sm:$0xff]
    %v2741 = vld [vmem:[#allocation4 + $0x30] sm:$0xff]
    %v2742 = vld [vmem:[#allocation4 + $0x38] sm:$0xff]
    %v2743 = vld [vmem:[#allocation4 + $0x40] sm:$0xff]
    %v2744 = vld [vmem:[#allocation4 + $0x48] sm:$0xff]
    %v2745 = vld [vmem:[#allocation4 + $0x50] sm:$0xff]
    %v2746 = vld [vmem:[#allocation4 + $0x58] sm:$0xff]
    %v2747 = vld [vmem:[#allocation4 + $0x60] sm:$0xff]
    %v2748 = vld [vmem:[#allocation4 + $0x68] sm:$0xff]
    %v2749 = vld [vmem:[#allocation4 + $0x70] sm:$0xff]
    %v2750 = vld [vmem:[#allocation4 + $0x78] sm:$0xff]
    %v2751 = vld [vmem:[#allocation4 + $0x80] sm:$0xff]
    %v2752 = vld [vmem:[#allocation4 + $0x88] sm:$0xff]
    %v2753 = vld [vmem:[#allocation4 + $0x90] sm:$0xff]
    %v2754 = vld [vmem:[#allocation4 + $0x98] sm:$0xff]
    %v2755 = vld [vmem:[#allocation4 + $0xa0] sm:$0xff]
    %v2756 = vld [vmem:[#allocation4 + $0xa8] sm:$0xff]
    %v2757 = vld [vmem:[#allocation4 + $0xb0] sm:$0xff]
    %v2758 = vld [vmem:[#allocation4 + $0xb8] sm:$0xff]
    %v2759 = vld [vmem:[#allocation4 + $0xc0] sm:$0xff]
    %2761 = vset.pattern.permute.xlu0 0
    %2762 = vperm.xlu0 %2761, %v2335
    %v2763 = vpop.permute.xlu0 %2762
    %2766 = vset.pattern.permute.xlu0 0
    %2767 = vperm.xlu0 %2766, %v2336
    %v2768 = vpop.permute.xlu0 %2767
    %2771 = vset.pattern.permute.xlu0 0
    %2772 = vperm.xlu0 %2771, %v2337
    %v2773 = vpop.permute.xlu0 %2772
    %2776 = vset.pattern.permute.xlu0 0
    %2777 = vperm.xlu0 %2776, %v2338
    %v2778 = vpop.permute.xlu0 %2777
    %2781 = vset.pattern.permute.xlu0 0
    %2782 = vperm.xlu0 %2781, %v2339
    %v2783 = vpop.permute.xlu0 %2782
    %2786 = vset.pattern.permute.xlu0 0
    %2787 = vperm.xlu0 %2786, %v2340
    %v2788 = vpop.permute.xlu0 %2787
    %2791 = vset.pattern.permute.xlu0 0
    %2792 = vperm.xlu0 %2791, %v2341
    %v2793 = vpop.permute.xlu0 %2792
    %2796 = vset.pattern.permute.xlu0 0
    %2797 = vperm.xlu0 %2796, %v2342
    %v2798 = vpop.permute.xlu0 %2797
    %2801 = vset.pattern.permute.xlu0 0
    %2802 = vperm.xlu0 %2801, %v2343
    %v2803 = vpop.permute.xlu0 %2802
    %2806 = vset.pattern.permute.xlu0 0
    %2807 = vperm.xlu0 %2806, %v2344
    %v2808 = vpop.permute.xlu0 %2807
    %v2811 = vsel %vm1434, %v2316, 0
    %v2814 = vsel %vm1434, %v2318, 0
    %v2817 = vsel %vm1434, %v2320, 0
    %v2820 = vsel %vm1434, %v2322, 0
    %v2823 = vsel %vm1434, %v2324, 0
    %v2826 = vsel %vm1434, %v2326, 0
    %v2829 = vsel %vm1434, %v2328, 0
    %v2832 = vsel %vm1434, %v2330, 0
    %v2835 = vsel %vm1434, %v2332, 0
    %v2838 = vsel %vm1434, %v2334, 0
    %2840 = vmatprep.subr.mxu0 0.0
    %2841 = vmatpush1.msra.mxu0 %v2735
    %2842 = vmatprep.subr.mxu0 0.0
    %2843 = vmatpush1.msra.mxu0 %v2736
    %2844 = vmatprep.subr.mxu0 0.0
    %2845 = vmatpush1.msra.mxu0 %v2737
    %2846 = vmatprep.subr.mxu0 0.0
    %2847 = vmatpush1.msra.mxu0 %v2738
    %2848 = vmatprep.subr.mxu0 0.0
    %2849 = vmatpush1.msra.mxu0 %v2739
    %2850 = vmatprep.subr.mxu0 0.0
    %2851 = vmatpush1.msra.mxu0 %v2740
    %2852 = vmatprep.subr.mxu0 0.0
    %2853 = vmatpush1.msra.mxu0 %v2741
    %2854 = vmatprep.subr.mxu0 0.0
    %2855 = vmatpush1.msra.mxu0 %v2742
    %2856 = vmatprep.subr.mxu0 0.0
    %2857 = vmatpush1.msra.mxu0 %v2743
    %2858 = vmatprep.subr.mxu0 0.0
    %2859 = vmatpush1.msra.mxu0 %v2744
    %2860 = vmatprep.subr.mxu0 0.0
    %2861 = vmatpush1.msra.mxu0 %v2745
    %2862 = vmatprep.subr.mxu0 0.0
    %2863 = vmatpush1.msra.mxu0 %v2746
    %2864 = vmatprep.subr.mxu0 0.0
    %2865 = vmatpush1.msra.mxu0 %v2747
    %2866 = vmatprep.subr.mxu0 0.0
    %2867 = vmatpush1.msra.mxu0 %v2748
    %2868 = vmatprep.subr.mxu0 0.0
    %2869 = vmatpush1.msra.mxu0 %v2749
    %2870 = vmatprep.subr.mxu0 0.0
    %2871 = vmatpush1.msra.mxu0 %v2750
    %2872 = vmatprep.subr.mxu0 0.0
    %2873 = vmatpush1.msra.mxu0 %v2751
    %2874 = vmatprep.subr.mxu0 0.0
    %2875 = vmatpush1.msra.mxu0 %v2752
    %2876 = vmatprep.subr.mxu0 0.0
    %2877 = vmatpush1.msra.mxu0 %v2753
    %2878 = vmatprep.subr.mxu0 0.0
    %2879 = vmatpush1.msra.mxu0 %v2754
    %2880 = vmatprep.subr.mxu0 0.0
    %2881 = vmatpush1.msra.mxu0 %v2755
    %2882 = vmatprep.subr.mxu0 0.0
    %2883 = vmatpush1.msra.mxu0 %v2756
    %2884 = vmatprep.subr.mxu0 0.0
    %2885 = vmatpush1.msra.mxu0 %v2757
    %2886 = vmatprep.subr.mxu0 0.0
    %2887 = vmatpush1.msra.mxu0 %v2758
    %2888 = vmatprep.subr.mxu0 0.0
    %2889 = vmatpush1.msra.mxu0 %v2759
    %2890 = vmatprep.subr.mxu0 0.0
    %2891 = vmatpush1.msra.mxu0 0.0
    %2892 = vmatprep.subr.mxu0 0.0
    %2893 = vmatpush1.msra.mxu0 0.0
    %2894 = vmatprep.subr.mxu0 0.0
    %2895 = vmatpush1.msra.mxu0 0.0
    %2896 = vmatprep.subr.mxu0 0.0
    %2897 = vmatpush1.msra.mxu0 0.0
    %2898 = vmatprep.subr.mxu0 0.0
    %2899 = vmatpush1.msra.mxu0 0.0
    %2900 = vmatprep.subr.mxu0 0.0
    %2901 = vmatpush1.msra.mxu0 0.0
    %2902 = vmatprep.subr.mxu0 0.0
    %2903 = vmatpush1.msra.mxu0 0.0
    %2904 = vmatprep.mubr.f32.mxu0 %v2811
    %2905 = vmatmul.mubr.f32.gmra.mrb[0].mxu0 %v2315
    %v2906 = vpop.f32.mrb[0].mxu0
    %v2907 = vadd.f32 %v2763, %v2906
    %v2908 = vpop.f32.mrb[0].mxu0
    %2909 = vmatprep.mubr.f32.mxu0 %v2814
    %2910 = vmatmul.mubr.f32.gmra.mrb[0].mxu0 %v2317
    %v2911 = vpop.f32.mrb[0].mxu0
    %v2912 = vadd.f32 %v2768, %v2911
    %v2913 = vpop.f32.mrb[0].mxu0
    %2914 = vmatprep.mubr.f32.mxu0 %v2817
    %2915 = vmatmul.mubr.f32.gmra.mrb[0].mxu0 %v2319
    %v2916 = vpop.f32.mrb[0].mxu0
    %v2917 = vadd.f32 %v2773, %v2916
    %v2918 = vpop.f32.mrb[0].mxu0
    %2919 = vmatprep.mubr.f32.mxu0 %v2820
    %2920 = vmatmul.mubr.f32.gmra.mrb[0].mxu0 %v2321
    %v2921 = vpop.f32.mrb[0].mxu0
    %v2922 = vadd.f32 %v2778, %v2921
    %v2923 = vpop.f32.mrb[0].mxu0
    %2924 = vmatprep.mubr.f32.mxu0 %v2823
    %2925 = vmatmul.mubr.f32.gmra.mrb[0].mxu0 %v2323
    %v2926 = vpop.f32.mrb[0].mxu0
    %v2927 = vadd.f32 %v2783, %v2926
    %v2928 = vpop.f32.mrb[0].mxu0
    %2929 = vmatprep.mubr.f32.mxu0 %v2826
    %2930 = vmatmul.mubr.f32.gmra.mrb[0].mxu0 %v2325
    %v2931 = vpop.f32.mrb[0].mxu0
    %v2932 = vadd.f32 %v2788, %v2931
    %v2933 = vpop.f32.mrb[0].mxu0
    %2934 = vmatprep.mubr.f32.mxu0 %v2829
    %2935 = vmatmul.mubr.f32.gmra.mrb[0].mxu0 %v2327
    %v2936 = vpop.f32.mrb[0].mxu0
    %v2937 = vadd.f32 %v2793, %v2936
    %v2938 = vpop.f32.mrb[0].mxu0
    %2939 = vmatprep.mubr.f32.mxu0 %v2832
    %2940 = vmatmul.mubr.f32.gmra.mrb[0].mxu0 %v2329
    %v2941 = vpop.f32.mrb[0].mxu0
    %v2942 = vadd.f32 %v2798, %v2941
    %v2943 = vpop.f32.mrb[0].mxu0
    %2944 = vmatprep.mubr.f32.mxu0 %v2835
    %2945 = vmatmul.mubr.f32.gmra.mrb[0].mxu0 %v2331
    %v2946 = vpop.f32.mrb[0].mxu0
    %v2947 = vadd.f32 %v2803, %v2946
    %v2948 = vpop.f32.mrb[0].mxu0
    %2949 = vmatprep.mubr.f32.mxu0 %v2838
    %2950 = vmatmul.mubr.f32.gmra.mrb[0].mxu0 %v2333
    %v2951 = vpop.f32.mrb[0].mxu0
    %v2952 = vadd.f32 %v2808, %v2951
    %v2953 = vpop.f32.mrb[0].mxu0
    %2954 = vdwg.mxu0
    %v2955 = vmax.f32 %v2907, 0.0
    %v2956 = vmax.f32 %v2912, 0.0
    %v2957 = vmax.f32 %v2917, 0.0
    %v2958 = vmax.f32 %v2922, 0.0
    %v2959 = vmax.f32 %v2927, 0.0
    %v2960 = vmax.f32 %v2932, 0.0
    %v2961 = vmax.f32 %v2937, 0.0
    %v2962 = vmax.f32 %v2942, 0.0
    %v2963 = vmax.f32 %v2947, 0.0
    %v2964 = vmax.f32 %v2952, 0.0
    %v2965 = vld [vmem:[%s7] sm:$0xff]
    %v2966 = vld [vmem:[%s7 + $0x8] sm:$0xf]
    %v2967 = vld [vmem:[%s8] sm:$0xff]
    %v2968 = vld [vmem:[%s8 + $0x8] sm:$0xf]
    %2970 = vset.pattern.permute.xlu0 0
    %2971 = vperm.xlu0 %2970, %v2967
    %v2972 = vpop.permute.xlu0 %2971
    %2975 = vset.pattern.permute.xlu0 0
    %2976 = vperm.xlu0 %2975, %v2968
    %v2977 = vpop.permute.xlu0 %2976
    %v2980 = vsel %vm1604, %v2965, 0
    %v2983 = vsel %vm1604, %v2966, 0
    %2985 = vmatprep.subr.mxu0 0.0
    %2986 = vmatpush1.msra.mxu0 %v2955
    %2987 = vmatprep.subr.mxu0 0.0
    %2988 = vmatpush1.msra.mxu0 %v2956
    %2989 = vmatprep.subr.mxu0 0.0
    %2990 = vmatpush1.msra.mxu0 %v2957
    %2991 = vmatprep.subr.mxu0 0.0
    %2992 = vmatpush1.msra.mxu0 %v2958
    %2993 = vmatprep.subr.mxu0 0.0
    %2994 = vmatpush1.msra.mxu0 %v2959
    %2995 = vmatprep.subr.mxu0 0.0
    %2996 = vmatpush1.msra.mxu0 %v2960
    %2997 = vmatprep.subr.mxu0 0.0
    %2998 = vmatpush1.msra.mxu0 %v2961
    %2999 = vmatprep.subr.mxu0 0.0
    %3000 = vmatpush1.msra.mxu0 %v2962
    %3001 = vmatprep.subr.mxu0 0.0
    %3002 = vmatpush1.msra.mxu0 %v2963
    %3003 = vmatprep.subr.mxu0 0.0
    %3004 = vmatpush1.msra.mxu0 %v2964
    %3005 = vmatprep.subr.mxu0 0.0
    %3006 = vmatpush1.msra.mxu0 0.0
    %3007 = vmatprep.subr.mxu0 0.0
    %3008 = vmatpush1.msra.mxu0 0.0
    %3009 = vmatprep.subr.mxu0 0.0
    %3010 = vmatpush1.msra.mxu0 0.0
    %3011 = vmatprep.subr.mxu0 0.0
    %3012 = vmatpush1.msra.mxu0 0.0
    %3013 = vmatprep.subr.mxu0 0.0
    %3014 = vmatpush1.msra.mxu0 0.0
    %3015 = vmatprep.subr.mxu0 0.0
    %3016 = vmatpush1.msra.mxu0 0.0
    %3017 = vmatprep.subr.mxu0 0.0
    %3018 = vmatpush1.msra.mxu0 0.0
    %3019 = vmatprep.subr.mxu0 0.0
    %3020 = vmatpush1.msra.mxu0 0.0
    %3021 = vmatprep.subr.mxu0 0.0
    %3022 = vmatpush1.msra.mxu0 0.0
    %3023 = vmatprep.subr.mxu0 0.0
    %3024 = vmatpush1.msra.mxu0 0.0
    %3025 = vmatprep.subr.mxu0 0.0
    %3026 = vmatpush1.msra.mxu0 0.0
    %3027 = vmatprep.subr.mxu0 0.0
    %3028 = vmatpush1.msra.mxu0 0.0
    %3029 = vmatprep.subr.mxu0 0.0
    %3030 = vmatpush1.msra.mxu0 0.0
    %3031 = vmatprep.subr.mxu0 0.0
    %3032 = vmatpush1.msra.mxu0 0.0
    %3033 = vmatprep.subr.mxu0 0.0
    %3034 = vmatpush1.msra.mxu0 0.0
    %3035 = vmatprep.subr.mxu0 0.0
    %3036 = vmatpush1.msra.mxu0 0.0
    %3037 = vmatprep.subr.mxu0 0.0
    %3038 = vmatpush1.msra.mxu0 0.0
    %3039 = vmatprep.subr.mxu0 0.0
    %3040 = vmatpush1.msra.mxu0 0.0
    %3041 = vmatprep.subr.mxu0 0.0
    %3042 = vmatpush1.msra.mxu0 0.0
    %3043 = vmatprep.subr.mxu0 0.0
    %3044 = vmatpush1.msra.mxu0 0.0
    %3045 = vmatprep.subr.mxu0 0.0
    %3046 = vmatpush1.msra.mxu0 0.0
    %3047 = vmatprep.subr.mxu0 0.0
    %3048 = vmatpush1.msra.mxu0 0.0
    %3049 = vmatprep.mubr.f32.mxu0 0.0
    %3050 = vmatmul.mubr.f32.gmra.mrb[0].mxu0 %v2980
    %v3051 = vpop.f32.mrb[0].mxu0
    %v3052 = vadd.f32 %v2972, %v3051
    %v3053 = vpop.f32.mrb[0].mxu0
    %3054 = vmatprep.mubr.f32.mxu0 0.0
    %3055 = vmatmul.mubr.f32.gmra.mrb[0].mxu0 %v2983
    %v3056 = vpop.f32.mrb[0].mxu0
    %v3057 = vadd.f32 %v2977, %v3056
    %v3058 = vpop.f32.mrb[0].mxu0
    %3059 = vdwg.mxu0
    %v3060 = vld [vmem:[#allocation13] sm:$0xff]
    %v3061 = vld [vmem:[#allocation13 + $0x8] sm:$0xf]
    %v3062 = vld [vmem:[%s10] sm:$0xff]
    %v3063 = vld [vmem:[%s10 + $0x8] sm:$0xf]
    %3065 = vset.pattern.permute.xlu0 0
    %3066 = vperm.xlu0 %3065, %v3062
    %v3067 = vpop.permute.xlu0 %3066
    %3070 = vset.pattern.permute.xlu0 0
    %3071 = vperm.xlu0 %3070, %v3063
    %v3072 = vpop.permute.xlu0 %3071
    %v3075 = vsel %vm1604, %v3060, 0
    %v3078 = vsel %vm1604, %v3061, 0
    %3080 = vmatprep.subr.mxu0 0.0
    %3081 = vmatpush1.msra.mxu0 %v2955
    %3082 = vmatprep.subr.mxu0 0.0
    %3083 = vmatpush1.msra.mxu0 %v2956
    %3084 = vmatprep.subr.mxu0 0.0
    %3085 = vmatpush1.msra.mxu0 %v2957
    %3086 = vmatprep.subr.mxu0 0.0
    %3087 = vmatpush1.msra.mxu0 %v2958
    %3088 = vmatprep.subr.mxu0 0.0
    %3089 = vmatpush1.msra.mxu0 %v2959
    %3090 = vmatprep.subr.mxu0 0.0
    %3091 = vmatpush1.msra.mxu0 %v2960
    %3092 = vmatprep.subr.mxu0 0.0
    %3093 = vmatpush1.msra.mxu0 %v2961
    %3094 = vmatprep.subr.mxu0 0.0
    %3095 = vmatpush1.msra.mxu0 %v2962
    %3096 = vmatprep.subr.mxu0 0.0
    %3097 = vmatpush1.msra.mxu0 %v2963
    %3098 = vmatprep.subr.mxu0 0.0
    %3099 = vmatpush1.msra.mxu0 %v2964
    %3100 = vmatprep.subr.mxu0 0.0
    %3101 = vmatpush1.msra.mxu0 0.0
    %3102 = vmatprep.subr.mxu0 0.0
    %3103 = vmatpush1.msra.mxu0 0.0
    %3104 = vmatprep.subr.mxu0 0.0
    %3105 = vmatpush1.msra.mxu0 0.0
    %3106 = vmatprep.subr.mxu0 0.0
    %3107 = vmatpush1.msra.mxu0 0.0
    %3108 = vmatprep.subr.mxu0 0.0
    %3109 = vmatpush1.msra.mxu0 0.0
    %3110 = vmatprep.subr.mxu0 0.0
    %3111 = vmatpush1.msra.mxu0 0.0
    %3112 = vmatprep.subr.mxu0 0.0
    %3113 = vmatpush1.msra.mxu0 0.0
    %3114 = vmatprep.subr.mxu0 0.0
    %3115 = vmatpush1.msra.mxu0 0.0
    %3116 = vmatprep.subr.mxu0 0.0
    %3117 = vmatpush1.msra.mxu0 0.0
    %3118 = vmatprep.subr.mxu0 0.0
    %3119 = vmatpush1.msra.mxu0 0.0
    %3120 = vmatprep.subr.mxu0 0.0
    %3121 = vmatpush1.msra.mxu0 0.0
    %3122 = vmatprep.subr.mxu0 0.0
    %3123 = vmatpush1.msra.mxu0 0.0
    %3124 = vmatprep.subr.mxu0 0.0
    %3125 = vmatpush1.msra.mxu0 0.0
    %3126 = vmatprep.subr.mxu0 0.0
    %3127 = vmatpush1.msra.mxu0 0.0
    %3128 = vmatprep.subr.mxu0 0.0
    %3129 = vmatpush1.msra.mxu0 0.0
    %3130 = vmatprep.subr.mxu0 0.0
    %3131 = vmatpush1.msra.mxu0 0.0
    %3132 = vmatprep.subr.mxu0 0.0
    %3133 = vmatpush1.msra.mxu0 0.0
    %3134 = vmatprep.subr.mxu0 0.0
    %3135 = vmatpush1.msra.mxu0 0.0
    %3136 = vmatprep.subr.mxu0 0.0
    %3137 = vmatpush1.msra.mxu0 0.0
    %3138 = vmatprep.subr.mxu0 0.0
    %3139 = vmatpush1.msra.mxu0 0.0
    %3140 = vmatprep.subr.mxu0 0.0
    %3141 = vmatpush1.msra.mxu0 0.0
    %3142 = vmatprep.subr.mxu0 0.0
    %3143 = vmatpush1.msra.mxu0 0.0
    %3144 = vmatprep.mubr.f32.mxu0 0.0
    %3145 = vmatmul.mubr.f32.gmra.mrb[0].mxu0 %v3075
    %v3146 = vpop.f32.mrb[0].mxu0
    %v3147 = vadd.f32 %v3067, %v3146
    %v3148 = vpop.f32.mrb[0].mxu0
    %3149 = vmatprep.mubr.f32.mxu0 0.0
    %3150 = vmatmul.mubr.f32.gmra.mrb[0].mxu0 %v3078
    %v3151 = vpop.f32.mrb[0].mxu0
    %v3152 = vadd.f32 %v3072, %v3151
    %v3153 = vpop.f32.mrb[0].mxu0
    %3154 = vdwg.mxu0
    %v3155 = vld [vmem:[%s1805 + $0xc] sm:$0xff]
    %v3156 = vld [vmem:[%s1805 + $0x14] sm:$0xf]
    %v3157 = vld [vmem:[%s1805] sm:$0xff]
    %v3158 = vld [vmem:[%s1805 + $0x8] sm:$0xf]
    %s3159 = scalar_lea.vmem [#allocation15], 24
    %3160 = vst [vmem:[%s3159] sm:$0xff] %v3157
    %3161 = vst [vmem:[%s3159 + $0x8] sm:$0xf] %v3158
    %v3162 = vmul.f32 %v3052, 1.442695
    %v3163 = vpow.pop %v3162
    %v3164 = vmul.f32 %v3057, 1.442695
    %v3165 = vpow.pop %v3164
    %v3166 = vmul.f32 %v3163, %v3155
    %v3167 = vmul.f32 %v3165, %v3156
    %v3168 = vadd.f32 %v3166, %v3147
    %v3169 = vadd.f32 %v3167, %v3152
    %3170 = vst [vmem:[%s3159 + $0xc] sm:$0xff] %v3168
    %3171 = vst [vmem:[%s3159 + $0x14] sm:$0xf] %v3169
    %s3172 = scalar_lea.vmem %s12, 16
    %3173 = vst [vmem:[%s3172] sm:$0xff] %v3052
    %3174 = vst [vmem:[%s3172 + $0x8] sm:$0xf] %v3057
    // Predicated region
    $region58: #{tpu_custom_call.1} parent=1 // pred_check
      _
    $region59: #{tpu_custom_call.1} parent=1 // pred_check_branch
      %3176 = sbr.rel (0) target = $region61
    $region60: #{tpu_custom_call.1} parent=1 // pred_region
      %s3178 = ssub.s32 768, 768
      %3179 = vsyncadd [#allocation9], %s3178
      %s3180 = sshll.u32 [#allocation15], 4
      %s3181 = int_to_ptr.vmem [resolvable:$true] %s3180
      %3186 = dma.vmem_to_hbm [thread:$0]  %s3181, 768, %s11, [#allocation9], 128, 128, 8
    $region61: #{tpu_custom_call.1} parent=1 // pred_fallthru
      _
    // Predicated region
    $region62: #{tpu_custom_call.1} parent=1 // pred_check
      _
    $region63: #{tpu_custom_call.1} parent=1 // pred_check_branch
      %3188 = sbr.rel (0) target = $region65
    $region64: #{tpu_custom_call.1} parent=1 // pred_region
      _
    $region65: #{tpu_custom_call.1} parent=1 // pred_fallthru
      _
    // Predicated region
    $region66: #{tpu_custom_call.1} parent=1 // pred_check
      _
    $region67: #{tpu_custom_call.1} parent=1 // pred_check_branch
      %3190 = sbr.rel (0) target = $region69
    $region68: #{tpu_custom_call.1} parent=1 // pred_region
      %3191 = dma.done [#allocation9], 768
    $region69: #{tpu_custom_call.1} parent=1 // pred_fallthru
      _
    // Predicated region
    $region70: #{tpu_custom_call.1} parent=1 // pred_check
      _
    $region71: #{tpu_custom_call.1} parent=1 // pred_check_branch
      %3193 = sbr.rel (0) target = $region73
    $region72: #{tpu_custom_call.1} parent=1 // pred_region
      _
    $region73: #{tpu_custom_call.1} parent=1 // pred_fallthru
      _
    %3194 = vsyncpa [#allocation8], 1
    %3195 = vsyncpa [#allocation11], 1
    %3196 = vsyncpa [#allocation14], 1
    %3197 = vsyncpa [#allocation9], 1

</llo_original>
